<compile_context>
chip_gen: v7x
topology: tpu7x:2x2x1
jax: 0.10.0
libtpu: 0.0.40
codegen_flags: <defaults>
</compile_context>

<pallas_src>
import functools

import jax
import jax.numpy as jnp
from jax.experimental import pallas as pl
from jax.experimental.pallas import tpu as pltpu

EPS = 1e-5
_INV_SQRT2 = 0.7071067811865476

# <= 48 MiB keeps us inside v7x's 64 MiB/TC as well as v5e/v6e's 128 MiB VMEM budgets.
_VMEM_LIMIT_BYTES = 48 * 1024 * 1024
# >= 256 rows keeps the 256-wide MXU (v6e/v7x) busy; raise toward 512-1024 for large M.
_TILE_M_TARGET = 256


def _compiler_params():
    return pltpu.CompilerParams(
        dimension_semantics=("parallel",),            # all grids here are independent tiles
        vmem_limit_bytes=_VMEM_LIMIT_BYTES,
    )


def _choose_tile_m(m, target=_TILE_M_TARGET):
    """Largest multiple-of-8 divisor of m that is <= target (falls back to m: no tiling)."""
    if m <= target:
        return m
    for t in range(target, 7, -8):
        if m % t == 0:
            return t
    return m


def _gelu(x):
    # exact GELU (erf), matching nn.GELU(approximate='none')
    return 0.5 * x * (1.0 + jax.lax.erf(x * _INV_SQRT2))


def _tile_stats(y2d_f32):
    """Per-tile BN partials: rows = [sum over tile rows; sum of squares].  Shape (2, C)."""
    s1 = jnp.sum(y2d_f32, axis=0, keepdims=True)
    s2 = jnp.sum(y2d_f32 * y2d_f32, axis=0, keepdims=True)
    return jnp.concatenate([s1, s2], axis=0)


def _bn_scale_shift(partial_stats, count, gamma, beta):
    """Combine per-tile partials -> global train-mode BN as a per-channel affine (scale, shift)."""
    s = jnp.sum(partial_stats, axis=0)                # (2, C)
    mean = s[0:1] / count                             # (1, C)
    var = jnp.maximum(s[1:2] / count - mean * mean, 0.0)
    scale = gamma * jax.lax.rsqrt(var + EPS)
    shift = beta - mean * scale
    return scale, shift


def _shift_w(x, s):
    """xs[:, w, :] = x[:, w + s, :], zero-filled outside the image.  s is a static int.

    One sublane-direction shift per kernel column; hoisted out of the H tap loop.
    (pltpu.roll + iota mask would put this on the XLU; concat is used for simplicity.)
    """
    if s == 0:
        return x
    hp, wp, c = x.shape
    zeros = jnp.zeros((hp, abs(s), c), x.dtype)
    if s > 0:
        return jnp.concatenate([x[:, s:, :], zeros], axis=1)
    return jnp.concatenate([zeros, x[:, :s, :]], axis=1)


# ----------------------------- Pallas kernels ------------------------------ #

def stem_kernel(p_ref, w_ref, b_ref, y_ref, st_ref):
    """Patch-embedding conv as MXU matmul (bf16 x bf16 -> f32) + bias + exact GELU.

    Emits the pre-BatchNorm activation tile (bf16) plus per-tile [sum; sumsq] so the
    wrapper can form *global* train-mode BN statistics despite M tiling.
    """
    y = jnp.dot(p_ref[...], w_ref[...], preferred_element_type=jnp.float32)
    y = _gelu(y + b_ref[...])
    yb = y.astype(y_ref.dtype)
    y_ref[...] = yb
    st_ref[0] = _tile_stats(yb.astype(jnp.float32))


def dw_block_kernel(x_ref, scale_ref, shift_ref, dw_ref, db_ref,
                    y_ref, st_ref, acc_ref, *, k, hp, wp):
    """Depthwise k x k 'same' conv + bias + GELU for one image (grid step = one image).

    The previous stage's BatchNorm is applied on the fly as a per-channel affine, the zero
    halo is handled in-kernel (no wrapper-side jnp.pad), the W shift is hoisted (k shifted
    copies, not k*k), and taps accumulate into a single f32 VMEM scratch.
    """
    pad = (k - 1) // 2
    c = x_ref.shape[-1]
    dwv = dw_ref[...]                                             # (k, k, C) f32

    # BN of the *previous* stage, fused into this consumer (elementwise affine).
    xn = (x_ref[0].astype(jnp.float32) * scale_ref[...] + shift_ref[...]).astype(jnp.bfloat16)

    acc_ref[...] = jnp.zeros_like(acc_ref)
    for dj in range(k):
        xs = _shift_w(xn, dj - pad)                               # one sublane shift per column
        for di in range(k):
            sh = di - pad
            d0, d1 = max(0, -sh), hp - max(0, sh)                 # static H slices (aligned rows)
            s0, s1 = max(0, sh), hp - max(0, -sh)
            acc_ref[d0:d1, :, :] += xs[s0:s1, :, :].astype(jnp.float32) * dwv[di, dj]

    y = _gelu(acc_ref[...] + db_ref[...])
    yb = y.astype(y_ref.dtype)
    y_ref[0] = yb
    st_ref[0] = _tile_stats(yb.reshape(hp * wp, c).astype(jnp.float32))


def pw_block_kernel(y1_ref, x_ref, si_ref, oi_ref, s1_ref, o1_ref, w_ref, b_ref,
                    y_ref, st_ref):
    """BN1-apply + residual add + 1x1 conv (bf16 MXU matmul) + bias + GELU for one M tile."""
    xres = x_ref[...].astype(jnp.float32) * si_ref[...] + oi_ref[...]          # BN_in(x) residual
    z = y1_ref[...].astype(jnp.float32) * s1_ref[...] + o1_ref[...] + xres     # BN1(y1) + x
    y = jnp.dot(z.astype(jnp.bfloat16), w_ref[...], preferred_element_type=jnp.float32)
    y = _gelu(y + b_ref[...])
    yb = y.astype(y_ref.dtype)
    y_ref[...] = yb
    st_ref[0] = _tile_stats(yb.astype(jnp.float32))


def bn_apply_kernel(x_ref, s_ref, o_ref, y_ref):
    """Final BatchNorm apply (after the last block), tiled over M, f32 output."""
    y_ref[...] = (x_ref[...].astype(jnp.float32) * s_ref[...] + o_ref[...]).astype(y_ref.dtype)


# ------------------------------ JAX wrapper -------------------------------- #

def init_params(key, *, dim, depth, kernel_size, patch_size, in_chans):
    """Deterministic synthetic parameters (shapes follow the nn.Module __init__).

    Layout mapping vs. PyTorch:
      stem_w (Cin*p*p, dim)  <- Conv2d(in,dim,p,p).weight (dim, Cin, p, p) flattened/transposed
      dw     (k, k, dim)     <- depthwise Conv2d(dim,dim,k,groups=dim).weight (dim, 1, k, k)
      pw     (dim, dim)      <- Conv2d(dim,dim,1).weight (dim, dim, 1, 1) transposed
    """
    ks = jax.random.split(key, 4 + 8 * depth)
    it = iter(ks)
    s = 0.1
    params = {
        "stem_w": s * jax.random.normal(next(it), (in_chans * patch_size * patch_size, dim), jnp.float32),
        "stem_b": s * jax.random.normal(next(it), (1, dim), jnp.float32),
        "stem_g": 1.0 + s * jax.random.normal(next(it), (1, dim), jnp.float32),
        "stem_beta": s * jax.random.normal(next(it), (1, dim), jnp.float32),
        "blocks": [],
    }
    for _ in range(depth):
        params["blocks"].append({
            "dw": s * jax.random.normal(next(it), (kernel_size, kernel_size, dim), jnp.float32),
            "db": s * jax.random.normal(next(it), (1, dim), jnp.float32),
            "g1": 1.0 + s * jax.random.normal(next(it), (1, dim), jnp.float32),
            "b1": s * jax.random.normal(next(it), (1, dim), jnp.float32),
            "pw": s * jax.random.normal(next(it), (dim, dim), jnp.float32),
            "pb": s * jax.random.normal(next(it), (1, dim), jnp.float32),
            "g2": 1.0 + s * jax.random.normal(next(it), (1, dim), jnp.float32),
            "b2": s * jax.random.normal(next(it), (1, dim), jnp.float32),
        })
    return params


def conv_mixer_forward(x_nchw, params, *, patch_size, kernel_size):
    assert kernel_size % 2 == 1, "'same' depthwise padding implemented for odd kernel_size"
    n, cin, h, w = x_nchw.shape
    assert h % patch_size == 0 and w % patch_size == 0
    hp, wp = h // patch_size, w // patch_size
    dim = params["stem_w"].shape[1]
    m = n * hp * wp
    k = kernel_size

    tm = _choose_tile_m(m)
    gm = m // tm

    # --- stem: non-overlapping patch extraction (XLA glue) + tiled matmul/GELU kernel ---
    patches = (
        x_nchw.reshape(n, cin, hp, patch_size, wp, patch_size)
        .transpose(0, 2, 4, 1, 3, 5)                    # (N, Hp, Wp, Cin, p, p)
        .reshape(m, cin * patch_size * patch_size)
        .astype(jnp.bfloat16)
    )
    kdim = cin * patch_size * patch_size
    # TODO(synk): kdim (= Cin*p*p, e.g. 48/147) is tiny vs the 256-wide MXU; could be padded
    # toward 128 but the stem matmul is negligible either way.

    y_pre, st = pl.pallas_call(
        stem_kernel,
        grid=(gm,),
        in_specs=[
            pl.BlockSpec((tm, kdim), lambda i: (i, 0)),
            pl.BlockSpec((kdim, dim), lambda i: (0, 0)),
            pl.BlockSpec((1, dim), lambda i: (0, 0)),
        ],
        out_specs=(
            pl.BlockSpec((tm, dim), lambda i: (i, 0)),
            pl.BlockSpec((1, 2, dim), lambda i: (i, 0, 0)),
        ),
        out_shape=(
            jax.ShapeDtypeStruct((m, dim), jnp.bfloat16),
            jax.ShapeDtypeStruct((gm, 2, dim), jnp.float32),
        ),
        compiler_params=_compiler_params(),
    )(patches, params["stem_w"].astype(jnp.bfloat16), params["stem_b"])
    # pre-BN feature map `y_pre` + the affine (scale, shift) of its (global) BN
    scale, shift = _bn_scale_shift(st, m, params["stem_g"], params["stem_beta"])

    dw_kern = functools.partial(dw_block_kernel, k=k, hp=hp, wp=wp)
    for bp in params["blocks"]:
        x4 = y_pre.reshape(n, hp, wp, dim)              # NHWC view, free reshape

        # depthwise conv (one image per grid step, halo handled in-kernel)
        y1, st1 = pl.pallas_call(
            dw_kern,
            grid=(n,),
            in_specs=[
                pl.BlockSpec((1, hp, wp, dim), lambda b: (b, 0, 0, 0)),
                pl.BlockSpec((1, dim), lambda b: (0, 0)),      # scale of input BN
                pl.BlockSpec((1, dim), lambda b: (0, 0)),      # shift of input BN
                pl.BlockSpec((k, k, dim), lambda b: (0, 0, 0)),
                pl.BlockSpec((1, dim), lambda b: (0, 0)),      # depthwise bias
            ],
            out_specs=(
                pl.BlockSpec((1, hp, wp, dim), lambda b: (b, 0, 0, 0)),
                pl.BlockSpec((1, 2, dim), lambda b: (b, 0, 0)),
            ),
            out_shape=(
                jax.ShapeDtypeStruct((n, hp, wp, dim), jnp.bfloat16),
                jax.ShapeDtypeStruct((n, 2, dim), jnp.float32),
            ),
            scratch_shapes=[pltpu.VMEM((hp, wp, dim), jnp.float32)],
            compiler_params=_compiler_params(),
        )(x4, scale, shift, bp["dw"], bp["db"])
        scale1, shift1 = _bn_scale_shift(st1, m, bp["g1"], bp["b1"])

        # BN1 + residual + pointwise matmul + GELU (tiled over M); y1 buffer is dead after
        # this call so it is aliased onto the output to avoid an extra HBM allocation.
        y2, st2 = pl.pallas_call(
            pw_block_kernel,
            grid=(gm,),
            in_specs=[
                pl.BlockSpec((tm, dim), lambda i: (i, 0)),     # y1 (pre-BN1)
                pl.BlockSpec((tm, dim), lambda i: (i, 0)),     # x_pre (residual, pre-input-BN)
                pl.BlockSpec((1, dim), lambda i: (0, 0)),      # scale_in
                pl.BlockSpec((1, dim), lambda i: (0, 0)),      # shift_in
                pl.BlockSpec((1, dim), lambda i: (0, 0)),      # scale1
                pl.BlockSpec((1, dim), lambda i: (0, 0)),      # shift1
                pl.BlockSpec((dim, dim), lambda i: (0, 0)),    # pointwise weight (bf16)
                pl.BlockSpec((1, dim), lambda i: (0, 0)),      # pointwise bias
            ],
            out_specs=(
                pl.BlockSpec((tm, dim), lambda i: (i, 0)),
                pl.BlockSpec((1, 2, dim), lambda i: (i, 0, 0)),
            ),
            out_shape=(
                jax.ShapeDtypeStruct((m, dim), jnp.bfloat16),
                jax.ShapeDtypeStruct((gm, 2, dim), jnp.float32),
            ),
            input_output_aliases={0: 0},
            compiler_params=_compiler_params(),
        )(y1.reshape(m, dim), y_pre, scale, shift, scale1, shift1,
          bp["pw"].astype(jnp.bfloat16), bp["pb"])
        scale, shift = _bn_scale_shift(st2, m, bp["g2"], bp["b2"])
        y_pre = y2

    # final BN apply after the last block (other BN applies were fused into consumers)
    out = pl.pallas_call(
        bn_apply_kernel,
        grid=(gm,),
        in_specs=[
            pl.BlockSpec((tm, dim), lambda i: (i, 0)),
            pl.BlockSpec((1, dim), lambda i: (0, 0)),
            pl.BlockSpec((1, dim), lambda i: (0, 0)),
        ],
        out_specs=pl.BlockSpec((tm, dim), lambda i: (i, 0)),
        out_shape=jax.ShapeDtypeStruct((m, dim), jnp.float32),
        compiler_params=_compiler_params(),
    )(y_pre, scale, shift)

    # back to NCHW like the PyTorch module output
    return out.reshape(n, hp, wp, dim).transpose(0, 3, 1, 2)


if __name__ == "__main__":
    # small, forward-consistent config: lane-dense dim (128), M = 2*16*16 = 512 -> 2 M-tiles
    N, IN_CHANS, H, W = 2, 3, 64, 64
    DIM, DEPTH, KSIZE, PSIZE = 128, 2, 3, 4

    key = jax.random.PRNGKey(0)
    kx, kp = jax.random.split(key)
    x = jax.random.normal(kx, (N, IN_CHANS, H, W), jnp.float32)
    params = init_params(kp, dim=DIM, depth=DEPTH, kernel_size=KSIZE,
                         patch_size=PSIZE, in_chans=IN_CHANS)

    fwd = jax.jit(functools.partial(conv_mixer_forward,
                                    patch_size=PSIZE, kernel_size=KSIZE))
    out = fwd(x, params)
    jax.block_until_ready(out)
    assert out.shape == (N, DIM, H // PSIZE, W // PSIZE)
    print("KERNEL_OK")
</pallas_src>

<mosaic_0001>
module attributes {stable_mosaic.version = 11 : i64} {
  func.func @stem_kernel(%arg0: i32, %arg1: memref<256x48xbf16, #tpu.memory_space<vmem>>, %arg2: memref<48x128xbf16, #tpu.memory_space<vmem>>, %arg3: memref<1x128xf32, #tpu.memory_space<vmem>>, %arg4: memref<256x128xbf16, #tpu.memory_space<vmem>>, %arg5: memref<1x2x128xf32, #tpu.memory_space<vmem>>) attributes {dimension_semantics = [#tpu.dimension_semantics<parallel>], iteration_bounds = array<i64: 2>, scalar_prefetch = 0 : i64, scratch_operands = 0 : i64, tpu.core_type = #tpu.core_type<tc>, window_params = [{transform_indices = @transform_0, window_bounds = array<i64: 256, 48>}, {pipeline_mode = #tpu.pipeline_mode<synchronous>, transform_indices = @transform_1, window_bounds = array<i64: 48, 128>}, {pipeline_mode = #tpu.pipeline_mode<synchronous>, transform_indices = @transform_2, window_bounds = array<i64: 1, 128>}, {transform_indices = @transform_3, window_bounds = array<i64: 256, 128>}, {transform_indices = @transform_4, window_bounds = array<i64: 1, 2, 128>}]} {
    %c0 = arith.constant 0 : index
    %c0_0 = arith.constant 0 : index
    %0 = vector.load %arg1[%c0, %c0_0] : memref<256x48xbf16, #tpu.memory_space<vmem>>, vector<256x48xbf16>
    %c0_1 = arith.constant 0 : index
    %c0_2 = arith.constant 0 : index
    %1 = vector.load %arg2[%c0_1, %c0_2] : memref<48x128xbf16, #tpu.memory_space<vmem>>, vector<48x128xbf16>
    %cst = arith.constant dense<0.000000e+00> : vector<256x128xf32>
    %2 = tpu.matmul %0, %1, %cst {dimension_numbers = #tpu.dot_dimension_numbers<[1], [0], [0], [1], [0, 0, 1, 1], [], []>} : vector<256x48xbf16>, vector<48x128xbf16>, vector<256x128xf32> -> vector<256x128xf32>
    %c0_3 = arith.constant 0 : index
    %c0_4 = arith.constant 0 : index
    %3 = vector.load %arg3[%c0_3, %c0_4] : memref<1x128xf32, #tpu.memory_space<vmem>>, vector<1x128xf32>
    %4 = vector.broadcast %3 : vector<1x128xf32> to vector<256x128xf32>
    %5 = arith.addf %2, %4 : vector<256x128xf32>
    %cst_5 = arith.constant 5.000000e-01 : f32
    %6 = vector.broadcast %cst_5 : f32 to vector<256x128xf32>
    %7 = arith.mulf %6, %5 : vector<256x128xf32>
    %cst_6 = arith.constant 0.707106769 : f32
    %8 = vector.broadcast %cst_6 : f32 to vector<256x128xf32>
    %9 = arith.mulf %5, %8 : vector<256x128xf32>
    %10 = math.erf %9 : vector<256x128xf32>
    %cst_7 = arith.constant 1.000000e+00 : f32
    %11 = vector.broadcast %cst_7 : f32 to vector<256x128xf32>
    %12 = arith.addf %11, %10 : vector<256x128xf32>
    %13 = arith.mulf %7, %12 : vector<256x128xf32>
    %14 = arith.truncf %13 : vector<256x128xf32> to vector<256x128xbf16>
    %c0_8 = arith.constant 0 : index
    %c0_9 = arith.constant 0 : index
    %15 = vector.load %arg4[%c0_8, %c0_9] : memref<256x128xbf16, #tpu.memory_space<vmem>>, vector<256x128xbf16>
    tpu.vector_store %arg4[%c0_8, %c0_9], %14 {strides = array<i32>} : memref<256x128xbf16, #tpu.memory_space<vmem>>, vector<256x128xbf16>,
    %16 = arith.extf %14 : vector<256x128xbf16> to vector<256x128xf32>
    %cst_10 = arith.constant dense<0.000000e+00> : vector<128xf32>
    %17 = vector.multi_reduction <add>, %16, %cst_10 [0] : vector<256x128xf32> to vector<128xf32>
    %18 = vector.shape_cast %17 : vector<128xf32> to vector<1x128xf32>
    %19 = arith.mulf %16, %16 : vector<256x128xf32>
    %cst_11 = arith.constant dense<0.000000e+00> : vector<128xf32>
    %20 = vector.multi_reduction <add>, %19, %cst_11 [0] : vector<256x128xf32> to vector<128xf32>
    %21 = vector.shape_cast %20 : vector<128xf32> to vector<1x128xf32>
    %22 = tpu.concatenate %18, %21 in 0 : vector<1x128xf32>, vector<1x128xf32> -> vector<2x128xf32>
    %c0_12 = arith.constant 0 : index
    %c0_13 = arith.constant 0 : index
    %c0_14 = arith.constant 0 : index
    %23 = vector.load %arg5[%c0_12, %c0_13, %c0_14] : memref<1x2x128xf32, #tpu.memory_space<vmem>>, vector<1x2x128xf32>
    %24 = vector.shape_cast %23 : vector<1x2x128xf32> to vector<2x128xf32>
    %25 = vector.shape_cast %22 : vector<2x128xf32> to vector<1x2x128xf32>
    tpu.vector_store %arg5[%c0_12, %c0_13, %c0_14], %25 {strides = array<i32>} : memref<1x2x128xf32, #tpu.memory_space<vmem>>, vector<1x2x128xf32>,
    return
  }
  func.func @transform_0(%arg0: i32) -> (i32, i32) {
    %c0_i32 = arith.constant 0 : i32
    %c0_i32_0 = arith.constant 0 : i32
    return %arg0, %c0_i32 : i32, i32
  }
  func.func @transform_1(%arg0: i32) -> (i32, i32) {
    %c0_i32 = arith.constant 0 : i32
    %c0_i32_0 = arith.constant 0 : i32
    %c0_i32_1 = arith.constant 0 : i32
    return %c0_i32, %c0_i32_0 : i32, i32
  }
  func.func @transform_2(%arg0: i32) -> (i32, i32) {
    %c0_i32 = arith.constant 0 : i32
    %c0_i32_0 = arith.constant 0 : i32
    %c0_i32_1 = arith.constant 0 : i32
    return %c0_i32, %c0_i32_0 : i32, i32
  }
  func.func @transform_3(%arg0: i32) -> (i32, i32) {
    %c0_i32 = arith.constant 0 : i32
    %c0_i32_0 = arith.constant 0 : i32
    return %arg0, %c0_i32 : i32, i32
  }
  func.func @transform_4(%arg0: i32) -> (i32, i32, i32) {
    %c0_i32 = arith.constant 0 : i32
    %c0_i32_0 = arith.constant 0 : i32
    %c0_i32_1 = arith.constant 0 : i32
    return %arg0, %c0_i32, %c0_i32_0 : i32, i32, i32
  }
}

module attributes {stable_mosaic.version = 11 : i64} {
  func.func @dw_block_kernel(%arg0: i32, %arg1: memref<1x16x16x128xbf16, #tpu.memory_space<vmem>>, %arg2: memref<1x128xf32, #tpu.memory_space<vmem>>, %arg3: memref<1x128xf32, #tpu.memory_space<vmem>>, %arg4: memref<3x3x128xf32, #tpu.memory_space<vmem>>, %arg5: memref<1x128xf32, #tpu.memory_space<vmem>>, %arg6: memref<1x16x16x128xbf16, #tpu.memory_space<vmem>>, %arg7: memref<1x2x128xf32, #tpu.memory_space<vmem>>, %arg8: memref<16x16x128xf32, #tpu.memory_space<vmem>>) attributes {dimension_semantics = [#tpu.dimension_semantics<parallel>], iteration_bounds = array<i64: 2>, scalar_prefetch = 0 : i64, scratch_operands = 1 : i64, tpu.core_type = #tpu.core_type<tc>, window_params = [{transform_indices = @transform_0, window_bounds = array<i64: 1, 16, 16, 128>}, {pipeline_mode = #tpu.pipeline_mode<synchronous>, transform_indices = @transform_1, window_bounds = array<i64: 1, 128>}, {pipeline_mode = #tpu.pipeline_mode<synchronous>, transform_indices = @transform_2, window_bounds = array<i64: 1, 128>}, {pipeline_mode = #tpu.pipeline_mode<synchronous>, transform_indices = @transform_3, window_bounds = array<i64: 3, 3, 128>}, {pipeline_mode = #tpu.pipeline_mode<synchronous>, transform_indices = @transform_4, window_bounds = array<i64: 1, 128>}, {transform_indices = @transform_5, window_bounds = array<i64: 1, 16, 16, 128>}, {transform_indices = @transform_6, window_bounds = array<i64: 1, 2, 128>}]} {
    %c0 = arith.constant 0 : index
    %c0_0 = arith.constant 0 : index
    %c0_1 = arith.constant 0 : index
    %0 = vector.load %arg4[%c0, %c0_0, %c0_1] : memref<3x3x128xf32, #tpu.memory_space<vmem>>, vector<3x3x128xf32>
    %c0_2 = arith.constant 0 : index
    %c0_3 = arith.constant 0 : index
    %c0_4 = arith.constant 0 : index
    %c0_5 = arith.constant 0 : index
    %1 = vector.load %arg1[%c0_2, %c0_3, %c0_4, %c0_5] : memref<1x16x16x128xbf16, #tpu.memory_space<vmem>>, vector<1x16x16x128xbf16>
    %2 = vector.shape_cast %1 : vector<1x16x16x128xbf16> to vector<16x16x128xbf16>
    %3 = arith.extf %2 : vector<16x16x128xbf16> to vector<16x16x128xf32>
    %c0_6 = arith.constant 0 : index
    %c0_7 = arith.constant 0 : index
    %4 = vector.load %arg2[%c0_6, %c0_7] : memref<1x128xf32, #tpu.memory_space<vmem>>, vector<1x128xf32>
    %5 = vector.shape_cast %4 : vector<1x128xf32> to vector<1x1x128xf32>
    %6 = vector.broadcast %5 : vector<1x1x128xf32> to vector<16x16x128xf32>
    %7 = arith.mulf %3, %6 : vector<16x16x128xf32>
    %c0_8 = arith.constant 0 : index
    %c0_9 = arith.constant 0 : index
    %8 = vector.load %arg3[%c0_8, %c0_9] : memref<1x128xf32, #tpu.memory_space<vmem>>, vector<1x128xf32>
    %9 = vector.shape_cast %8 : vector<1x128xf32> to vector<1x1x128xf32>
    %10 = vector.broadcast %9 : vector<1x1x128xf32> to vector<16x16x128xf32>
    %11 = arith.addf %7, %10 : vector<16x16x128xf32>
    %12 = arith.truncf %11 : vector<16x16x128xf32> to vector<16x16x128xbf16>
    %cst = arith.constant 0.000000e+00 : f32
    %13 = vector.broadcast %cst : f32 to vector<16x16x128xf32>
    %c0_10 = arith.constant 0 : index
    %c0_11 = arith.constant 0 : index
    %c0_12 = arith.constant 0 : index
    %14 = vector.load %arg8[%c0_10, %c0_11, %c0_12] : memref<16x16x128xf32, #tpu.memory_space<vmem>>, vector<16x16x128xf32>
    tpu.vector_store %arg8[%c0_10, %c0_11, %c0_12], %13 {strides = array<i32>} : memref<16x16x128xf32, #tpu.memory_space<vmem>>, vector<16x16x128xf32>,
    %cst_13 = arith.constant 0.000000e+00 : bf16
    %15 = vector.broadcast %cst_13 : bf16 to vector<16x1x128xbf16>
    %16 = vector.extract_strided_slice %12 {offsets = [0, 0, 0], sizes = [16, 15, 128], strides = [1, 1, 1]} : vector<16x16x128xbf16> to vector<16x15x128xbf16>
    %17 = tpu.concatenate %15, %16 in 1 : vector<16x1x128xbf16>, vector<16x15x128xbf16> -> vector<16x16x128xbf16>
    %c1 = arith.constant 1 : index
    %c0_14 = arith.constant 0 : index
    %c0_15 = arith.constant 0 : index
    %18 = vector.load %arg8[%c1, %c0_14, %c0_15] : memref<16x16x128xf32, #tpu.memory_space<vmem>>, vector<15x16x128xf32>
    %19 = vector.extract_strided_slice %17 {offsets = [0, 0, 0], sizes = [15, 16, 128], strides = [1, 1, 1]} : vector<16x16x128xbf16> to vector<15x16x128xbf16>
    %20 = arith.extf %19 : vector<15x16x128xbf16> to vector<15x16x128xf32>
    %21 = vector.extract_strided_slice %0 {offsets = [0, 0, 0], sizes = [1, 1, 128], strides = [1, 1, 1]} : vector<3x3x128xf32> to vector<1x1x128xf32>
    %22 = vector.shape_cast %21 : vector<1x1x128xf32> to vector<128xf32>
    %23 = vector.shape_cast %22 : vector<128xf32> to vector<1x1x128xf32>
    %24 = vector.broadcast %23 : vector<1x1x128xf32> to vector<15x16x128xf32>
    %25 = arith.mulf %20, %24 : vector<15x16x128xf32>
    %26 = arith.addf %18, %25 : vector<15x16x128xf32>
    %c1_16 = arith.constant 1 : index
    %c0_17 = arith.constant 0 : index
    %c0_18 = arith.constant 0 : index
    %27 = vector.load %arg8[%c1_16, %c0_17, %c0_18] : memref<16x16x128xf32, #tpu.memory_space<vmem>>, vector<15x16x128xf32>
    tpu.vector_store %arg8[%c1_16, %c0_17, %c0_18], %26 {strides = array<i32>} : memref<16x16x128xf32, #tpu.memory_space<vmem>>, vector<15x16x128xf32>,
    %c0_19 = arith.constant 0 : index
    %c0_20 = arith.constant 0 : index
    %c0_21 = arith.constant 0 : index
    %28 = vector.load %arg8[%c0_19, %c0_20, %c0_21] : memref<16x16x128xf32, #tpu.memory_space<vmem>>, vector<16x16x128xf32>
    %29 = arith.extf %17 : vector<16x16x128xbf16> to vector<16x16x128xf32>
    %30 = vector.extract_strided_slice %0 {offsets = [1, 0, 0], sizes = [1, 1, 128], strides = [1, 1, 1]} : vector<3x3x128xf32> to vector<1x1x128xf32>
    %31 = vector.shape_cast %30 : vector<1x1x128xf32> to vector<128xf32>
    %32 = vector.shape_cast %31 : vector<128xf32> to vector<1x1x128xf32>
    %33 = vector.broadcast %32 : vector<1x1x128xf32> to vector<16x16x128xf32>
    %34 = arith.mulf %29, %33 : vector<16x16x128xf32>
    %35 = arith.addf %28, %34 : vector<16x16x128xf32>
    %c0_22 = arith.constant 0 : index
    %c0_23 = arith.constant 0 : index
    %c0_24 = arith.constant 0 : index
    %36 = vector.load %arg8[%c0_22, %c0_23, %c0_24] : memref<16x16x128xf32, #tpu.memory_space<vmem>>, vector<16x16x128xf32>
    tpu.vector_store %arg8[%c0_22, %c0_23, %c0_24], %35 {strides = array<i32>} : memref<16x16x128xf32, #tpu.memory_space<vmem>>, vector<16x16x128xf32>,
    %c0_25 = arith.constant 0 : index
    %c0_26 = arith.constant 0 : index
    %c0_27 = arith.constant 0 : index
    %37 = vector.load %arg8[%c0_25, %c0_26, %c0_27] : memref<16x16x128xf32, #tpu.memory_space<vmem>>, vector<15x16x128xf32>
    %38 = vector.extract_strided_slice %17 {offsets = [1, 0, 0], sizes = [15, 16, 128], strides = [1, 1, 1]} : vector<16x16x128xbf16> to vector<15x16x128xbf16>
    %39 = arith.extf %38 : vector<15x16x128xbf16> to vector<15x16x128xf32>
    %40 = vector.extract_strided_slice %0 {offsets = [2, 0, 0], sizes = [1, 1, 128], strides = [1, 1, 1]} : vector<3x3x128xf32> to vector<1x1x128xf32>
    %41 = vector.shape_cast %40 : vector<1x1x128xf32> to vector<128xf32>
    %42 = vector.shape_cast %41 : vector<128xf32> to vector<1x1x128xf32>
    %43 = vector.broadcast %42 : vector<1x1x128xf32> to vector<15x16x128xf32>
    %44 = arith.mulf %39, %43 : vector<15x16x128xf32>
    %45 = arith.addf %37, %44 : vector<15x16x128xf32>
    %c0_28 = arith.constant 0 : index
    %c0_29 = arith.constant 0 : index
    %c0_30 = arith.constant 0 : index
    %46 = vector.load %arg8[%c0_28, %c0_29, %c0_30] : memref<16x16x128xf32, #tpu.memory_space<vmem>>, vector<15x16x128xf32>
    tpu.vector_store %arg8[%c0_28, %c0_29, %c0_30], %45 {strides = array<i32>} : memref<16x16x128xf32, #tpu.memory_space<vmem>>, vector<15x16x128xf32>,
    %c1_31 = arith.constant 1 : index
    %c0_32 = arith.constant 0 : index
    %c0_33 = arith.constant 0 : index
    %47 = vector.load %arg8[%c1_31, %c0_32, %c0_33] : memref<16x16x128xf32, #tpu.memory_space<vmem>>, vector<15x16x128xf32>
    %48 = vector.extract_strided_slice %12 {offsets = [0, 0, 0], sizes = [15, 16, 128], strides = [1, 1, 1]} : vector<16x16x128xbf16> to vector<15x16x128xbf16>
    %49 = arith.extf %48 : vector<15x16x128xbf16> to vector<15x16x128xf32>
    %50 = vector.extract_strided_slice %0 {offsets = [0, 1, 0], sizes = [1, 1, 128], strides = [1, 1, 1]} : vector<3x3x128xf32> to vector<1x1x128xf32>
    %51 = vector.shape_cast %50 : vector<1x1x128xf32> to vector<128xf32>
    %52 = vector.shape_cast %51 : vector<128xf32> to vector<1x1x128xf32>
    %53 = vector.broadcast %52 : vector<1x1x128xf32> to vector<15x16x128xf32>
    %54 = arith.mulf %49, %53 : vector<15x16x128xf32>
    %55 = arith.addf %47, %54 : vector<15x16x128xf32>
    %c1_34 = arith.constant 1 : index
    %c0_35 = arith.constant 0 : index
    %c0_36 = arith.constant 0 : index
    %56 = vector.load %arg8[%c1_34, %c0_35, %c0_36] : memref<16x16x128xf32, #tpu.memory_space<vmem>>, vector<15x16x128xf32>
    tpu.vector_store %arg8[%c1_34, %c0_35, %c0_36], %55 {strides = array<i32>} : memref<16x16x128xf32, #tpu.memory_space<vmem>>, vector<15x16x128xf32>,
    %c0_37 = arith.constant 0 : index
    %c0_38 = arith.constant 0 : index
    %c0_39 = arith.constant 0 : index
    %57 = vector.load %arg8[%c0_37, %c0_38, %c0_39] : memref<16x16x128xf32, #tpu.memory_space<vmem>>, vector<16x16x128xf32>
    %58 = arith.extf %12 : vector<16x16x128xbf16> to vector<16x16x128xf32>
    %59 = vector.extract_strided_slice %0 {offsets = [1, 1, 0], sizes = [1, 1, 128], strides = [1, 1, 1]} : vector<3x3x128xf32> to vector<1x1x128xf32>
    %60 = vector.shape_cast %59 : vector<1x1x128xf32> to vector<128xf32>
    %61 = vector.shape_cast %60 : vector<128xf32> to vector<1x1x128xf32>
    %62 = vector.broadcast %61 : vector<1x1x128xf32> to vector<16x16x128xf32>
    %63 = arith.mulf %58, %62 : vector<16x16x128xf32>
    %64 = arith.addf %57, %63 : vector<16x16x128xf32>
    %c0_40 = arith.constant 0 : index
    %c0_41 = arith.constant 0 : index
    %c0_42 = arith.constant 0 : index
    %65 = vector.load %arg8[%c0_40, %c0_41, %c0_42] : memref<16x16x128xf32, #tpu.memory_space<vmem>>, vector<16x16x128xf32>
    tpu.vector_store %arg8[%c0_40, %c0_41, %c0_42], %64 {strides = array<i32>} : memref<16x16x128xf32, #tpu.memory_space<vmem>>, vector<16x16x128xf32>,
    %c0_43 = arith.constant 0 : index
    %c0_44 = arith.constant 0 : index
    %c0_45 = arith.constant 0 : index
    %66 = vector.load %arg8[%c0_43, %c0_44, %c0_45] : memref<16x16x128xf32, #tpu.memory_space<vmem>>, vector<15x16x128xf32>
    %67 = vector.extract_strided_slice %12 {offsets = [1, 0, 0], sizes = [15, 16, 128], strides = [1, 1, 1]} : vector<16x16x128xbf16> to vector<15x16x128xbf16>
    %68 = arith.extf %67 : vector<15x16x128xbf16> to vector<15x16x128xf32>
    %69 = vector.extract_strided_slice %0 {offsets = [2, 1, 0], sizes = [1, 1, 128], strides = [1, 1, 1]} : vector<3x3x128xf32> to vector<1x1x128xf32>
    %70 = vector.shape_cast %69 : vector<1x1x128xf32> to vector<128xf32>
    %71 = vector.shape_cast %70 : vector<128xf32> to vector<1x1x128xf32>
    %72 = vector.broadcast %71 : vector<1x1x128xf32> to vector<15x16x128xf32>
    %73 = arith.mulf %68, %72 : vector<15x16x128xf32>
    %74 = arith.addf %66, %73 : vector<15x16x128xf32>
    %c0_46 = arith.constant 0 : index
    %c0_47 = arith.constant 0 : index
    %c0_48 = arith.constant 0 : index
    %75 = vector.load %arg8[%c0_46, %c0_47, %c0_48] : memref<16x16x128xf32, #tpu.memory_space<vmem>>, vector<15x16x128xf32>
    tpu.vector_store %arg8[%c0_46, %c0_47, %c0_48], %74 {strides = array<i32>} : memref<16x16x128xf32, #tpu.memory_space<vmem>>, vector<15x16x128xf32>,
    %cst_49 = arith.constant 0.000000e+00 : bf16
    %76 = vector.broadcast %cst_49 : bf16 to vector<16x1x128xbf16>
    %77 = vector.extract_strided_slice %12 {offsets = [0, 1, 0], sizes = [16, 15, 128], strides = [1, 1, 1]} : vector<16x16x128xbf16> to vector<16x15x128xbf16>
    %78 = tpu.concatenate %77, %76 in 1 : vector<16x15x128xbf16>, vector<16x1x128xbf16> -> vector<16x16x128xbf16>
    %c1_50 = arith.constant 1 : index
    %c0_51 = arith.constant 0 : index
    %c0_52 = arith.constant 0 : index
    %79 = vector.load %arg8[%c1_50, %c0_51, %c0_52] : memref<16x16x128xf32, #tpu.memory_space<vmem>>, vector<15x16x128xf32>
    %80 = vector.extract_strided_slice %78 {offsets = [0, 0, 0], sizes = [15, 16, 128], strides = [1, 1, 1]} : vector<16x16x128xbf16> to vector<15x16x128xbf16>
    %81 = arith.extf %80 : vector<15x16x128xbf16> to vector<15x16x128xf32>
    %82 = vector.extract_strided_slice %0 {offsets = [0, 2, 0], sizes = [1, 1, 128], strides = [1, 1, 1]} : vector<3x3x128xf32> to vector<1x1x128xf32>
    %83 = vector.shape_cast %82 : vector<1x1x128xf32> to vector<128xf32>
    %84 = vector.shape_cast %83 : vector<128xf32> to vector<1x1x128xf32>
    %85 = vector.broadcast %84 : vector<1x1x128xf32> to vector<15x16x128xf32>
    %86 = arith.mulf %81, %85 : vector<15x16x128xf32>
    %87 = arith.addf %79, %86 : vector<15x16x128xf32>
    %c1_53 = arith.constant 1 : index
    %c0_54 = arith.constant 0 : index
    %c0_55 = arith.constant 0 : index
    %88 = vector.load %arg8[%c1_53, %c0_54, %c0_55] : memref<16x16x128xf32, #tpu.memory_space<vmem>>, vector<15x16x128xf32>
    tpu.vector_store %arg8[%c1_53, %c0_54, %c0_55], %87 {strides = array<i32>} : memref<16x16x128xf32, #tpu.memory_space<vmem>>, vector<15x16x128xf32>,
    %c0_56 = arith.constant 0 : index
    %c0_57 = arith.constant 0 : index
    %c0_58 = arith.constant 0 : index
    %89 = vector.load %arg8[%c0_56, %c0_57, %c0_58] : memref<16x16x128xf32, #tpu.memory_space<vmem>>, vector<16x16x128xf32>
    %90 = arith.extf %78 : vector<16x16x128xbf16> to vector<16x16x128xf32>
    %91 = vector.extract_strided_slice %0 {offsets = [1, 2, 0], sizes = [1, 1, 128], strides = [1, 1, 1]} : vector<3x3x128xf32> to vector<1x1x128xf32>
    %92 = vector.shape_cast %91 : vector<1x1x128xf32> to vector<128xf32>
    %93 = vector.shape_cast %92 : vector<128xf32> to vector<1x1x128xf32>
    %94 = vector.broadcast %93 : vector<1x1x128xf32> to vector<16x16x128xf32>
    %95 = arith.mulf %90, %94 : vector<16x16x128xf32>
    %96 = arith.addf %89, %95 : vector<16x16x128xf32>
    %c0_59 = arith.constant 0 : index
    %c0_60 = arith.constant 0 : index
    %c0_61 = arith.constant 0 : index
    %97 = vector.load %arg8[%c0_59, %c0_60, %c0_61] : memref<16x16x128xf32, #tpu.memory_space<vmem>>, vector<16x16x128xf32>
    tpu.vector_store %arg8[%c0_59, %c0_60, %c0_61], %96 {strides = array<i32>} : memref<16x16x128xf32, #tpu.memory_space<vmem>>, vector<16x16x128xf32>,
    %c0_62 = arith.constant 0 : index
    %c0_63 = arith.constant 0 : index
    %c0_64 = arith.constant 0 : index
    %98 = vector.load %arg8[%c0_62, %c0_63, %c0_64] : memref<16x16x128xf32, #tpu.memory_space<vmem>>, vector<15x16x128xf32>
    %99 = vector.extract_strided_slice %78 {offsets = [1, 0, 0], sizes = [15, 16, 128], strides = [1, 1, 1]} : vector<16x16x128xbf16> to vector<15x16x128xbf16>
    %100 = arith.extf %99 : vector<15x16x128xbf16> to vector<15x16x128xf32>
    %101 = vector.extract_strided_slice %0 {offsets = [2, 2, 0], sizes = [1, 1, 128], strides = [1, 1, 1]} : vector<3x3x128xf32> to vector<1x1x128xf32>
    %102 = vector.shape_cast %101 : vector<1x1x128xf32> to vector<128xf32>
    %103 = vector.shape_cast %102 : vector<128xf32> to vector<1x1x128xf32>
    %104 = vector.broadcast %103 : vector<1x1x128xf32> to vector<15x16x128xf32>
    %105 = arith.mulf %100, %104 : vector<15x16x128xf32>
    %106 = arith.addf %98, %105 : vector<15x16x128xf32>
    %c0_65 = arith.constant 0 : index
    %c0_66 = arith.constant 0 : index
    %c0_67 = arith.constant 0 : index
    %107 = vector.load %arg8[%c0_65, %c0_66, %c0_67] : memref<16x16x128xf32, #tpu.memory_space<vmem>>, vector<15x16x128xf32>
    tpu.vector_store %arg8[%c0_65, %c0_66, %c0_67], %106 {strides = array<i32>} : memref<16x16x128xf32, #tpu.memory_space<vmem>>, vector<15x16x128xf32>,
    %c0_68 = arith.constant 0 : index
    %c0_69 = arith.constant 0 : index
    %c0_70 = arith.constant 0 : index
    %108 = vector.load %arg8[%c0_68, %c0_69, %c0_70] : memref<16x16x128xf32, #tpu.memory_space<vmem>>, vector<16x16x128xf32>
    %c0_71 = arith.constant 0 : index
    %c0_72 = arith.constant 0 : index
    %109 = vector.load %arg5[%c0_71, %c0_72] : memref<1x128xf32, #tpu.memory_space<vmem>>, vector<1x128xf32>
    %110 = vector.shape_cast %109 : vector<1x128xf32> to vector<1x1x128xf32>
    %111 = vector.broadcast %110 : vector<1x1x128xf32> to vector<16x16x128xf32>
    %112 = arith.addf %108, %111 : vector<16x16x128xf32>
    %cst_73 = arith.constant 5.000000e-01 : f32
    %113 = vector.broadcast %cst_73 : f32 to vector<16x16x128xf32>
    %114 = arith.mulf %113, %112 : vector<16x16x128xf32>
    %cst_74 = arith.constant 0.707106769 : f32
    %115 = vector.broadcast %cst_74 : f32 to vector<16x16x128xf32>
    %116 = arith.mulf %112, %115 : vector<16x16x128xf32>
    %117 = math.erf %116 : vector<16x16x128xf32>
    %cst_75 = arith.constant 1.000000e+00 : f32
    %118 = vector.broadcast %cst_75 : f32 to vector<16x16x128xf32>
    %119 = arith.addf %118, %117 : vector<16x16x128xf32>
    %120 = arith.mulf %114, %119 : vector<16x16x128xf32>
    %121 = arith.truncf %120 : vector<16x16x128xf32> to vector<16x16x128xbf16>
    %c0_76 = arith.constant 0 : index
    %c0_77 = arith.constant 0 : index
    %c0_78 = arith.constant 0 : index
    %c0_79 = arith.constant 0 : index
    %122 = vector.load %arg6[%c0_76, %c0_77, %c0_78, %c0_79] : memref<1x16x16x128xbf16, #tpu.memory_space<vmem>>, vector<1x16x16x128xbf16>
    %123 = vector.shape_cast %122 : vector<1x16x16x128xbf16> to vector<16x16x128xbf16>
    %124 = vector.shape_cast %121 : vector<16x16x128xbf16> to vector<1x16x16x128xbf16>
    tpu.vector_store %arg6[%c0_76, %c0_77, %c0_78, %c0_79], %124 {strides = array<i32>} : memref<1x16x16x128xbf16, #tpu.memory_space<vmem>>, vector<1x16x16x128xbf16>,
    %125 = vector.shape_cast %121 : vector<16x16x128xbf16> to vector<256x128xbf16>
    %126 = arith.extf %125 : vector<256x128xbf16> to vector<256x128xf32>
    %cst_80 = arith.constant dense<0.000000e+00> : vector<128xf32>
    %127 = vector.multi_reduction <add>, %126, %cst_80 [0] : vector<256x128xf32> to vector<128xf32>
    %128 = vector.shape_cast %127 : vector<128xf32> to vector<1x128xf32>
    %129 = arith.mulf %126, %126 : vector<256x128xf32>
    %cst_81 = arith.constant dense<0.000000e+00> : vector<128xf32>
    %130 = vector.multi_reduction <add>, %129, %cst_81 [0] : vector<256x128xf32> to vector<128xf32>
    %131 = vector.shape_cast %130 : vector<128xf32> to vector<1x128xf32>
    %132 = tpu.concatenate %128, %131 in 0 : vector<1x128xf32>, vector<1x128xf32> -> vector<2x128xf32>
    %c0_82 = arith.constant 0 : index
    %c0_83 = arith.constant 0 : index
    %c0_84 = arith.constant 0 : index
    %133 = vector.load %arg7[%c0_82, %c0_83, %c0_84] : memref<1x2x128xf32, #tpu.memory_space<vmem>>, vector<1x2x128xf32>
    %134 = vector.shape_cast %133 : vector<1x2x128xf32> to vector<2x128xf32>
    %135 = vector.shape_cast %132 : vector<2x128xf32> to vector<1x2x128xf32>
    tpu.vector_store %arg7[%c0_82, %c0_83, %c0_84], %135 {strides = array<i32>} : memref<1x2x128xf32, #tpu.memory_space<vmem>>, vector<1x2x128xf32>,
    return
  }
  func.func @transform_0(%arg0: i32) -> (i32, i32, i32, i32) {
    %c0_i32 = arith.constant 0 : i32
    %c0_i32_0 = arith.constant 0 : i32
    %c0_i32_1 = arith.constant 0 : i32
    %c0_i32_2 = arith.constant 0 : i32
    return %arg0, %c0_i32, %c0_i32_0, %c0_i32_1 : i32, i32, i32, i32
  }
  func.func @transform_1(%arg0: i32) -> (i32, i32) {
    %c0_i32 = arith.constant 0 : i32
    %c0_i32_0 = arith.constant 0 : i32
    %c0_i32_1 = arith.constant 0 : i32
    return %c0_i32, %c0_i32_0 : i32, i32
  }
  func.func @transform_2(%arg0: i32) -> (i32, i32) {
    %c0_i32 = arith.constant 0 : i32
    %c0_i32_0 = arith.constant 0 : i32
    %c0_i32_1 = arith.constant 0 : i32
    return %c0_i32, %c0_i32_0 : i32, i32
  }
  func.func @transform_3(%arg0: i32) -> (i32, i32, i32) {
    %c0_i32 = arith.constant 0 : i32
    %c0_i32_0 = arith.constant 0 : i32
    %c0_i32_1 = arith.constant 0 : i32
    %c0_i32_2 = arith.constant 0 : i32
    return %c0_i32, %c0_i32_0, %c0_i32_1 : i32, i32, i32
  }
  func.func @transform_4(%arg0: i32) -> (i32, i32) {
    %c0_i32 = arith.constant 0 : i32
    %c0_i32_0 = arith.constant 0 : i32
    %c0_i32_1 = arith.constant 0 : i32
    return %c0_i32, %c0_i32_0 : i32, i32
  }
  func.func @transform_5(%arg0: i32) -> (i32, i32, i32, i32) {
    %c0_i32 = arith.constant 0 : i32
    %c0_i32_0 = arith.constant 0 : i32
    %c0_i32_1 = arith.constant 0 : i32
    %c0_i32_2 = arith.constant 0 : i32
    return %arg0, %c0_i32, %c0_i32_0, %c0_i32_1 : i32, i32, i32, i32
  }
  func.func @transform_6(%arg0: i32) -> (i32, i32, i32) {
    %c0_i32 = arith.constant 0 : i32
    %c0_i32_0 = arith.constant 0 : i32
    %c0_i32_1 = arith.constant 0 : i32
    return %arg0, %c0_i32, %c0_i32_0 : i32, i32, i32
  }
}

module attributes {stable_mosaic.version = 11 : i64} {
  func.func @pw_block_kernel(%arg0: i32, %arg1: memref<256x128xbf16, #tpu.memory_space<vmem>>, %arg2: memref<256x128xbf16, #tpu.memory_space<vmem>>, %arg3: memref<1x128xf32, #tpu.memory_space<vmem>>, %arg4: memref<1x128xf32, #tpu.memory_space<vmem>>, %arg5: memref<1x128xf32, #tpu.memory_space<vmem>>, %arg6: memref<1x128xf32, #tpu.memory_space<vmem>>, %arg7: memref<128x128xbf16, #tpu.memory_space<vmem>>, %arg8: memref<1x128xf32, #tpu.memory_space<vmem>>, %arg9: memref<256x128xbf16, #tpu.memory_space<vmem>>, %arg10: memref<1x2x128xf32, #tpu.memory_space<vmem>>) attributes {dimension_semantics = [#tpu.dimension_semantics<parallel>], iteration_bounds = array<i64: 2>, scalar_prefetch = 0 : i64, scratch_operands = 0 : i64, tpu.core_type = #tpu.core_type<tc>, window_params = [{transform_indices = @transform_0, window_bounds = array<i64: 256, 128>}, {transform_indices = @transform_1, window_bounds = array<i64: 256, 128>}, {pipeline_mode = #tpu.pipeline_mode<synchronous>, transform_indices = @transform_2, window_bounds = array<i64: 1, 128>}, {pipeline_mode = #tpu.pipeline_mode<synchronous>, transform_indices = @transform_3, window_bounds = array<i64: 1, 128>}, {pipeline_mode = #tpu.pipeline_mode<synchronous>, transform_indices = @transform_4, window_bounds = array<i64: 1, 128>}, {pipeline_mode = #tpu.pipeline_mode<synchronous>, transform_indices = @transform_5, window_bounds = array<i64: 1, 128>}, {pipeline_mode = #tpu.pipeline_mode<synchronous>, transform_indices = @transform_6, window_bounds = array<i64: 128, 128>}, {pipeline_mode = #tpu.pipeline_mode<synchronous>, transform_indices = @transform_7, window_bounds = array<i64: 1, 128>}, {transform_indices = @transform_8, window_bounds = array<i64: 256, 128>}, {transform_indices = @transform_9, window_bounds = array<i64: 1, 2, 128>}]} {
    %c0 = arith.constant 0 : index
    %c0_0 = arith.constant 0 : index
    %0 = vector.load %arg2[%c0, %c0_0] : memref<256x128xbf16, #tpu.memory_space<vmem>>, vector<256x128xbf16>
    %1 = arith.extf %0 : vector<256x128xbf16> to vector<256x128xf32>
    %c0_1 = arith.constant 0 : index
    %c0_2 = arith.constant 0 : index
    %2 = vector.load %arg3[%c0_1, %c0_2] : memref<1x128xf32, #tpu.memory_space<vmem>>, vector<1x128xf32>
    %3 = vector.broadcast %2 : vector<1x128xf32> to vector<256x128xf32>
    %4 = arith.mulf %1, %3 : vector<256x128xf32>
    %c0_3 = arith.constant 0 : index
    %c0_4 = arith.constant 0 : index
    %5 = vector.load %arg4[%c0_3, %c0_4] : memref<1x128xf32, #tpu.memory_space<vmem>>, vector<1x128xf32>
    %6 = vector.broadcast %5 : vector<1x128xf32> to vector<256x128xf32>
    %7 = arith.addf %4, %6 : vector<256x128xf32>
    %c0_5 = arith.constant 0 : index
    %c0_6 = arith.constant 0 : index
    %8 = vector.load %arg1[%c0_5, %c0_6] : memref<256x128xbf16, #tpu.memory_space<vmem>>, vector<256x128xbf16>
    %9 = arith.extf %8 : vector<256x128xbf16> to vector<256x128xf32>
    %c0_7 = arith.constant 0 : index
    %c0_8 = arith.constant 0 : index
    %10 = vector.load %arg5[%c0_7, %c0_8] : memref<1x128xf32, #tpu.memory_space<vmem>>, vector<1x128xf32>
    %11 = vector.broadcast %10 : vector<1x128xf32> to vector<256x128xf32>
    %12 = arith.mulf %9, %11 : vector<256x128xf32>
    %c0_9 = arith.constant 0 : index
    %c0_10 = arith.constant 0 : index
    %13 = vector.load %arg6[%c0_9, %c0_10] : memref<1x128xf32, #tpu.memory_space<vmem>>, vector<1x128xf32>
    %14 = vector.broadcast %13 : vector<1x128xf32> to vector<256x128xf32>
    %15 = arith.addf %12, %14 : vector<256x128xf32>
    %16 = arith.addf %15, %7 : vector<256x128xf32>
    %17 = arith.truncf %16 : vector<256x128xf32> to vector<256x128xbf16>
    %c0_11 = arith.constant 0 : index
    %c0_12 = arith.constant 0 : index
    %18 = vector.load %arg7[%c0_11, %c0_12] : memref<128x128xbf16, #tpu.memory_space<vmem>>, vector<128x128xbf16>
    %cst = arith.constant dense<0.000000e+00> : vector<256x128xf32>
    %19 = tpu.matmul %17, %18, %cst {dimension_numbers = #tpu.dot_dimension_numbers<[1], [0], [0], [1], [0, 0, 1, 1], [], []>} : vector<256x128xbf16>, vector<128x128xbf16>, vector<256x128xf32> -> vector<256x128xf32>
    %c0_13 = arith.constant 0 : index
    %c0_14 = arith.constant 0 : index
    %20 = vector.load %arg8[%c0_13, %c0_14] : memref<1x128xf32, #tpu.memory_space<vmem>>, vector<1x128xf32>
    %21 = vector.broadcast %20 : vector<1x128xf32> to vector<256x128xf32>
    %22 = arith.addf %19, %21 : vector<256x128xf32>
    %cst_15 = arith.constant 5.000000e-01 : f32
    %23 = vector.broadcast %cst_15 : f32 to vector<256x128xf32>
    %24 = arith.mulf %23, %22 : vector<256x128xf32>
    %cst_16 = arith.constant 0.707106769 : f32
    %25 = vector.broadcast %cst_16 : f32 to vector<256x128xf32>
    %26 = arith.mulf %22, %25 : vector<256x128xf32>
    %27 = math.erf %26 : vector<256x128xf32>
    %cst_17 = arith.constant 1.000000e+00 : f32
    %28 = vector.broadcast %cst_17 : f32 to vector<256x128xf32>
    %29 = arith.addf %28, %27 : vector<256x128xf32>
    %30 = arith.mulf %24, %29 : vector<256x128xf32>
    %31 = arith.truncf %30 : vector<256x128xf32> to vector<256x128xbf16>
    %c0_18 = arith.constant 0 : index
    %c0_19 = arith.constant 0 : index
    %32 = vector.load %arg9[%c0_18, %c0_19] : memref<256x128xbf16, #tpu.memory_space<vmem>>, vector<256x128xbf16>
    tpu.vector_store %arg9[%c0_18, %c0_19], %31 {strides = array<i32>} : memref<256x128xbf16, #tpu.memory_space<vmem>>, vector<256x128xbf16>,
    %33 = arith.extf %31 : vector<256x128xbf16> to vector<256x128xf32>
    %cst_20 = arith.constant dense<0.000000e+00> : vector<128xf32>
    %34 = vector.multi_reduction <add>, %33, %cst_20 [0] : vector<256x128xf32> to vector<128xf32>
    %35 = vector.shape_cast %34 : vector<128xf32> to vector<1x128xf32>
    %36 = arith.mulf %33, %33 : vector<256x128xf32>
    %cst_21 = arith.constant dense<0.000000e+00> : vector<128xf32>
    %37 = vector.multi_reduction <add>, %36, %cst_21 [0] : vector<256x128xf32> to vector<128xf32>
    %38 = vector.shape_cast %37 : vector<128xf32> to vector<1x128xf32>
    %39 = tpu.concatenate %35, %38 in 0 : vector<1x128xf32>, vector<1x128xf32> -> vector<2x128xf32>
    %c0_22 = arith.constant 0 : index
    %c0_23 = arith.constant 0 : index
    %c0_24 = arith.constant 0 : index
    %40 = vector.load %arg10[%c0_22, %c0_23, %c0_24] : memref<1x2x128xf32, #tpu.memory_space<vmem>>, vector<1x2x128xf32>
    %41 = vector.shape_cast %40 : vector<1x2x128xf32> to vector<2x128xf32>
    %42 = vector.shape_cast %39 : vector<2x128xf32> to vector<1x2x128xf32>
    tpu.vector_store %arg10[%c0_22, %c0_23, %c0_24], %42 {strides = array<i32>} : memref<1x2x128xf32, #tpu.memory_space<vmem>>, vector<1x2x128xf32>,
    return
  }
  func.func @transform_0(%arg0: i32) -> (i32, i32) {
    %c0_i32 = arith.constant 0 : i32
    %c0_i32_0 = arith.constant 0 : i32
    return %arg0, %c0_i32 : i32, i32
  }
  func.func @transform_1(%arg0: i32) -> (i32, i32) {
    %c0_i32 = arith.constant 0 : i32
    %c0_i32_0 = arith.constant 0 : i32
    return %arg0, %c0_i32 : i32, i32
  }
  func.func @transform_2(%arg0: i32) -> (i32, i32) {
    %c0_i32 = arith.constant 0 : i32
    %c0_i32_0 = arith.constant 0 : i32
    %c0_i32_1 = arith.constant 0 : i32
    return %c0_i32, %c0_i32_0 : i32, i32
  }
  func.func @transform_3(%arg0: i32) -> (i32, i32) {
    %c0_i32 = arith.constant 0 : i32
    %c0_i32_0 = arith.constant 0 : i32
    %c0_i32_1 = arith.constant 0 : i32
    return %c0_i32, %c0_i32_0 : i32, i32
  }
  func.func @transform_4(%arg0: i32) -> (i32, i32) {
    %c0_i32 = arith.constant 0 : i32
    %c0_i32_0 = arith.constant 0 : i32
    %c0_i32_1 = arith.constant 0 : i32
    return %c0_i32, %c0_i32_0 : i32, i32
  }
  func.func @transform_5(%arg0: i32) -> (i32, i32) {
    %c0_i32 = arith.constant 0 : i32
    %c0_i32_0 = arith.constant 0 : i32
    %c0_i32_1 = arith.constant 0 : i32
    return %c0_i32, %c0_i32_0 : i32, i32
  }
  func.func @transform_6(%arg0: i32) -> (i32, i32) {
    %c0_i32 = arith.constant 0 : i32
    %c0_i32_0 = arith.constant 0 : i32
    %c0_i32_1 = arith.constant 0 : i32
    return %c0_i32, %c0_i32_0 : i32, i32
  }
  func.func @transform_7(%arg0: i32) -> (i32, i32) {
    %c0_i32 = arith.constant 0 : i32
    %c0_i32_0 = arith.constant 0 : i32
    %c0_i32_1 = arith.constant 0 : i32
    return %c0_i32, %c0_i32_0 : i32, i32
  }
  func.func @transform_8(%arg0: i32) -> (i32, i32) {
    %c0_i32 = arith.constant 0 : i32
    %c0_i32_0 = arith.constant 0 : i32
    return %arg0, %c0_i32 : i32, i32
  }
  func.func @transform_9(%arg0: i32) -> (i32, i32, i32) {
    %c0_i32 = arith.constant 0 : i32
    %c0_i32_0 = arith.constant 0 : i32
    %c0_i32_1 = arith.constant 0 : i32
    return %arg0, %c0_i32, %c0_i32_0 : i32, i32, i32
  }
}

module attributes {stable_mosaic.version = 11 : i64} {
  func.func @bn_apply_kernel(%arg0: i32, %arg1: memref<256x128xbf16, #tpu.memory_space<vmem>>, %arg2: memref<1x128xf32, #tpu.memory_space<vmem>>, %arg3: memref<1x128xf32, #tpu.memory_space<vmem>>, %arg4: memref<256x128xf32, #tpu.memory_space<vmem>>) attributes {dimension_semantics = [#tpu.dimension_semantics<parallel>], iteration_bounds = array<i64: 2>, scalar_prefetch = 0 : i64, scratch_operands = 0 : i64, tpu.core_type = #tpu.core_type<tc>, window_params = [{transform_indices = @transform_0, window_bounds = array<i64: 256, 128>}, {pipeline_mode = #tpu.pipeline_mode<synchronous>, transform_indices = @transform_1, window_bounds = array<i64: 1, 128>}, {pipeline_mode = #tpu.pipeline_mode<synchronous>, transform_indices = @transform_2, window_bounds = array<i64: 1, 128>}, {transform_indices = @transform_3, window_bounds = array<i64: 256, 128>}]} {
    %c0 = arith.constant 0 : index
    %c0_0 = arith.constant 0 : index
    %0 = vector.load %arg1[%c0, %c0_0] : memref<256x128xbf16, #tpu.memory_space<vmem>>, vector<256x128xbf16>
    %1 = arith.extf %0 : vector<256x128xbf16> to vector<256x128xf32>
    %c0_1 = arith.constant 0 : index
    %c0_2 = arith.constant 0 : index
    %2 = vector.load %arg2[%c0_1, %c0_2] : memref<1x128xf32, #tpu.memory_space<vmem>>, vector<1x128xf32>
    %3 = vector.broadcast %2 : vector<1x128xf32> to vector<256x128xf32>
    %4 = arith.mulf %1, %3 : vector<256x128xf32>
    %c0_3 = arith.constant 0 : index
    %c0_4 = arith.constant 0 : index
    %5 = vector.load %arg3[%c0_3, %c0_4] : memref<1x128xf32, #tpu.memory_space<vmem>>, vector<1x128xf32>
    %6 = vector.broadcast %5 : vector<1x128xf32> to vector<256x128xf32>
    %7 = arith.addf %4, %6 : vector<256x128xf32>
    %c0_5 = arith.constant 0 : index
    %c0_6 = arith.constant 0 : index
    %8 = vector.load %arg4[%c0_5, %c0_6] : memref<256x128xf32, #tpu.memory_space<vmem>>, vector<256x128xf32>
    tpu.vector_store %arg4[%c0_5, %c0_6], %7 {strides = array<i32>} : memref<256x128xf32, #tpu.memory_space<vmem>>, vector<256x128xf32>,
    return
  }
  func.func @transform_0(%arg0: i32) -> (i32, i32) {
    %c0_i32 = arith.constant 0 : i32
    %c0_i32_0 = arith.constant 0 : i32
    return %arg0, %c0_i32 : i32, i32
  }
  func.func @transform_1(%arg0: i32) -> (i32, i32) {
    %c0_i32 = arith.constant 0 : i32
    %c0_i32_0 = arith.constant 0 : i32
    %c0_i32_1 = arith.constant 0 : i32
    return %c0_i32, %c0_i32_0 : i32, i32
  }
  func.func @transform_2(%arg0: i32) -> (i32, i32) {
    %c0_i32 = arith.constant 0 : i32
    %c0_i32_0 = arith.constant 0 : i32
    %c0_i32_1 = arith.constant 0 : i32
    return %c0_i32, %c0_i32_0 : i32, i32
  }
  func.func @transform_3(%arg0: i32) -> (i32, i32) {
    %c0_i32 = arith.constant 0 : i32
    %c0_i32_0 = arith.constant 0 : i32
    return %arg0, %c0_i32 : i32, i32
  }
}

</mosaic_0001>

<llo_original>
// kernel: conv_mixer_forward.6
$region0: #{conv_mixer_forward.6}
  #allocation0 [shape = 'u32[]', space=smem, size = 0x4, offset = 0x4, fixed_abs, tag = 'smem constant byte address 0x4 - core index']
  #allocation1 [shape = 'u32[144,128]{1,0:T(1,128)}', space=vmem, size = 0x12000, scoped, tag = 'internal scratch']
  %s0 = inlined_call_operand.vmem [shape: bf16[512,48], index: 0, kind: input, shape index: {}]
  %s1 = inlined_call_operand.vmem [shape: bf16[48,128], index: 1, kind: input, shape index: {}]
  %s2 = inlined_call_operand.vmem [shape: f32[1,128], index: 2, kind: input, shape index: {}]
  %s3 = inlined_call_operand.vmem [shape: bf16[512,128], index: 3, kind: output, shape index: {0}]
  %s4 = inlined_call_operand.vmem [shape: f32[2,2,128], index: 4, kind: output, shape index: {1}]
  %5 = xla_tuple %s3, %s4
  %s6 = sld [smem:[#allocation0]]
  $region53: #{conv_mixer_forward.6} parent=0
    _
  %s8 = ssub.s32 1, %s6
  %s9 = scalar_select 0, %s8, %s6
  loop: start=0, step=1, limit=4
  $region2: #{conv_mixer_forward.6} parent=0 // loop_pre_header
    _
  $region3: #{conv_mixer_forward.6} parent=0 // loop_header
    %s11 = sphi 0, %s15
    %p12 = scmp.ge.s32.totalorder %s11, 4
    %s21 = sphi 0, %s23
    %s24 = sphi 0, %s21
    %s25 = sphi 0, %s24
    %s41 = sphi 0, %s25
    %s45 = sphi 0, %s45
    %s47 = sphi 0, %s45
    %s48 = sphi 0, %s47
    %s62 = sphi 0, %s48
    %s66 = sphi 0, %s66
    %s68 = sphi 0, %s66
    %s69 = sphi 0, %s68
    %s83 = sphi 0, %s69
    %s89 = sphi 0, %s91
    %s92 = sphi 0, %s89
    %s93 = sphi 0, %s92
    %s109 = sphi 0, %s93
    %s115 = sphi 0, %s117
    %s118 = sphi 0, %s115
    %s119 = sphi 0, %s118
    %s135 = sphi 0, %s119
  $region4: #{conv_mixer_forward.6} parent=0 // loop_header_branch
    %14 = sbr.rel (%p12) target = $region8
  $region5: #{conv_mixer_forward.6} parent=0 // loop_body
    %s16 = ssub.s32 %s11, 1
    %s17 = ssub.s32 %s11, 2
    %s18 = sadd.s32 %s11, 1
    %s19 = ssub.s32 %s11, %s18
    %p20 = scmp.eq.s32.totalorder %s19, 0
    %s22 = sadd.s32 %s21, 1
    %s23 = scalar_select %p20, %s21, %s22
    %p26 = pneg %p20
    %p27 = scmp.eq.s32.totalorder %s11, 1
    %p28 = por %p26, %p27
    %p29 = scmp.ne.s32.totalorder %s21, %s24
    %p30 = scmp.eq.s32.totalorder %s11, 0
    %p31 = por %p29, %p30
    %p32 = scmp.ne.s32.totalorder %s21, %s24
    %p33 = scmp.eq.s32.totalorder %s16, 1
    %p34 = por %p32, %p33
    %p35 = scmp.ne.s32.totalorder %s24, %s25
    %p36 = scmp.eq.s32.totalorder %s16, 0
    %p37 = por %p35, %p36
    %p38 = scmp.ne.s32.totalorder %s24, %s25
    %p39 = scmp.eq.s32.totalorder %s17, 1
    %p40 = por %p38, %p39
    %p42 = scmp.ne.s32.totalorder %s25, %s41
    %p43 = scmp.eq.s32.totalorder %s17, 0
    %p44 = por %p42, %p43
    %s46 = sadd.s32 %s45, 1
    %p49 = scmp.eq.s32.totalorder %s11, 1
    %p50 = scmp.ne.s32.totalorder %s45, %s47
    %p51 = scmp.eq.s32.totalorder %s11, 0
    %p52 = por %p50, %p51
    %p53 = scmp.ne.s32.totalorder %s45, %s47
    %p54 = scmp.eq.s32.totalorder %s16, 1
    %p55 = por %p53, %p54
    %p56 = scmp.ne.s32.totalorder %s47, %s48
    %p57 = scmp.eq.s32.totalorder %s16, 0
    %p58 = por %p56, %p57
    %p59 = scmp.ne.s32.totalorder %s47, %s48
    %p60 = scmp.eq.s32.totalorder %s17, 1
    %p61 = por %p59, %p60
    %p63 = scmp.ne.s32.totalorder %s48, %s62
    %p64 = scmp.eq.s32.totalorder %s17, 0
    %p65 = por %p63, %p64
    %s67 = sadd.s32 %s66, 1
    %p70 = scmp.eq.s32.totalorder %s11, 1
    %p71 = scmp.ne.s32.totalorder %s66, %s68
    %p72 = scmp.eq.s32.totalorder %s11, 0
    %p73 = por %p71, %p72
    %p74 = scmp.ne.s32.totalorder %s66, %s68
    %p75 = scmp.eq.s32.totalorder %s16, 1
    %p76 = por %p74, %p75
    %p77 = scmp.ne.s32.totalorder %s68, %s69
    %p78 = scmp.eq.s32.totalorder %s16, 0
    %p79 = por %p77, %p78
    %p80 = scmp.ne.s32.totalorder %s68, %s69
    %p81 = scmp.eq.s32.totalorder %s17, 1
    %p82 = por %p80, %p81
    %p84 = scmp.ne.s32.totalorder %s69, %s83
    %p85 = scmp.eq.s32.totalorder %s17, 0
    %p86 = por %p84, %p85
    %s87 = ssub.s32 %s11, %s18
    %p88 = scmp.eq.s32.totalorder %s87, 0
    %s90 = sadd.s32 %s89, 1
    %s91 = scalar_select %p88, %s89, %s90
    %p94 = pneg %p88
    %p95 = scmp.eq.s32.totalorder %s11, 1
    %p96 = por %p94, %p95
    %p97 = scmp.ne.s32.totalorder %s89, %s92
    %p98 = scmp.eq.s32.totalorder %s11, 0
    %p99 = por %p97, %p98
    %p100 = scmp.ne.s32.totalorder %s89, %s92
    %p101 = scmp.eq.s32.totalorder %s16, 1
    %p102 = por %p100, %p101
    %p103 = scmp.ne.s32.totalorder %s92, %s93
    %p104 = scmp.eq.s32.totalorder %s16, 0
    %p105 = por %p103, %p104
    %p106 = scmp.ne.s32.totalorder %s92, %s93
    %p107 = scmp.eq.s32.totalorder %s17, 1
    %p108 = por %p106, %p107
    %p110 = scmp.ne.s32.totalorder %s93, %s109
    %p111 = scmp.eq.s32.totalorder %s17, 0
    %p112 = por %p110, %p111
    %s113 = ssub.s32 %s11, %s18
    %p114 = scmp.eq.s32.totalorder %s113, 0
    %s116 = sadd.s32 %s115, 1
    %s117 = scalar_select %p114, %s115, %s116
    %p120 = pneg %p114
    %p121 = scmp.eq.s32.totalorder %s11, 1
    %p122 = por %p120, %p121
    %p123 = scmp.ne.s32.totalorder %s115, %s118
    %p124 = scmp.eq.s32.totalorder %s11, 0
    %p125 = por %p123, %p124
    %p126 = scmp.ne.s32.totalorder %s115, %s118
    %p127 = scmp.eq.s32.totalorder %s16, 1
    %p128 = por %p126, %p127
    %p129 = scmp.ne.s32.totalorder %s118, %s119
    %p130 = scmp.eq.s32.totalorder %s16, 0
    %p131 = por %p129, %p130
    %p132 = scmp.ne.s32.totalorder %s118, %s119
    %p133 = scmp.eq.s32.totalorder %s17, 1
    %p134 = por %p132, %p133
    %p136 = scmp.ne.s32.totalorder %s119, %s135
    %p137 = scmp.eq.s32.totalorder %s17, 0
    %p138 = por %p136, %p137
    %p139 = scmp.le.s32.totalorder 1, %s11
    %p140 = scmp.lt.s32.totalorder %s11, 3
    %p141 = pnand %p139, %p140
    %p142 = pneg %p141
    // Predicated region
    $region9: #{conv_mixer_forward.6} parent=5 // pred_check
      _
    $region10: #{conv_mixer_forward.6} parent=5 // pred_check_branch
      %144 = sbr.rel (%p141) target = $region12
    $region11: #{conv_mixer_forward.6} parent=5 // pred_region
      %s145 = ssub.s32 %s11, 1
      // Predicated region
      $region13: #{conv_mixer_forward.6} parent=11 // pred_check
        %p146 = pneg %p58
      $region14: #{conv_mixer_forward.6} parent=11 // pred_check_branch
        %148 = sbr.rel (%p146) target = $region16
      $region15: #{conv_mixer_forward.6} parent=11 // pred_region
        _
      $region16: #{conv_mixer_forward.6} parent=11 // pred_fallthru
        _
      // Predicated region
      $region17: #{conv_mixer_forward.6} parent=11 // pred_check
        %p149 = pneg %p79
      $region18: #{conv_mixer_forward.6} parent=11 // pred_check_branch
        %151 = sbr.rel (%p149) target = $region20
      $region19: #{conv_mixer_forward.6} parent=11 // pred_region
        _
      $region20: #{conv_mixer_forward.6} parent=11 // pred_fallthru
        _
    $region12: #{conv_mixer_forward.6} parent=5 // pred_fallthru
      _
    %p152 = scmp.lt.s32.totalorder %s11, 2
    // Predicated region
    $region21: #{conv_mixer_forward.6} parent=5 // pred_check
      %p153 = pneg %p152
    $region22: #{conv_mixer_forward.6} parent=5 // pred_check_branch
      %155 = sbr.rel (%p153) target = $region24
    $region23: #{conv_mixer_forward.6} parent=5 // pred_region
      // Predicated region
      $region25: #{conv_mixer_forward.6} parent=23 // pred_check
        %p156 = pneg %p31
      $region26: #{conv_mixer_forward.6} parent=23 // pred_check_branch
        %158 = sbr.rel (%p156) target = $region28
      $region27: #{conv_mixer_forward.6} parent=23 // pred_region
        %s159 = smul.u32 32, %s11
        %p160 = scmp.lt.s32.totalorder %s159, 63
        %s161 = scalar_select %p160, %s159, 63
        %s162 = smul.addr %s161, 4
        %s163 = scalar_lea.vmem %s0, %s162
        %s164 = smul.u32 32, %s11
      $region28: #{conv_mixer_forward.6} parent=23 // pred_fallthru
        _
    $region24: #{conv_mixer_forward.6} parent=5 // pred_fallthru
      _
    %p165 = scmp.le.s32.totalorder 1, %s11
    %p166 = scmp.lt.s32.totalorder %s11, 3
    %p167 = pnand %p165, %p166
    %p168 = pneg %p167
    // Predicated region
    $region29: #{conv_mixer_forward.6} parent=5 // pred_check
      _
    $region30: #{conv_mixer_forward.6} parent=5 // pred_check_branch
      %170 = sbr.rel (%p167) target = $region32
    $region31: #{conv_mixer_forward.6} parent=5 // pred_region
      %s171 = ssub.s32 %s11, 1
      %s172 = smul.u32 32, %s16
      %p173 = scmp.lt.s32.totalorder %s172, 63
      %s174 = scalar_select %p173, %s172, 63
      %s175 = smul.addr %s174, 4
      %s176 = scalar_lea.vmem %s0, %s175
      %p177 = pneg %p37
      %p178 = pneg %p34
      %p179 = pneg %p58
      %p180 = pneg %p55
      %p181 = pneg %p79
      %p182 = pneg %p76
      %p183 = pneg %p105
      %p184 = pneg %p102
      %s185 = smul.u32 32, %s16
      %p186 = scmp.lt.s32.totalorder %s185, 63
      %s187 = scalar_select %p186, %s185, 63
      %s188 = smul.addr %s187, 4
      %s189 = scalar_lea.vmem %s3, %s188
      %p190 = pneg %p131
      %p191 = pneg %p128
      %p192 = scmp.lt.s32.totalorder %s16, 1
      %s193 = scalar_select %p192, %s16, 1
      %s194 = smul.addr %s193, 2
      %s195 = scalar_lea.vmem %s4, %s194
      %s196 = smul.u32 32, %s16
      %p197 = scmp.lt.s32.totalorder %s196, 63
      %s198 = scalar_select %p197, %s196, 63
      %s199 = smul.addr %s198, 4
      %s200 = scalar_lea.vmem %s0, %s199
      %s201 = smul.u32 32, %s16
      %s202 = smul.u32 32, %s16
      %p203 = scmp.lt.s32.totalorder %s202, 63
      %s204 = scalar_select %p203, %s202, 63
      %s205 = smul.addr %s204, 4
      %s206 = scalar_lea.vmem %s3, %s205
      %s207 = smul.u32 32, %s16
      %p208 = scmp.lt.s32.totalorder %s16, 1
      %s209 = scalar_select %p208, %s16, 1
      %s210 = smul.addr %s209, 2
      %s211 = scalar_lea.vmem %s4, %s210
      %v213 = vld [vmem:[%s200] sm:$0xf]
      %v214 = vld [vmem:[%s200 + $0x4] sm:$0xf]
      %v215 = vld [vmem:[%s200 + $0x8] sm:$0xf]
      %v216 = vld [vmem:[%s200 + $0xc] sm:$0xf]
      %v217 = vld [vmem:[%s200 + $0x10] sm:$0xf]
      %v218 = vld [vmem:[%s200 + $0x14] sm:$0xf]
      %v219 = vld [vmem:[%s200 + $0x18] sm:$0xf]
      %v220 = vld [vmem:[%s200 + $0x1c] sm:$0xf]
      %v221 = vld [vmem:[%s200 + $0x20] sm:$0xf]
      %v222 = vld [vmem:[%s200 + $0x24] sm:$0xf]
      %v223 = vld [vmem:[%s200 + $0x28] sm:$0xf]
      %v224 = vld [vmem:[%s200 + $0x2c] sm:$0xf]
      %v225 = vld [vmem:[%s200 + $0x30] sm:$0xf]
      %v226 = vld [vmem:[%s200 + $0x34] sm:$0xf]
      %v227 = vld [vmem:[%s200 + $0x38] sm:$0xf]
      %v228 = vld [vmem:[%s200 + $0x3c] sm:$0xf]
      %v229 = vld [vmem:[%s200 + $0x40] sm:$0xf]
      %v230 = vld [vmem:[%s200 + $0x44] sm:$0xf]
      %v231 = vld [vmem:[%s200 + $0x48] sm:$0xf]
      %v232 = vld [vmem:[%s200 + $0x4c] sm:$0xf]
      %v233 = vld [vmem:[%s200 + $0x50] sm:$0xf]
      %v234 = vld [vmem:[%s200 + $0x54] sm:$0xf]
      %v235 = vld [vmem:[%s200 + $0x58] sm:$0xf]
      %v236 = vld [vmem:[%s200 + $0x5c] sm:$0xf]
      %v237 = vld [vmem:[%s200 + $0x60] sm:$0xf]
      %v238 = vld [vmem:[%s200 + $0x64] sm:$0xf]
      %v239 = vld [vmem:[%s200 + $0x68] sm:$0xf]
      %v240 = vld [vmem:[%s200 + $0x6c] sm:$0xf]
      %v241 = vld [vmem:[%s200 + $0x70] sm:$0xf]
      %v242 = vld [vmem:[%s200 + $0x74] sm:$0xf]
      %v243 = vld [vmem:[%s200 + $0x78] sm:$0xf]
      %v244 = vld [vmem:[%s200 + $0x7c] sm:$0xf]
      %v245 = vld [vmem:[%s1] sm:$0xf]
      %v246 = vld [vmem:[%s1 + $0x4] sm:$0xf]
      %v247 = vld [vmem:[%s1 + $0x8] sm:$0xf]
      %v248 = vld [vmem:[%s1 + $0xc] sm:$0xf]
      %v249 = vld [vmem:[%s1 + $0x10] sm:$0xf]
      %v250 = vld [vmem:[%s1 + $0x14] sm:$0xf]
      %v251 = vld [vmem:[%s2] sm:$0x1]
      %v253 = vlaneseq
      %v254 = vshrl.u32 %v253, 7
      %v255 = vsub.s32 0, %v254
      %v256 = vrot.slane %v251, %v255
      %v290 = vunpack.c.l.b16 %v213
      %v291 = vunpack.c.l.b16 %v214
      %v292 = vunpack.c.l.b16 %v215
      %v293 = vunpack.c.l.b16 %v216
      %v294 = vunpack.c.l.b16 %v217
      %v295 = vunpack.c.l.b16 %v218
      %v296 = vunpack.c.l.b16 %v219
      %v297 = vunpack.c.l.b16 %v220
      %v298 = vunpack.c.l.b16 %v221
      %v299 = vunpack.c.l.b16 %v222
      %v300 = vunpack.c.l.b16 %v223
      %v301 = vunpack.c.l.b16 %v224
      %v302 = vunpack.c.l.b16 %v225
      %v303 = vunpack.c.l.b16 %v226
      %v304 = vunpack.c.l.b16 %v227
      %v305 = vunpack.c.l.b16 %v228
      %v306 = vunpack.c.l.b16 %v229
      %v307 = vunpack.c.l.b16 %v230
      %v308 = vunpack.c.l.b16 %v231
      %v309 = vunpack.c.l.b16 %v232
      %v310 = vunpack.c.l.b16 %v233
      %v311 = vunpack.c.l.b16 %v234
      %v312 = vunpack.c.l.b16 %v235
      %v313 = vunpack.c.l.b16 %v236
      %v314 = vunpack.c.l.b16 %v237
      %v315 = vunpack.c.l.b16 %v238
      %v316 = vunpack.c.l.b16 %v239
      %v317 = vunpack.c.l.b16 %v240
      %v318 = vunpack.c.l.b16 %v241
      %v319 = vunpack.c.l.b16 %v242
      %v320 = vunpack.c.l.b16 %v243
      %v321 = vunpack.c.l.b16 %v244
      %v322 = vpack.c.b16 %v291, %v290
      %v323 = vpack.c.b16 %v293, %v292
      %v324 = vpack.c.b16 %v295, %v294
      %v325 = vpack.c.b16 %v297, %v296
      %v326 = vpack.c.b16 %v299, %v298
      %v327 = vpack.c.b16 %v301, %v300
      %v328 = vpack.c.b16 %v303, %v302
      %v329 = vpack.c.b16 %v305, %v304
      %v330 = vpack.c.b16 %v307, %v306
      %v331 = vpack.c.b16 %v309, %v308
      %v332 = vpack.c.b16 %v311, %v310
      %v333 = vpack.c.b16 %v313, %v312
      %v334 = vpack.c.b16 %v315, %v314
      %v335 = vpack.c.b16 %v317, %v316
      %v336 = vpack.c.b16 %v319, %v318
      %v337 = vpack.c.b16 %v321, %v320
      %v344 = vunpack.c.l.b16 %v245
      %v345 = vunpack.c.l.b16 %v246
      %v346 = vunpack.c.l.b16 %v247
      %v347 = vunpack.c.l.b16 %v248
      %v348 = vunpack.c.l.b16 %v249
      %v349 = vunpack.c.l.b16 %v250
      %v350 = vpack.c.b16 %v345, %v344
      %v351 = vpack.c.b16 %v347, %v346
      %v352 = vpack.c.b16 %v349, %v348
      %vm356 = vcmask 392192
      %v358 = vsel %vm356, %v322, 0
      %v361 = vsel %vm356, %v323, 0
      %v364 = vsel %vm356, %v324, 0
      %v367 = vsel %vm356, %v325, 0
      %v370 = vsel %vm356, %v326, 0
      %v373 = vsel %vm356, %v327, 0
      %v376 = vsel %vm356, %v328, 0
      %v379 = vsel %vm356, %v329, 0
      %v382 = vsel %vm356, %v330, 0
      %v385 = vsel %vm356, %v331, 0
      %v388 = vsel %vm356, %v332, 0
      %v391 = vsel %vm356, %v333, 0
      %v394 = vsel %vm356, %v334, 0
      %v397 = vsel %vm356, %v335, 0
      %v400 = vsel %vm356, %v336, 0
      %v403 = vsel %vm356, %v337, 0
      %405 = vmatprep.subr.bf16.mxu0 0
      %406 = vmatpush1.bf16.msra.mxu0 %v350
      %407 = vmatprep.subr.bf16.mxu0 0
      %408 = vmatpush1.bf16.msra.mxu0 %v351
      %409 = vmatprep.subr.bf16.mxu0 0
      %410 = vmatpush1.bf16.msra.mxu0 %v352
      %411 = vmatprep.subr.bf16.mxu0 0
      %412 = vmatpush1.bf16.msra.mxu0 0
      %413 = vmatprep.subr.bf16.mxu0 0
      %414 = vmatpush1.bf16.msra.mxu0 0
      %415 = vmatprep.subr.bf16.mxu0 0
      %416 = vmatpush1.bf16.msra.mxu0 0
      %417 = vmatprep.subr.bf16.mxu0 0
      %418 = vmatpush1.bf16.msra.mxu0 0
      %419 = vmatprep.subr.bf16.mxu0 0
      %420 = vmatpush1.bf16.msra.mxu0 0
      %421 = vmatprep.subr.bf16.mxu0 0
      %422 = vmatpush1.bf16.msra.mxu0 0
      %423 = vmatprep.subr.bf16.mxu0 0
      %424 = vmatpush1.bf16.msra.mxu0 0
      %425 = vmatprep.subr.bf16.mxu0 0
      %426 = vmatpush1.bf16.msra.mxu0 0
      %427 = vmatprep.subr.bf16.mxu0 0
      %428 = vmatpush1.bf16.msra.mxu0 0
      %429 = vmatprep.subr.bf16.mxu0 0
      %430 = vmatpush1.bf16.msra.mxu0 0
      %431 = vmatprep.subr.bf16.mxu0 0
      %432 = vmatpush1.bf16.msra.mxu0 0
      %433 = vmatprep.subr.bf16.mxu0 0
      %434 = vmatpush1.bf16.msra.mxu0 0
      %435 = vmatprep.subr.bf16.mxu0 0
      %436 = vmatpush1.bf16.msra.mxu0 0
      %437 = vmatprep.mubr.bf16.mxu0 0
      %438 = vmatmul.mubr.bf16.gmra.mrb[0].mxu0 %v358
      %v439 = vpop.f32.mrb[0].mxu0
      %v440 = vadd.f32 %v256, %v439
      %v441 = vpop.f32.mrb[0].mxu0
      %v442 = vpop.f32.mrb[0].mxu0
      %v443 = vadd.f32 %v256, %v442
      %v444 = vpop.f32.mrb[0].mxu0
      %445 = vmatprep.mubr.bf16.mxu0 0
      %446 = vmatmul.mubr.bf16.gmra.mrb[0].mxu0 %v361
      %v447 = vpop.f32.mrb[0].mxu0
      %v448 = vadd.f32 %v256, %v447
      %v449 = vpop.f32.mrb[0].mxu0
      %v450 = vpop.f32.mrb[0].mxu0
      %v451 = vadd.f32 %v256, %v450
      %v452 = vpop.f32.mrb[0].mxu0
      %453 = vmatprep.mubr.bf16.mxu0 0
      %454 = vmatmul.mubr.bf16.gmra.mrb[0].mxu0 %v364
      %v455 = vpop.f32.mrb[0].mxu0
      %v456 = vadd.f32 %v256, %v455
      %v457 = vpop.f32.mrb[0].mxu0
      %v458 = vpop.f32.mrb[0].mxu0
      %v459 = vadd.f32 %v256, %v458
      %v460 = vpop.f32.mrb[0].mxu0
      %461 = vmatprep.mubr.bf16.mxu0 0
      %462 = vmatmul.mubr.bf16.gmra.mrb[0].mxu0 %v367
      %v463 = vpop.f32.mrb[0].mxu0
      %v464 = vadd.f32 %v256, %v463
      %v465 = vpop.f32.mrb[0].mxu0
      %v466 = vpop.f32.mrb[0].mxu0
      %v467 = vadd.f32 %v256, %v466
      %v468 = vpop.f32.mrb[0].mxu0
      %469 = vmatprep.mubr.bf16.mxu0 0
      %470 = vmatmul.mubr.bf16.gmra.mrb[0].mxu0 %v370
      %v471 = vpop.f32.mrb[0].mxu0
      %v472 = vadd.f32 %v256, %v471
      %v473 = vpop.f32.mrb[0].mxu0
      %v474 = vpop.f32.mrb[0].mxu0
      %v475 = vadd.f32 %v256, %v474
      %v476 = vpop.f32.mrb[0].mxu0
      %477 = vmatprep.mubr.bf16.mxu0 0
      %478 = vmatmul.mubr.bf16.gmra.mrb[0].mxu0 %v373
      %v479 = vpop.f32.mrb[0].mxu0
      %v480 = vadd.f32 %v256, %v479
      %v481 = vpop.f32.mrb[0].mxu0
      %v482 = vpop.f32.mrb[0].mxu0
      %v483 = vadd.f32 %v256, %v482
      %v484 = vpop.f32.mrb[0].mxu0
      %485 = vmatprep.mubr.bf16.mxu0 0
      %486 = vmatmul.mubr.bf16.gmra.mrb[0].mxu0 %v376
      %v487 = vpop.f32.mrb[0].mxu0
      %v488 = vadd.f32 %v256, %v487
      %v489 = vpop.f32.mrb[0].mxu0
      %v490 = vpop.f32.mrb[0].mxu0
      %v491 = vadd.f32 %v256, %v490
      %v492 = vpop.f32.mrb[0].mxu0
      %493 = vmatprep.mubr.bf16.mxu0 0
      %494 = vmatmul.mubr.bf16.gmra.mrb[0].mxu0 %v379
      %v495 = vpop.f32.mrb[0].mxu0
      %v496 = vadd.f32 %v256, %v495
      %v497 = vpop.f32.mrb[0].mxu0
      %v498 = vpop.f32.mrb[0].mxu0
      %v499 = vadd.f32 %v256, %v498
      %v500 = vpop.f32.mrb[0].mxu0
      %501 = vmatprep.mubr.bf16.mxu0 0
      %502 = vmatmul.mubr.bf16.gmra.mrb[0].mxu0 %v382
      %v503 = vpop.f32.mrb[0].mxu0
      %v504 = vadd.f32 %v256, %v503
      %v505 = vpop.f32.mrb[0].mxu0
      %v506 = vpop.f32.mrb[0].mxu0
      %v507 = vadd.f32 %v256, %v506
      %v508 = vpop.f32.mrb[0].mxu0
      %509 = vmatprep.mubr.bf16.mxu0 0
      %510 = vmatmul.mubr.bf16.gmra.mrb[0].mxu0 %v385
      %v511 = vpop.f32.mrb[0].mxu0
      %v512 = vadd.f32 %v256, %v511
      %v513 = vpop.f32.mrb[0].mxu0
      %v514 = vpop.f32.mrb[0].mxu0
      %v515 = vadd.f32 %v256, %v514
      %v516 = vpop.f32.mrb[0].mxu0
      %517 = vmatprep.mubr.bf16.mxu0 0
      %518 = vmatmul.mubr.bf16.gmra.mrb[0].mxu0 %v388
      %v519 = vpop.f32.mrb[0].mxu0
      %v520 = vadd.f32 %v256, %v519
      %v521 = vpop.f32.mrb[0].mxu0
      %v522 = vpop.f32.mrb[0].mxu0
      %v523 = vadd.f32 %v256, %v522
      %v524 = vpop.f32.mrb[0].mxu0
      %525 = vmatprep.mubr.bf16.mxu0 0
      %526 = vmatmul.mubr.bf16.gmra.mrb[0].mxu0 %v391
      %v527 = vpop.f32.mrb[0].mxu0
      %v528 = vadd.f32 %v256, %v527
      %v529 = vpop.f32.mrb[0].mxu0
      %v530 = vpop.f32.mrb[0].mxu0
      %v531 = vadd.f32 %v256, %v530
      %v532 = vpop.f32.mrb[0].mxu0
      %533 = vmatprep.mubr.bf16.mxu0 0
      %534 = vmatmul.mubr.bf16.gmra.mrb[0].mxu0 %v394
      %v535 = vpop.f32.mrb[0].mxu0
      %v536 = vadd.f32 %v256, %v535
      %v537 = vpop.f32.mrb[0].mxu0
      %v538 = vpop.f32.mrb[0].mxu0
      %v539 = vadd.f32 %v256, %v538
      %v540 = vpop.f32.mrb[0].mxu0
      %541 = vmatprep.mubr.bf16.mxu0 0
      %542 = vmatmul.mubr.bf16.gmra.mrb[0].mxu0 %v397
      %v543 = vpop.f32.mrb[0].mxu0
      %v544 = vadd.f32 %v256, %v543
      %v545 = vpop.f32.mrb[0].mxu0
      %v546 = vpop.f32.mrb[0].mxu0
      %v547 = vadd.f32 %v256, %v546
      %v548 = vpop.f32.mrb[0].mxu0
      %549 = vmatprep.mubr.bf16.mxu0 0
      %550 = vmatmul.mubr.bf16.gmra.mrb[0].mxu0 %v400
      %v551 = vpop.f32.mrb[0].mxu0
      %v552 = vadd.f32 %v256, %v551
      %v553 = vpop.f32.mrb[0].mxu0
      %v554 = vpop.f32.mrb[0].mxu0
      %v555 = vadd.f32 %v256, %v554
      %v556 = vpop.f32.mrb[0].mxu0
      %557 = vmatprep.mubr.bf16.mxu0 0
      %558 = vmatmul.mubr.bf16.gmra.mrb[0].mxu0 %v403
      %v559 = vpop.f32.mrb[0].mxu0
      %v560 = vadd.f32 %v256, %v559
      %v561 = vpop.f32.mrb[0].mxu0
      %v562 = vpop.f32.mrb[0].mxu0
      %v563 = vadd.f32 %v256, %v562
      %v564 = vpop.f32.mrb[0].mxu0
      %565 = vdwg.mxu0
      %v566 = vmul.f32 %v440, 0.5
      %v567 = vmul.f32 %v443, 0.5
      %v568 = vmul.f32 %v448, 0.5
      %v569 = vmul.f32 %v451, 0.5
      %v570 = vmul.f32 %v456, 0.5
      %v571 = vmul.f32 %v459, 0.5
      %v572 = vmul.f32 %v464, 0.5
      %v573 = vmul.f32 %v467, 0.5
      %v574 = vmul.f32 %v472, 0.5
      %v575 = vmul.f32 %v475, 0.5
      %v576 = vmul.f32 %v480, 0.5
      %v577 = vmul.f32 %v483, 0.5
      %v578 = vmul.f32 %v488, 0.5
      %v579 = vmul.f32 %v491, 0.5
      %v580 = vmul.f32 %v496, 0.5
      %v581 = vmul.f32 %v499, 0.5
      %v582 = vmul.f32 %v504, 0.5
      %v583 = vmul.f32 %v507, 0.5
      %v584 = vmul.f32 %v512, 0.5
      %v585 = vmul.f32 %v515, 0.5
      %v586 = vmul.f32 %v520, 0.5
      %v587 = vmul.f32 %v523, 0.5
      %v588 = vmul.f32 %v528, 0.5
      %v589 = vmul.f32 %v531, 0.5
      %v590 = vmul.f32 %v536, 0.5
      %v591 = vmul.f32 %v539, 0.5
      %v592 = vmul.f32 %v544, 0.5
      %v593 = vmul.f32 %v547, 0.5
      %v594 = vmul.f32 %v552, 0.5
      %v595 = vmul.f32 %v555, 0.5
      %v596 = vmul.f32 %v560, 0.5
      %v597 = vmul.f32 %v563, 0.5
      %v598 = vmul.f32 %v440, 0.70710677
      %v599 = vmul.f32 %v443, 0.70710677
      %v600 = vmul.f32 %v448, 0.70710677
      %v601 = vmul.f32 %v451, 0.70710677
      %v602 = vmul.f32 %v456, 0.70710677
      %v603 = vmul.f32 %v459, 0.70710677
      %v604 = vmul.f32 %v464, 0.70710677
      %v605 = vmul.f32 %v467, 0.70710677
      %v606 = vmul.f32 %v472, 0.70710677
      %v607 = vmul.f32 %v475, 0.70710677
      %v608 = vmul.f32 %v480, 0.70710677
      %v609 = vmul.f32 %v483, 0.70710677
      %v610 = vmul.f32 %v488, 0.70710677
      %v611 = vmul.f32 %v491, 0.70710677
      %v612 = vmul.f32 %v496, 0.70710677
      %v613 = vmul.f32 %v499, 0.70710677
      %v614 = vmul.f32 %v504, 0.70710677
      %v615 = vmul.f32 %v507, 0.70710677
      %v616 = vmul.f32 %v512, 0.70710677
      %v617 = vmul.f32 %v515, 0.70710677
      %v618 = vmul.f32 %v520, 0.70710677
      %v619 = vmul.f32 %v523, 0.70710677
      %v620 = vmul.f32 %v528, 0.70710677
      %v621 = vmul.f32 %v531, 0.70710677
      %v622 = vmul.f32 %v536, 0.70710677
      %v623 = vmul.f32 %v539, 0.70710677
      %v624 = vmul.f32 %v544, 0.70710677
      %v625 = vmul.f32 %v547, 0.70710677
      %v626 = vmul.f32 %v552, 0.70710677
      %v627 = vmul.f32 %v555, 0.70710677
      %v628 = vmul.f32 %v560, 0.70710677
      %v629 = vmul.f32 %v563, 0.70710677
      %v630 = verf.f32.pop %v598
      %v631 = verf.f32.pop %v599
      %v632 = verf.f32.pop %v600
      %v633 = verf.f32.pop %v601
      %v634 = verf.f32.pop %v602
      %v635 = verf.f32.pop %v603
      %v636 = verf.f32.pop %v604
      %v637 = verf.f32.pop %v605
      %v638 = verf.f32.pop %v606
      %v639 = verf.f32.pop %v607
      %v640 = verf.f32.pop %v608
      %v641 = verf.f32.pop %v609
      %v642 = verf.f32.pop %v610
      %v643 = verf.f32.pop %v611
      %v644 = verf.f32.pop %v612
      %v645 = verf.f32.pop %v613
      %v646 = verf.f32.pop %v614
      %v647 = verf.f32.pop %v615
      %v648 = verf.f32.pop %v616
      %v649 = verf.f32.pop %v617
      %v650 = verf.f32.pop %v618
      %v651 = verf.f32.pop %v619
      %v652 = verf.f32.pop %v620
      %v653 = verf.f32.pop %v621
      %v654 = verf.f32.pop %v622
      %v655 = verf.f32.pop %v623
      %v656 = verf.f32.pop %v624
      %v657 = verf.f32.pop %v625
      %v658 = verf.f32.pop %v626
      %v659 = verf.f32.pop %v627
      %v660 = verf.f32.pop %v628
      %v661 = verf.f32.pop %v629
      %v662 = vadd.f32 %v630, 1.0
      %v663 = vadd.f32 %v631, 1.0
      %v664 = vadd.f32 %v632, 1.0
      %v665 = vadd.f32 %v633, 1.0
      %v666 = vadd.f32 %v634, 1.0
      %v667 = vadd.f32 %v635, 1.0
      %v668 = vadd.f32 %v636, 1.0
      %v669 = vadd.f32 %v637, 1.0
      %v670 = vadd.f32 %v638, 1.0
      %v671 = vadd.f32 %v639, 1.0
      %v672 = vadd.f32 %v640, 1.0
      %v673 = vadd.f32 %v641, 1.0
      %v674 = vadd.f32 %v642, 1.0
      %v675 = vadd.f32 %v643, 1.0
      %v676 = vadd.f32 %v644, 1.0
      %v677 = vadd.f32 %v645, 1.0
      %v678 = vadd.f32 %v646, 1.0
      %v679 = vadd.f32 %v647, 1.0
      %v680 = vadd.f32 %v648, 1.0
      %v681 = vadd.f32 %v649, 1.0
      %v682 = vadd.f32 %v650, 1.0
      %v683 = vadd.f32 %v651, 1.0
      %v684 = vadd.f32 %v652, 1.0
      %v685 = vadd.f32 %v653, 1.0
      %v686 = vadd.f32 %v654, 1.0
      %v687 = vadd.f32 %v655, 1.0
      %v688 = vadd.f32 %v656, 1.0
      %v689 = vadd.f32 %v657, 1.0
      %v690 = vadd.f32 %v658, 1.0
      %v691 = vadd.f32 %v659, 1.0
      %v692 = vadd.f32 %v660, 1.0
      %v693 = vadd.f32 %v661, 1.0
      %v694 = vmul.f32 %v566, %v662
      %v695 = vmul.f32 %v567, %v663
      %v696 = vmul.f32 %v568, %v664
      %v697 = vmul.f32 %v569, %v665
      %v698 = vmul.f32 %v570, %v666
      %v699 = vmul.f32 %v571, %v667
      %v700 = vmul.f32 %v572, %v668
      %v701 = vmul.f32 %v573, %v669
      %v702 = vmul.f32 %v574, %v670
      %v703 = vmul.f32 %v575, %v671
      %v704 = vmul.f32 %v576, %v672
      %v705 = vmul.f32 %v577, %v673
      %v706 = vmul.f32 %v578, %v674
      %v707 = vmul.f32 %v579, %v675
      %v708 = vmul.f32 %v580, %v676
      %v709 = vmul.f32 %v581, %v677
      %v710 = vmul.f32 %v582, %v678
      %v711 = vmul.f32 %v583, %v679
      %v712 = vmul.f32 %v584, %v680
      %v713 = vmul.f32 %v585, %v681
      %v714 = vmul.f32 %v586, %v682
      %v715 = vmul.f32 %v587, %v683
      %v716 = vmul.f32 %v588, %v684
      %v717 = vmul.f32 %v589, %v685
      %v718 = vmul.f32 %v590, %v686
      %v719 = vmul.f32 %v591, %v687
      %v720 = vmul.f32 %v592, %v688
      %v721 = vmul.f32 %v593, %v689
      %v722 = vmul.f32 %v594, %v690
      %v723 = vmul.f32 %v595, %v691
      %v724 = vmul.f32 %v596, %v692
      %v725 = vmul.f32 %v597, %v693
      %v726 = vpack.c.bf16 %v695, %v694
      %v727 = vpack.c.bf16 %v697, %v696
      %v728 = vpack.c.bf16 %v699, %v698
      %v729 = vpack.c.bf16 %v701, %v700
      %v730 = vpack.c.bf16 %v703, %v702
      %v731 = vpack.c.bf16 %v705, %v704
      %v732 = vpack.c.bf16 %v707, %v706
      %v733 = vpack.c.bf16 %v709, %v708
      %v734 = vpack.c.bf16 %v711, %v710
      %v735 = vpack.c.bf16 %v713, %v712
      %v736 = vpack.c.bf16 %v715, %v714
      %v737 = vpack.c.bf16 %v717, %v716
      %v738 = vpack.c.bf16 %v719, %v718
      %v739 = vpack.c.bf16 %v721, %v720
      %v740 = vpack.c.bf16 %v723, %v722
      %v741 = vpack.c.bf16 %v725, %v724
      %v758 = vunpack.c.l.b16 %v726
      %v759 = vunpack.c.h.b16 %v726
      %v760 = vunpack.c.l.b16 %v727
      %v761 = vunpack.c.h.b16 %v727
      %v762 = vunpack.c.l.b16 %v728
      %v763 = vunpack.c.h.b16 %v728
      %v764 = vunpack.c.l.b16 %v729
      %v765 = vunpack.c.h.b16 %v729
      %v766 = vunpack.c.l.b16 %v730
      %v767 = vunpack.c.h.b16 %v730
      %v768 = vunpack.c.l.b16 %v731
      %v769 = vunpack.c.h.b16 %v731
      %v770 = vunpack.c.l.b16 %v732
      %v771 = vunpack.c.h.b16 %v732
      %v772 = vunpack.c.l.b16 %v733
      %v773 = vunpack.c.h.b16 %v733
      %v774 = vunpack.c.l.b16 %v734
      %v775 = vunpack.c.h.b16 %v734
      %v776 = vunpack.c.l.b16 %v735
      %v777 = vunpack.c.h.b16 %v735
      %v778 = vunpack.c.l.b16 %v736
      %v779 = vunpack.c.h.b16 %v736
      %v780 = vunpack.c.l.b16 %v737
      %v781 = vunpack.c.h.b16 %v737
      %v782 = vunpack.c.l.b16 %v738
      %v783 = vunpack.c.h.b16 %v738
      %v784 = vunpack.c.l.b16 %v739
      %v785 = vunpack.c.h.b16 %v739
      %v786 = vunpack.c.l.b16 %v740
      %v787 = vunpack.c.h.b16 %v740
      %v788 = vunpack.c.l.b16 %v741
      %v789 = vunpack.c.h.b16 %v741
      %v790 = vpack.c.b16 %v758, %v758
      %v791 = vpack.c.b16 %v759, %v759
      %v792 = vpack.c.b16 %v760, %v760
      %v793 = vpack.c.b16 %v761, %v761
      %v794 = vpack.c.b16 %v762, %v762
      %v795 = vpack.c.b16 %v763, %v763
      %v796 = vpack.c.b16 %v764, %v764
      %v797 = vpack.c.b16 %v765, %v765
      %v798 = vpack.c.b16 %v766, %v766
      %v799 = vpack.c.b16 %v767, %v767
      %v800 = vpack.c.b16 %v768, %v768
      %v801 = vpack.c.b16 %v769, %v769
      %v802 = vpack.c.b16 %v770, %v770
      %v803 = vpack.c.b16 %v771, %v771
      %v804 = vpack.c.b16 %v772, %v772
      %v805 = vpack.c.b16 %v773, %v773
      %v806 = vpack.c.b16 %v774, %v774
      %v807 = vpack.c.b16 %v775, %v775
      %v808 = vpack.c.b16 %v776, %v776
      %v809 = vpack.c.b16 %v777, %v777
      %v810 = vpack.c.b16 %v778, %v778
      %v811 = vpack.c.b16 %v779, %v779
      %v812 = vpack.c.b16 %v780, %v780
      %v813 = vpack.c.b16 %v781, %v781
      %v814 = vpack.c.b16 %v782, %v782
      %v815 = vpack.c.b16 %v783, %v783
      %v816 = vpack.c.b16 %v784, %v784
      %v817 = vpack.c.b16 %v785, %v785
      %v818 = vpack.c.b16 %v786, %v786
      %v819 = vpack.c.b16 %v787, %v787
      %v820 = vpack.c.b16 %v788, %v788
      %v821 = vpack.c.b16 %v789, %v789
      %854 = vst [vmem:[%s206] sm:$0xf] %v790
      %855 = vst [vmem:[%s206 + $0x4] sm:$0xf] %v791
      %856 = vst [vmem:[%s206 + $0x8] sm:$0xf] %v792
      %857 = vst [vmem:[%s206 + $0xc] sm:$0xf] %v793
      %858 = vst [vmem:[%s206 + $0x10] sm:$0xf] %v794
      %859 = vst [vmem:[%s206 + $0x14] sm:$0xf] %v795
      %860 = vst [vmem:[%s206 + $0x18] sm:$0xf] %v796
      %861 = vst [vmem:[%s206 + $0x1c] sm:$0xf] %v797
      %862 = vst [vmem:[%s206 + $0x20] sm:$0xf] %v798
      %863 = vst [vmem:[%s206 + $0x24] sm:$0xf] %v799
      %864 = vst [vmem:[%s206 + $0x28] sm:$0xf] %v800
      %865 = vst [vmem:[%s206 + $0x2c] sm:$0xf] %v801
      %866 = vst [vmem:[%s206 + $0x30] sm:$0xf] %v802
      %867 = vst [vmem:[%s206 + $0x34] sm:$0xf] %v803
      %868 = vst [vmem:[%s206 + $0x38] sm:$0xf] %v804
      %869 = vst [vmem:[%s206 + $0x3c] sm:$0xf] %v805
      %870 = vst [vmem:[%s206 + $0x40] sm:$0xf] %v806
      %871 = vst [vmem:[%s206 + $0x44] sm:$0xf] %v807
      %872 = vst [vmem:[%s206 + $0x48] sm:$0xf] %v808
      %873 = vst [vmem:[%s206 + $0x4c] sm:$0xf] %v809
      %874 = vst [vmem:[%s206 + $0x50] sm:$0xf] %v810
      %875 = vst [vmem:[%s206 + $0x54] sm:$0xf] %v811
      %876 = vst [vmem:[%s206 + $0x58] sm:$0xf] %v812
      %877 = vst [vmem:[%s206 + $0x5c] sm:$0xf] %v813
      %878 = vst [vmem:[%s206 + $0x60] sm:$0xf] %v814
      %879 = vst [vmem:[%s206 + $0x64] sm:$0xf] %v815
      %880 = vst [vmem:[%s206 + $0x68] sm:$0xf] %v816
      %881 = vst [vmem:[%s206 + $0x6c] sm:$0xf] %v817
      %882 = vst [vmem:[%s206 + $0x70] sm:$0xf] %v818
      %883 = vst [vmem:[%s206 + $0x74] sm:$0xf] %v819
      %884 = vst [vmem:[%s206 + $0x78] sm:$0xf] %v820
      %885 = vst [vmem:[%s206 + $0x7c] sm:$0xf] %v821
      %v886 = vunpack.c.l.bf16 %v726
      %v887 = vunpack.c.h.bf16 %v726
      %v888 = vunpack.c.l.bf16 %v727
      %v889 = vunpack.c.h.bf16 %v727
      %v890 = vunpack.c.l.bf16 %v728
      %v891 = vunpack.c.h.bf16 %v728
      %v892 = vunpack.c.l.bf16 %v729
      %v893 = vunpack.c.h.bf16 %v729
      %v894 = vunpack.c.l.bf16 %v730
      %v895 = vunpack.c.h.bf16 %v730
      %v896 = vunpack.c.l.bf16 %v731
      %v897 = vunpack.c.h.bf16 %v731
      %v898 = vunpack.c.l.bf16 %v732
      %v899 = vunpack.c.h.bf16 %v732
      %v900 = vunpack.c.l.bf16 %v733
      %v901 = vunpack.c.h.bf16 %v733
      %v902 = vunpack.c.l.bf16 %v734
      %v903 = vunpack.c.h.bf16 %v734
      %v904 = vunpack.c.l.bf16 %v735
      %v905 = vunpack.c.h.bf16 %v735
      %v906 = vunpack.c.l.bf16 %v736
      %v907 = vunpack.c.h.bf16 %v736
      %v908 = vunpack.c.l.bf16 %v737
      %v909 = vunpack.c.h.bf16 %v737
      %v910 = vunpack.c.l.bf16 %v738
      %v911 = vunpack.c.h.bf16 %v738
      %v912 = vunpack.c.l.bf16 %v739
      %v913 = vunpack.c.h.bf16 %v739
      %v914 = vunpack.c.l.bf16 %v740
      %v915 = vunpack.c.h.bf16 %v740
      %v916 = vunpack.c.l.bf16 %v741
      %v917 = vunpack.c.h.bf16 %v741
      %v918 = vadd.f32 %v886, %v887
      %v919 = vadd.f32 %v918, %v888
      %v920 = vadd.f32 %v919, %v889
      %v921 = vadd.f32 %v920, %v890
      %v922 = vadd.f32 %v921, %v891
      %v923 = vadd.f32 %v922, %v892
      %v924 = vadd.f32 %v923, %v893
      %v925 = vadd.f32 %v924, %v894
      %v926 = vadd.f32 %v925, %v895
      %v927 = vadd.f32 %v926, %v896
      %v928 = vadd.f32 %v927, %v897
      %v929 = vadd.f32 %v928, %v898
      %v930 = vadd.f32 %v929, %v899
      %v931 = vadd.f32 %v930, %v900
      %v932 = vadd.f32 %v931, %v901
      %v933 = vadd.f32 %v932, %v902
      %v934 = vadd.f32 %v933, %v903
      %v935 = vadd.f32 %v934, %v904
      %v936 = vadd.f32 %v935, %v905
      %v937 = vadd.f32 %v936, %v906
      %v938 = vadd.f32 %v937, %v907
      %v939 = vadd.f32 %v938, %v908
      %v940 = vadd.f32 %v939, %v909
      %v941 = vadd.f32 %v940, %v910
      %v942 = vadd.f32 %v941, %v911
      %v943 = vadd.f32 %v942, %v912
      %v944 = vadd.f32 %v943, %v913
      %v945 = vadd.f32 %v944, %v914
      %v946 = vadd.f32 %v945, %v915
      %v947 = vadd.f32 %v946, %v916
      %v948 = vadd.f32 %v947, %v917
      %v949 = vrot.slane %v948, 4
      %v950 = vadd.f32 %v948, %v949
      %v951 = vrot.slane %v950, 2
      %v952 = vadd.f32 %v950, %v951
      %v953 = vrot.slane %v952, 1
      %v954 = vadd.f32 %v952, %v953
      %v955 = vmul.f32 %v886, %v886
      %v956 = vmul.f32 %v887, %v887
      %v957 = vmul.f32 %v888, %v888
      %v958 = vmul.f32 %v889, %v889
      %v959 = vmul.f32 %v890, %v890
      %v960 = vmul.f32 %v891, %v891
      %v961 = vmul.f32 %v892, %v892
      %v962 = vmul.f32 %v893, %v893
      %v963 = vmul.f32 %v894, %v894
      %v964 = vmul.f32 %v895, %v895
      %v965 = vmul.f32 %v896, %v896
      %v966 = vmul.f32 %v897, %v897
      %v967 = vmul.f32 %v898, %v898
      %v968 = vmul.f32 %v899, %v899
      %v969 = vmul.f32 %v900, %v900
      %v970 = vmul.f32 %v901, %v901
      %v971 = vmul.f32 %v902, %v902
      %v972 = vmul.f32 %v903, %v903
      %v973 = vmul.f32 %v904, %v904
      %v974 = vmul.f32 %v905, %v905
      %v975 = vmul.f32 %v906, %v906
      %v976 = vmul.f32 %v907, %v907
      %v977 = vmul.f32 %v908, %v908
      %v978 = vmul.f32 %v909, %v909
      %v979 = vmul.f32 %v910, %v910
      %v980 = vmul.f32 %v911, %v911
      %v981 = vmul.f32 %v912, %v912
      %v982 = vmul.f32 %v913, %v913
      %v983 = vmul.f32 %v914, %v914
      %v984 = vmul.f32 %v915, %v915
      %v985 = vmul.f32 %v916, %v916
      %v986 = vmul.f32 %v917, %v917
      %v987 = vadd.f32 %v955, %v956
      %v988 = vadd.f32 %v987, %v957
      %v989 = vadd.f32 %v988, %v958
      %v990 = vadd.f32 %v989, %v959
      %v991 = vadd.f32 %v990, %v960
      %v992 = vadd.f32 %v991, %v961
      %v993 = vadd.f32 %v992, %v962
      %v994 = vadd.f32 %v993, %v963
      %v995 = vadd.f32 %v994, %v964
      %v996 = vadd.f32 %v995, %v965
      %v997 = vadd.f32 %v996, %v966
      %v998 = vadd.f32 %v997, %v967
      %v999 = vadd.f32 %v998, %v968
      %v1000 = vadd.f32 %v999, %v969
      %v1001 = vadd.f32 %v1000, %v970
      %v1002 = vadd.f32 %v1001, %v971
      %v1003 = vadd.f32 %v1002, %v972
      %v1004 = vadd.f32 %v1003, %v973
      %v1005 = vadd.f32 %v1004, %v974
      %v1006 = vadd.f32 %v1005, %v975
      %v1007 = vadd.f32 %v1006, %v976
      %v1008 = vadd.f32 %v1007, %v977
      %v1009 = vadd.f32 %v1008, %v978
      %v1010 = vadd.f32 %v1009, %v979
      %v1011 = vadd.f32 %v1010, %v980
      %v1012 = vadd.f32 %v1011, %v981
      %v1013 = vadd.f32 %v1012, %v982
      %v1014 = vadd.f32 %v1013, %v983
      %v1015 = vadd.f32 %v1014, %v984
      %v1016 = vadd.f32 %v1015, %v985
      %v1017 = vadd.f32 %v1016, %v986
      %v1018 = vrot.slane %v1017, 4
      %v1019 = vadd.f32 %v1017, %v1018
      %v1020 = vrot.slane %v1019, 2
      %v1021 = vadd.f32 %v1019, %v1020
      %v1022 = vrot.slane %v1021, 1
      %v1023 = vadd.f32 %v1021, %v1022
      %vm1024 = vcmask 1040384
      %v1025 = vsel %vm1024, %v954, %v1023
      %1026 = vst [vmem:[%s211] sm:$0x3] %v1025
      %s1027 = smul.u32 32, %s16
      %p1028 = scmp.lt.s32.totalorder %s1027, 63
      %s1029 = scalar_select %p1028, %s1027, 63
      %s1030 = smul.addr %s1029, 4
      %s1031 = scalar_lea.vmem %s3, %s1030
      %p1032 = scmp.lt.s32.totalorder %s16, 1
      %s1033 = scalar_select %p1032, %s16, 1
      %s1034 = smul.addr %s1033, 2
      %s1035 = scalar_lea.vmem %s4, %s1034
      // Predicated region
      $region33: #{conv_mixer_forward.6} parent=31 // pred_check
        %p1036 = pneg %p102
      $region34: #{conv_mixer_forward.6} parent=31 // pred_check_branch
        %1038 = sbr.rel (%p1036) target = $region36
      $region35: #{conv_mixer_forward.6} parent=31 // pred_region
        %s1039 = smul.u32 32, %s16
      $region36: #{conv_mixer_forward.6} parent=31 // pred_fallthru
        _
      // Predicated region
      $region37: #{conv_mixer_forward.6} parent=31 // pred_check
        %p1040 = pneg %p128
      $region38: #{conv_mixer_forward.6} parent=31 // pred_check_branch
        %1042 = sbr.rel (%p1040) target = $region40
      $region39: #{conv_mixer_forward.6} parent=31 // pred_region
        _
      $region40: #{conv_mixer_forward.6} parent=31 // pred_fallthru
        _
    $region32: #{conv_mixer_forward.6} parent=5 // pred_fallthru
      _
    %p1043 = scmp.le.s32.totalorder 2, %s11
    // Predicated region
    $region41: #{conv_mixer_forward.6} parent=5 // pred_check
      %p1044 = pneg %p1043
    $region42: #{conv_mixer_forward.6} parent=5 // pred_check_branch
      %1046 = sbr.rel (%p1044) target = $region44
    $region43: #{conv_mixer_forward.6} parent=5 // pred_region
      %s1047 = ssub.s32 %s11, 2
      // Predicated region
      $region45: #{conv_mixer_forward.6} parent=43 // pred_check
        %p1048 = pneg %p108
      $region46: #{conv_mixer_forward.6} parent=43 // pred_check_branch
        %1050 = sbr.rel (%p1048) target = $region48
      $region47: #{conv_mixer_forward.6} parent=43 // pred_region
        %s1051 = smul.u32 32, %s17
        %p1052 = scmp.lt.s32.totalorder %s1051, 63
        %s1053 = scalar_select %p1052, %s1051, 63
        %s1054 = smul.addr %s1053, 4
        %s1055 = scalar_lea.vmem %s3, %s1054
      $region48: #{conv_mixer_forward.6} parent=43 // pred_fallthru
        _
      // Predicated region
      $region49: #{conv_mixer_forward.6} parent=43 // pred_check
        %p1056 = pneg %p134
      $region50: #{conv_mixer_forward.6} parent=43 // pred_check_branch
        %1058 = sbr.rel (%p1056) target = $region52
      $region51: #{conv_mixer_forward.6} parent=43 // pred_region
        %p1059 = scmp.lt.s32.totalorder %s17, 1
        %s1060 = scalar_select %p1059, %s17, 1
        %s1061 = smul.addr %s1060, 2
        %s1062 = scalar_lea.vmem %s4, %s1061
      $region52: #{conv_mixer_forward.6} parent=43 // pred_fallthru
        _
    $region44: #{conv_mixer_forward.6} parent=5 // pred_fallthru
      _
  $region6: #{conv_mixer_forward.6} parent=0 // loop_footer
    %s15 = sadd.s32 1, %s11
  $region7: #{conv_mixer_forward.6} parent=0 // loop_footer_branch
    %10 = sbr.rel target = $region3
  $region8: #{conv_mixer_forward.6} parent=0 // loop_exit
    _

// kernel: conv_mixer_forward.8
$region0: #{conv_mixer_forward.8}
  #allocation0 [shape = 'u32[]', space=smem, size = 0x4, offset = 0x4, fixed_abs, tag = 'smem constant byte address 0x4 - core index']
  #allocation1 [shape = 'u32[144,128]{1,0:T(1,128)}', space=vmem, size = 0x12000, scoped, tag = 'internal scratch']
  %s0 = inlined_call_operand.vmem [shape: bf16[512,128], index: 0, kind: input, shape index: {}, may-alias: {0,8}]
  %s1 = inlined_call_operand.vmem [shape: bf16[512,128], index: 1, kind: input, shape index: {}]
  %s2 = inlined_call_operand.vmem [shape: f32[1,128], index: 2, kind: input, shape index: {}]
  %s3 = inlined_call_operand.vmem [shape: f32[1,128], index: 3, kind: input, shape index: {}]
  %s4 = inlined_call_operand.vmem [shape: f32[1,128], index: 4, kind: input, shape index: {}]
  %s5 = inlined_call_operand.vmem [shape: f32[1,128], index: 5, kind: input, shape index: {}]
  %s6 = inlined_call_operand.vmem [shape: bf16[128,128], index: 6, kind: input, shape index: {}]
  %s7 = inlined_call_operand.vmem [shape: f32[1,128], index: 7, kind: input, shape index: {}]
  %s8 = inlined_call_operand.vmem [shape: bf16[512,128], index: 8, kind: output, shape index: {0}, may-alias: {0,8}]
  %s9 = inlined_call_operand.vmem [shape: f32[2,2,128], index: 9, kind: output, shape index: {1}]
  %10 = xla_tuple %s8, %s9
  %s11 = sld [smem:[#allocation0]]
  $region73: #{conv_mixer_forward.8} parent=0
    _
  %s13 = ssub.s32 1, %s11
  %s14 = scalar_select 0, %s13, %s11
  loop: start=0, step=1, limit=4
  $region2: #{conv_mixer_forward.8} parent=0 // loop_pre_header
    _
  $region3: #{conv_mixer_forward.8} parent=0 // loop_header
    %s16 = sphi 0, %s20
    %p17 = scmp.ge.s32.totalorder %s16, 4
    %s26 = sphi 0, %s28
    %s29 = sphi 0, %s26
    %s30 = sphi 0, %s29
    %s46 = sphi 0, %s30
    %s52 = sphi 0, %s54
    %s55 = sphi 0, %s52
    %s56 = sphi 0, %s55
    %s72 = sphi 0, %s56
    %s76 = sphi 0, %s76
    %s78 = sphi 0, %s76
    %s79 = sphi 0, %s78
    %s93 = sphi 0, %s79
    %s97 = sphi 0, %s97
    %s99 = sphi 0, %s97
    %s100 = sphi 0, %s99
    %s114 = sphi 0, %s100
    %s118 = sphi 0, %s118
    %s120 = sphi 0, %s118
    %s121 = sphi 0, %s120
    %s135 = sphi 0, %s121
    %s139 = sphi 0, %s139
    %s141 = sphi 0, %s139
    %s142 = sphi 0, %s141
    %s156 = sphi 0, %s142
    %s160 = sphi 0, %s160
    %s162 = sphi 0, %s160
    %s163 = sphi 0, %s162
    %s177 = sphi 0, %s163
    %s181 = sphi 0, %s181
    %s183 = sphi 0, %s181
    %s184 = sphi 0, %s183
    %s198 = sphi 0, %s184
    %s204 = sphi 0, %s206
    %s207 = sphi 0, %s204
    %s208 = sphi 0, %s207
    %s224 = sphi 0, %s208
    %s230 = sphi 0, %s232
    %s233 = sphi 0, %s230
    %s234 = sphi 0, %s233
    %s250 = sphi 0, %s234
  $region4: #{conv_mixer_forward.8} parent=0 // loop_header_branch
    %19 = sbr.rel (%p17) target = $region8
  $region5: #{conv_mixer_forward.8} parent=0 // loop_body
    %s21 = ssub.s32 %s16, 1
    %s22 = ssub.s32 %s16, 2
    %s23 = sadd.s32 %s16, 1
    %s24 = ssub.s32 %s16, %s23
    %p25 = scmp.eq.s32.totalorder %s24, 0
    %s27 = sadd.s32 %s26, 1
    %s28 = scalar_select %p25, %s26, %s27
    %p31 = pneg %p25
    %p32 = scmp.eq.s32.totalorder %s16, 1
    %p33 = por %p31, %p32
    %p34 = scmp.ne.s32.totalorder %s26, %s29
    %p35 = scmp.eq.s32.totalorder %s16, 0
    %p36 = por %p34, %p35
    %p37 = scmp.ne.s32.totalorder %s26, %s29
    %p38 = scmp.eq.s32.totalorder %s21, 1
    %p39 = por %p37, %p38
    %p40 = scmp.ne.s32.totalorder %s29, %s30
    %p41 = scmp.eq.s32.totalorder %s21, 0
    %p42 = por %p40, %p41
    %p43 = scmp.ne.s32.totalorder %s29, %s30
    %p44 = scmp.eq.s32.totalorder %s22, 1
    %p45 = por %p43, %p44
    %p47 = scmp.ne.s32.totalorder %s30, %s46
    %p48 = scmp.eq.s32.totalorder %s22, 0
    %p49 = por %p47, %p48
    %s50 = ssub.s32 %s16, %s23
    %p51 = scmp.eq.s32.totalorder %s50, 0
    %s53 = sadd.s32 %s52, 1
    %s54 = scalar_select %p51, %s52, %s53
    %p57 = pneg %p51
    %p58 = scmp.eq.s32.totalorder %s16, 1
    %p59 = por %p57, %p58
    %p60 = scmp.ne.s32.totalorder %s52, %s55
    %p61 = scmp.eq.s32.totalorder %s16, 0
    %p62 = por %p60, %p61
    %p63 = scmp.ne.s32.totalorder %s52, %s55
    %p64 = scmp.eq.s32.totalorder %s21, 1
    %p65 = por %p63, %p64
    %p66 = scmp.ne.s32.totalorder %s55, %s56
    %p67 = scmp.eq.s32.totalorder %s21, 0
    %p68 = por %p66, %p67
    %p69 = scmp.ne.s32.totalorder %s55, %s56
    %p70 = scmp.eq.s32.totalorder %s22, 1
    %p71 = por %p69, %p70
    %p73 = scmp.ne.s32.totalorder %s56, %s72
    %p74 = scmp.eq.s32.totalorder %s22, 0
    %p75 = por %p73, %p74
    %s77 = sadd.s32 %s76, 1
    %p80 = scmp.eq.s32.totalorder %s16, 1
    %p81 = scmp.ne.s32.totalorder %s76, %s78
    %p82 = scmp.eq.s32.totalorder %s16, 0
    %p83 = por %p81, %p82
    %p84 = scmp.ne.s32.totalorder %s76, %s78
    %p85 = scmp.eq.s32.totalorder %s21, 1
    %p86 = por %p84, %p85
    %p87 = scmp.ne.s32.totalorder %s78, %s79
    %p88 = scmp.eq.s32.totalorder %s21, 0
    %p89 = por %p87, %p88
    %p90 = scmp.ne.s32.totalorder %s78, %s79
    %p91 = scmp.eq.s32.totalorder %s22, 1
    %p92 = por %p90, %p91
    %p94 = scmp.ne.s32.totalorder %s79, %s93
    %p95 = scmp.eq.s32.totalorder %s22, 0
    %p96 = por %p94, %p95
    %s98 = sadd.s32 %s97, 1
    %p101 = scmp.eq.s32.totalorder %s16, 1
    %p102 = scmp.ne.s32.totalorder %s97, %s99
    %p103 = scmp.eq.s32.totalorder %s16, 0
    %p104 = por %p102, %p103
    %p105 = scmp.ne.s32.totalorder %s97, %s99
    %p106 = scmp.eq.s32.totalorder %s21, 1
    %p107 = por %p105, %p106
    %p108 = scmp.ne.s32.totalorder %s99, %s100
    %p109 = scmp.eq.s32.totalorder %s21, 0
    %p110 = por %p108, %p109
    %p111 = scmp.ne.s32.totalorder %s99, %s100
    %p112 = scmp.eq.s32.totalorder %s22, 1
    %p113 = por %p111, %p112
    %p115 = scmp.ne.s32.totalorder %s100, %s114
    %p116 = scmp.eq.s32.totalorder %s22, 0
    %p117 = por %p115, %p116
    %s119 = sadd.s32 %s118, 1
    %p122 = scmp.eq.s32.totalorder %s16, 1
    %p123 = scmp.ne.s32.totalorder %s118, %s120
    %p124 = scmp.eq.s32.totalorder %s16, 0
    %p125 = por %p123, %p124
    %p126 = scmp.ne.s32.totalorder %s118, %s120
    %p127 = scmp.eq.s32.totalorder %s21, 1
    %p128 = por %p126, %p127
    %p129 = scmp.ne.s32.totalorder %s120, %s121
    %p130 = scmp.eq.s32.totalorder %s21, 0
    %p131 = por %p129, %p130
    %p132 = scmp.ne.s32.totalorder %s120, %s121
    %p133 = scmp.eq.s32.totalorder %s22, 1
    %p134 = por %p132, %p133
    %p136 = scmp.ne.s32.totalorder %s121, %s135
    %p137 = scmp.eq.s32.totalorder %s22, 0
    %p138 = por %p136, %p137
    %s140 = sadd.s32 %s139, 1
    %p143 = scmp.eq.s32.totalorder %s16, 1
    %p144 = scmp.ne.s32.totalorder %s139, %s141
    %p145 = scmp.eq.s32.totalorder %s16, 0
    %p146 = por %p144, %p145
    %p147 = scmp.ne.s32.totalorder %s139, %s141
    %p148 = scmp.eq.s32.totalorder %s21, 1
    %p149 = por %p147, %p148
    %p150 = scmp.ne.s32.totalorder %s141, %s142
    %p151 = scmp.eq.s32.totalorder %s21, 0
    %p152 = por %p150, %p151
    %p153 = scmp.ne.s32.totalorder %s141, %s142
    %p154 = scmp.eq.s32.totalorder %s22, 1
    %p155 = por %p153, %p154
    %p157 = scmp.ne.s32.totalorder %s142, %s156
    %p158 = scmp.eq.s32.totalorder %s22, 0
    %p159 = por %p157, %p158
    %s161 = sadd.s32 %s160, 1
    %p164 = scmp.eq.s32.totalorder %s16, 1
    %p165 = scmp.ne.s32.totalorder %s160, %s162
    %p166 = scmp.eq.s32.totalorder %s16, 0
    %p167 = por %p165, %p166
    %p168 = scmp.ne.s32.totalorder %s160, %s162
    %p169 = scmp.eq.s32.totalorder %s21, 1
    %p170 = por %p168, %p169
    %p171 = scmp.ne.s32.totalorder %s162, %s163
    %p172 = scmp.eq.s32.totalorder %s21, 0
    %p173 = por %p171, %p172
    %p174 = scmp.ne.s32.totalorder %s162, %s163
    %p175 = scmp.eq.s32.totalorder %s22, 1
    %p176 = por %p174, %p175
    %p178 = scmp.ne.s32.totalorder %s163, %s177
    %p179 = scmp.eq.s32.totalorder %s22, 0
    %p180 = por %p178, %p179
    %s182 = sadd.s32 %s181, 1
    %p185 = scmp.eq.s32.totalorder %s16, 1
    %p186 = scmp.ne.s32.totalorder %s181, %s183
    %p187 = scmp.eq.s32.totalorder %s16, 0
    %p188 = por %p186, %p187
    %p189 = scmp.ne.s32.totalorder %s181, %s183
    %p190 = scmp.eq.s32.totalorder %s21, 1
    %p191 = por %p189, %p190
    %p192 = scmp.ne.s32.totalorder %s183, %s184
    %p193 = scmp.eq.s32.totalorder %s21, 0
    %p194 = por %p192, %p193
    %p195 = scmp.ne.s32.totalorder %s183, %s184
    %p196 = scmp.eq.s32.totalorder %s22, 1
    %p197 = por %p195, %p196
    %p199 = scmp.ne.s32.totalorder %s184, %s198
    %p200 = scmp.eq.s32.totalorder %s22, 0
    %p201 = por %p199, %p200
    %s202 = ssub.s32 %s16, %s23
    %p203 = scmp.eq.s32.totalorder %s202, 0
    %s205 = sadd.s32 %s204, 1
    %s206 = scalar_select %p203, %s204, %s205
    %p209 = pneg %p203
    %p210 = scmp.eq.s32.totalorder %s16, 1
    %p211 = por %p209, %p210
    %p212 = scmp.ne.s32.totalorder %s204, %s207
    %p213 = scmp.eq.s32.totalorder %s16, 0
    %p214 = por %p212, %p213
    %p215 = scmp.ne.s32.totalorder %s204, %s207
    %p216 = scmp.eq.s32.totalorder %s21, 1
    %p217 = por %p215, %p216
    %p218 = scmp.ne.s32.totalorder %s207, %s208
    %p219 = scmp.eq.s32.totalorder %s21, 0
    %p220 = por %p218, %p219
    %p221 = scmp.ne.s32.totalorder %s207, %s208
    %p222 = scmp.eq.s32.totalorder %s22, 1
    %p223 = por %p221, %p222
    %p225 = scmp.ne.s32.totalorder %s208, %s224
    %p226 = scmp.eq.s32.totalorder %s22, 0
    %p227 = por %p225, %p226
    %s228 = ssub.s32 %s16, %s23
    %p229 = scmp.eq.s32.totalorder %s228, 0
    %s231 = sadd.s32 %s230, 1
    %s232 = scalar_select %p229, %s230, %s231
    %p235 = pneg %p229
    %p236 = scmp.eq.s32.totalorder %s16, 1
    %p237 = por %p235, %p236
    %p238 = scmp.ne.s32.totalorder %s230, %s233
    %p239 = scmp.eq.s32.totalorder %s16, 0
    %p240 = por %p238, %p239
    %p241 = scmp.ne.s32.totalorder %s230, %s233
    %p242 = scmp.eq.s32.totalorder %s21, 1
    %p243 = por %p241, %p242
    %p244 = scmp.ne.s32.totalorder %s233, %s234
    %p245 = scmp.eq.s32.totalorder %s21, 0
    %p246 = por %p244, %p245
    %p247 = scmp.ne.s32.totalorder %s233, %s234
    %p248 = scmp.eq.s32.totalorder %s22, 1
    %p249 = por %p247, %p248
    %p251 = scmp.ne.s32.totalorder %s234, %s250
    %p252 = scmp.eq.s32.totalorder %s22, 0
    %p253 = por %p251, %p252
    %p254 = scmp.le.s32.totalorder 1, %s16
    %p255 = scmp.lt.s32.totalorder %s16, 3
    %p256 = pnand %p254, %p255
    %p257 = pneg %p256
    // Predicated region
    $region9: #{conv_mixer_forward.8} parent=5 // pred_check
      _
    $region10: #{conv_mixer_forward.8} parent=5 // pred_check_branch
      %259 = sbr.rel (%p256) target = $region12
    $region11: #{conv_mixer_forward.8} parent=5 // pred_region
      %s260 = ssub.s32 %s16, 1
      // Predicated region
      $region13: #{conv_mixer_forward.8} parent=11 // pred_check
        %p261 = pneg %p89
      $region14: #{conv_mixer_forward.8} parent=11 // pred_check_branch
        %263 = sbr.rel (%p261) target = $region16
      $region15: #{conv_mixer_forward.8} parent=11 // pred_region
        _
      $region16: #{conv_mixer_forward.8} parent=11 // pred_fallthru
        _
      // Predicated region
      $region17: #{conv_mixer_forward.8} parent=11 // pred_check
        %p264 = pneg %p110
      $region18: #{conv_mixer_forward.8} parent=11 // pred_check_branch
        %266 = sbr.rel (%p264) target = $region20
      $region19: #{conv_mixer_forward.8} parent=11 // pred_region
        _
      $region20: #{conv_mixer_forward.8} parent=11 // pred_fallthru
        _
      // Predicated region
      $region21: #{conv_mixer_forward.8} parent=11 // pred_check
        %p267 = pneg %p131
      $region22: #{conv_mixer_forward.8} parent=11 // pred_check_branch
        %269 = sbr.rel (%p267) target = $region24
      $region23: #{conv_mixer_forward.8} parent=11 // pred_region
        _
      $region24: #{conv_mixer_forward.8} parent=11 // pred_fallthru
        _
      // Predicated region
      $region25: #{conv_mixer_forward.8} parent=11 // pred_check
        %p270 = pneg %p152
      $region26: #{conv_mixer_forward.8} parent=11 // pred_check_branch
        %272 = sbr.rel (%p270) target = $region28
      $region27: #{conv_mixer_forward.8} parent=11 // pred_region
        _
      $region28: #{conv_mixer_forward.8} parent=11 // pred_fallthru
        _
      // Predicated region
      $region29: #{conv_mixer_forward.8} parent=11 // pred_check
        %p273 = pneg %p173
      $region30: #{conv_mixer_forward.8} parent=11 // pred_check_branch
        %275 = sbr.rel (%p273) target = $region32
      $region31: #{conv_mixer_forward.8} parent=11 // pred_region
        _
      $region32: #{conv_mixer_forward.8} parent=11 // pred_fallthru
        _
      // Predicated region
      $region33: #{conv_mixer_forward.8} parent=11 // pred_check
        %p276 = pneg %p194
      $region34: #{conv_mixer_forward.8} parent=11 // pred_check_branch
        %278 = sbr.rel (%p276) target = $region36
      $region35: #{conv_mixer_forward.8} parent=11 // pred_region
        _
      $region36: #{conv_mixer_forward.8} parent=11 // pred_fallthru
        _
    $region12: #{conv_mixer_forward.8} parent=5 // pred_fallthru
      _
    %p279 = scmp.lt.s32.totalorder %s16, 2
    // Predicated region
    $region37: #{conv_mixer_forward.8} parent=5 // pred_check
      %p280 = pneg %p279
    $region38: #{conv_mixer_forward.8} parent=5 // pred_check_branch
      %282 = sbr.rel (%p280) target = $region40
    $region39: #{conv_mixer_forward.8} parent=5 // pred_region
      // Predicated region
      $region41: #{conv_mixer_forward.8} parent=39 // pred_check
        %p283 = pneg %p36
      $region42: #{conv_mixer_forward.8} parent=39 // pred_check_branch
        %285 = sbr.rel (%p283) target = $region44
      $region43: #{conv_mixer_forward.8} parent=39 // pred_region
        %s286 = smul.u32 32, %s16
        %p287 = scmp.lt.s32.totalorder %s286, 63
        %s288 = scalar_select %p287, %s286, 63
        %s289 = smul.addr %s288, 4
        %s290 = scalar_lea.vmem %s0, %s289
        %s291 = smul.u32 32, %s16
      $region44: #{conv_mixer_forward.8} parent=39 // pred_fallthru
        _
      // Predicated region
      $region45: #{conv_mixer_forward.8} parent=39 // pred_check
        %p292 = pneg %p62
      $region46: #{conv_mixer_forward.8} parent=39 // pred_check_branch
        %294 = sbr.rel (%p292) target = $region48
      $region47: #{conv_mixer_forward.8} parent=39 // pred_region
        %s295 = smul.u32 32, %s16
        %p296 = scmp.lt.s32.totalorder %s295, 63
        %s297 = scalar_select %p296, %s295, 63
        %s298 = smul.addr %s297, 4
        %s299 = scalar_lea.vmem %s1, %s298
        %s300 = smul.u32 32, %s16
      $region48: #{conv_mixer_forward.8} parent=39 // pred_fallthru
        _
    $region40: #{conv_mixer_forward.8} parent=5 // pred_fallthru
      _
    %p301 = scmp.le.s32.totalorder 1, %s16
    %p302 = scmp.lt.s32.totalorder %s16, 3
    %p303 = pnand %p301, %p302
    %p304 = pneg %p303
    // Predicated region
    $region49: #{conv_mixer_forward.8} parent=5 // pred_check
      _
    $region50: #{conv_mixer_forward.8} parent=5 // pred_check_branch
      %306 = sbr.rel (%p303) target = $region52
    $region51: #{conv_mixer_forward.8} parent=5 // pred_region
      %s307 = ssub.s32 %s16, 1
      %s308 = smul.u32 32, %s21
      %p309 = scmp.lt.s32.totalorder %s308, 63
      %s310 = scalar_select %p309, %s308, 63
      %s311 = smul.addr %s310, 4
      %s312 = scalar_lea.vmem %s0, %s311
      %p313 = pneg %p42
      %p314 = pneg %p39
      %s315 = smul.u32 32, %s21
      %p316 = scmp.lt.s32.totalorder %s315, 63
      %s317 = scalar_select %p316, %s315, 63
      %s318 = smul.addr %s317, 4
      %s319 = scalar_lea.vmem %s1, %s318
      %p320 = pneg %p68
      %p321 = pneg %p65
      %p322 = pneg %p89
      %p323 = pneg %p86
      %p324 = pneg %p110
      %p325 = pneg %p107
      %p326 = pneg %p131
      %p327 = pneg %p128
      %p328 = pneg %p152
      %p329 = pneg %p149
      %p330 = pneg %p173
      %p331 = pneg %p170
      %p332 = pneg %p194
      %p333 = pneg %p191
      %p334 = pneg %p220
      %p335 = pneg %p217
      %s336 = smul.u32 32, %s21
      %p337 = scmp.lt.s32.totalorder %s336, 63
      %s338 = scalar_select %p337, %s336, 63
      %s339 = smul.addr %s338, 4
      %s340 = scalar_lea.vmem %s8, %s339
      %p341 = pneg %p246
      %p342 = pneg %p243
      %p343 = scmp.lt.s32.totalorder %s21, 1
      %s344 = scalar_select %p343, %s21, 1
      %s345 = smul.addr %s344, 2
      %s346 = scalar_lea.vmem %s9, %s345
      %s347 = smul.u32 32, %s21
      %p348 = scmp.lt.s32.totalorder %s347, 63
      %s349 = scalar_select %p348, %s347, 63
      %s350 = smul.addr %s349, 4
      %s351 = scalar_lea.vmem %s0, %s350
      %s352 = smul.u32 32, %s21
      %s353 = smul.u32 32, %s21
      %p354 = scmp.lt.s32.totalorder %s353, 63
      %s355 = scalar_select %p354, %s353, 63
      %s356 = smul.addr %s355, 4
      %s357 = scalar_lea.vmem %s1, %s356
      %s358 = smul.u32 32, %s21
      %s359 = smul.u32 32, %s21
      %p360 = scmp.lt.s32.totalorder %s359, 63
      %s361 = scalar_select %p360, %s359, 63
      %s362 = smul.addr %s361, 4
      %s363 = scalar_lea.vmem %s8, %s362
      %s364 = smul.u32 32, %s21
      %p365 = scmp.lt.s32.totalorder %s21, 1
      %s366 = scalar_select %p365, %s21, 1
      %s367 = smul.addr %s366, 2
      %s368 = scalar_lea.vmem %s9, %s367
      %v370 = vld [vmem:[%s357] sm:$0xf]
      %v371 = vld [vmem:[%s357 + $0x4] sm:$0xf]
      %v372 = vld [vmem:[%s357 + $0x8] sm:$0xf]
      %v373 = vld [vmem:[%s357 + $0xc] sm:$0xf]
      %v374 = vld [vmem:[%s357 + $0x10] sm:$0xf]
      %v375 = vld [vmem:[%s357 + $0x14] sm:$0xf]
      %v376 = vld [vmem:[%s357 + $0x18] sm:$0xf]
      %v377 = vld [vmem:[%s357 + $0x1c] sm:$0xf]
      %v378 = vld [vmem:[%s357 + $0x20] sm:$0xf]
      %v379 = vld [vmem:[%s357 + $0x24] sm:$0xf]
      %v380 = vld [vmem:[%s357 + $0x28] sm:$0xf]
      %v381 = vld [vmem:[%s357 + $0x2c] sm:$0xf]
      %v382 = vld [vmem:[%s357 + $0x30] sm:$0xf]
      %v383 = vld [vmem:[%s357 + $0x34] sm:$0xf]
      %v384 = vld [vmem:[%s357 + $0x38] sm:$0xf]
      %v385 = vld [vmem:[%s357 + $0x3c] sm:$0xf]
      %v386 = vld [vmem:[%s357 + $0x40] sm:$0xf]
      %v387 = vld [vmem:[%s357 + $0x44] sm:$0xf]
      %v388 = vld [vmem:[%s357 + $0x48] sm:$0xf]
      %v389 = vld [vmem:[%s357 + $0x4c] sm:$0xf]
      %v390 = vld [vmem:[%s357 + $0x50] sm:$0xf]
      %v391 = vld [vmem:[%s357 + $0x54] sm:$0xf]
      %v392 = vld [vmem:[%s357 + $0x58] sm:$0xf]
      %v393 = vld [vmem:[%s357 + $0x5c] sm:$0xf]
      %v394 = vld [vmem:[%s357 + $0x60] sm:$0xf]
      %v395 = vld [vmem:[%s357 + $0x64] sm:$0xf]
      %v396 = vld [vmem:[%s357 + $0x68] sm:$0xf]
      %v397 = vld [vmem:[%s357 + $0x6c] sm:$0xf]
      %v398 = vld [vmem:[%s357 + $0x70] sm:$0xf]
      %v399 = vld [vmem:[%s357 + $0x74] sm:$0xf]
      %v400 = vld [vmem:[%s357 + $0x78] sm:$0xf]
      %v401 = vld [vmem:[%s357 + $0x7c] sm:$0xf]
      %v402 = vunpack.c.l.bf16 %v370
      %v403 = vunpack.c.l.bf16 %v371
      %v404 = vunpack.c.l.bf16 %v372
      %v405 = vunpack.c.l.bf16 %v373
      %v406 = vunpack.c.l.bf16 %v374
      %v407 = vunpack.c.l.bf16 %v375
      %v408 = vunpack.c.l.bf16 %v376
      %v409 = vunpack.c.l.bf16 %v377
      %v410 = vunpack.c.l.bf16 %v378
      %v411 = vunpack.c.l.bf16 %v379
      %v412 = vunpack.c.l.bf16 %v380
      %v413 = vunpack.c.l.bf16 %v381
      %v414 = vunpack.c.l.bf16 %v382
      %v415 = vunpack.c.l.bf16 %v383
      %v416 = vunpack.c.l.bf16 %v384
      %v417 = vunpack.c.l.bf16 %v385
      %v418 = vunpack.c.l.bf16 %v386
      %v419 = vunpack.c.l.bf16 %v387
      %v420 = vunpack.c.l.bf16 %v388
      %v421 = vunpack.c.l.bf16 %v389
      %v422 = vunpack.c.l.bf16 %v390
      %v423 = vunpack.c.l.bf16 %v391
      %v424 = vunpack.c.l.bf16 %v392
      %v425 = vunpack.c.l.bf16 %v393
      %v426 = vunpack.c.l.bf16 %v394
      %v427 = vunpack.c.l.bf16 %v395
      %v428 = vunpack.c.l.bf16 %v396
      %v429 = vunpack.c.l.bf16 %v397
      %v430 = vunpack.c.l.bf16 %v398
      %v431 = vunpack.c.l.bf16 %v399
      %v432 = vunpack.c.l.bf16 %v400
      %v433 = vunpack.c.l.bf16 %v401
      %v434 = vld [vmem:[%s2] sm:$0x1]
      %v436 = vlaneseq
      %v437 = vshrl.u32 %v436, 7
      %v438 = vsub.s32 0, %v437
      %v439 = vrot.slane %v434, %v438
      %v441 = vmul.f32 %v402, %v439
      %v442 = vmul.f32 %v403, %v439
      %v443 = vmul.f32 %v404, %v439
      %v444 = vmul.f32 %v405, %v439
      %v445 = vmul.f32 %v406, %v439
      %v446 = vmul.f32 %v407, %v439
      %v447 = vmul.f32 %v408, %v439
      %v448 = vmul.f32 %v409, %v439
      %v449 = vmul.f32 %v410, %v439
      %v450 = vmul.f32 %v411, %v439
      %v451 = vmul.f32 %v412, %v439
      %v452 = vmul.f32 %v413, %v439
      %v453 = vmul.f32 %v414, %v439
      %v454 = vmul.f32 %v415, %v439
      %v455 = vmul.f32 %v416, %v439
      %v456 = vmul.f32 %v417, %v439
      %v457 = vmul.f32 %v418, %v439
      %v458 = vmul.f32 %v419, %v439
      %v459 = vmul.f32 %v420, %v439
      %v460 = vmul.f32 %v421, %v439
      %v461 = vmul.f32 %v422, %v439
      %v462 = vmul.f32 %v423, %v439
      %v463 = vmul.f32 %v424, %v439
      %v464 = vmul.f32 %v425, %v439
      %v465 = vmul.f32 %v426, %v439
      %v466 = vmul.f32 %v427, %v439
      %v467 = vmul.f32 %v428, %v439
      %v468 = vmul.f32 %v429, %v439
      %v469 = vmul.f32 %v430, %v439
      %v470 = vmul.f32 %v431, %v439
      %v471 = vmul.f32 %v432, %v439
      %v472 = vmul.f32 %v433, %v439
      %v473 = vld [vmem:[%s3] sm:$0x1]
      %v475 = vlaneseq
      %v476 = vshrl.u32 %v475, 7
      %v477 = vsub.s32 0, %v476
      %v478 = vrot.slane %v473, %v477
      %v480 = vadd.f32 %v441, %v478
      %v481 = vadd.f32 %v442, %v478
      %v482 = vadd.f32 %v443, %v478
      %v483 = vadd.f32 %v444, %v478
      %v484 = vadd.f32 %v445, %v478
      %v485 = vadd.f32 %v446, %v478
      %v486 = vadd.f32 %v447, %v478
      %v487 = vadd.f32 %v448, %v478
      %v488 = vadd.f32 %v449, %v478
      %v489 = vadd.f32 %v450, %v478
      %v490 = vadd.f32 %v451, %v478
      %v491 = vadd.f32 %v452, %v478
      %v492 = vadd.f32 %v453, %v478
      %v493 = vadd.f32 %v454, %v478
      %v494 = vadd.f32 %v455, %v478
      %v495 = vadd.f32 %v456, %v478
      %v496 = vadd.f32 %v457, %v478
      %v497 = vadd.f32 %v458, %v478
      %v498 = vadd.f32 %v459, %v478
      %v499 = vadd.f32 %v460, %v478
      %v500 = vadd.f32 %v461, %v478
      %v501 = vadd.f32 %v462, %v478
      %v502 = vadd.f32 %v463, %v478
      %v503 = vadd.f32 %v464, %v478
      %v504 = vadd.f32 %v465, %v478
      %v505 = vadd.f32 %v466, %v478
      %v506 = vadd.f32 %v467, %v478
      %v507 = vadd.f32 %v468, %v478
      %v508 = vadd.f32 %v469, %v478
      %v509 = vadd.f32 %v470, %v478
      %v510 = vadd.f32 %v471, %v478
      %v511 = vadd.f32 %v472, %v478
      %v512 = vld [vmem:[%s351] sm:$0xf]
      %v513 = vld [vmem:[%s351 + $0x4] sm:$0xf]
      %v514 = vld [vmem:[%s351 + $0x8] sm:$0xf]
      %v515 = vld [vmem:[%s351 + $0xc] sm:$0xf]
      %v516 = vld [vmem:[%s351 + $0x10] sm:$0xf]
      %v517 = vld [vmem:[%s351 + $0x14] sm:$0xf]
      %v518 = vld [vmem:[%s351 + $0x18] sm:$0xf]
      %v519 = vld [vmem:[%s351 + $0x1c] sm:$0xf]
      %v520 = vld [vmem:[%s351 + $0x20] sm:$0xf]
      %v521 = vld [vmem:[%s351 + $0x24] sm:$0xf]
      %v522 = vld [vmem:[%s351 + $0x28] sm:$0xf]
      %v523 = vld [vmem:[%s351 + $0x2c] sm:$0xf]
      %v524 = vld [vmem:[%s351 + $0x30] sm:$0xf]
      %v525 = vld [vmem:[%s351 + $0x34] sm:$0xf]
      %v526 = vld [vmem:[%s351 + $0x38] sm:$0xf]
      %v527 = vld [vmem:[%s351 + $0x3c] sm:$0xf]
      %v528 = vld [vmem:[%s351 + $0x40] sm:$0xf]
      %v529 = vld [vmem:[%s351 + $0x44] sm:$0xf]
      %v530 = vld [vmem:[%s351 + $0x48] sm:$0xf]
      %v531 = vld [vmem:[%s351 + $0x4c] sm:$0xf]
      %v532 = vld [vmem:[%s351 + $0x50] sm:$0xf]
      %v533 = vld [vmem:[%s351 + $0x54] sm:$0xf]
      %v534 = vld [vmem:[%s351 + $0x58] sm:$0xf]
      %v535 = vld [vmem:[%s351 + $0x5c] sm:$0xf]
      %v536 = vld [vmem:[%s351 + $0x60] sm:$0xf]
      %v537 = vld [vmem:[%s351 + $0x64] sm:$0xf]
      %v538 = vld [vmem:[%s351 + $0x68] sm:$0xf]
      %v539 = vld [vmem:[%s351 + $0x6c] sm:$0xf]
      %v540 = vld [vmem:[%s351 + $0x70] sm:$0xf]
      %v541 = vld [vmem:[%s351 + $0x74] sm:$0xf]
      %v542 = vld [vmem:[%s351 + $0x78] sm:$0xf]
      %v543 = vld [vmem:[%s351 + $0x7c] sm:$0xf]
      %v544 = vunpack.c.l.bf16 %v512
      %v545 = vunpack.c.l.bf16 %v513
      %v546 = vunpack.c.l.bf16 %v514
      %v547 = vunpack.c.l.bf16 %v515
      %v548 = vunpack.c.l.bf16 %v516
      %v549 = vunpack.c.l.bf16 %v517
      %v550 = vunpack.c.l.bf16 %v518
      %v551 = vunpack.c.l.bf16 %v519
      %v552 = vunpack.c.l.bf16 %v520
      %v553 = vunpack.c.l.bf16 %v521
      %v554 = vunpack.c.l.bf16 %v522
      %v555 = vunpack.c.l.bf16 %v523
      %v556 = vunpack.c.l.bf16 %v524
      %v557 = vunpack.c.l.bf16 %v525
      %v558 = vunpack.c.l.bf16 %v526
      %v559 = vunpack.c.l.bf16 %v527
      %v560 = vunpack.c.l.bf16 %v528
      %v561 = vunpack.c.l.bf16 %v529
      %v562 = vunpack.c.l.bf16 %v530
      %v563 = vunpack.c.l.bf16 %v531
      %v564 = vunpack.c.l.bf16 %v532
      %v565 = vunpack.c.l.bf16 %v533
      %v566 = vunpack.c.l.bf16 %v534
      %v567 = vunpack.c.l.bf16 %v535
      %v568 = vunpack.c.l.bf16 %v536
      %v569 = vunpack.c.l.bf16 %v537
      %v570 = vunpack.c.l.bf16 %v538
      %v571 = vunpack.c.l.bf16 %v539
      %v572 = vunpack.c.l.bf16 %v540
      %v573 = vunpack.c.l.bf16 %v541
      %v574 = vunpack.c.l.bf16 %v542
      %v575 = vunpack.c.l.bf16 %v543
      %v576 = vld [vmem:[%s4] sm:$0x1]
      %v578 = vlaneseq
      %v579 = vshrl.u32 %v578, 7
      %v580 = vsub.s32 0, %v579
      %v581 = vrot.slane %v576, %v580
      %v583 = vmul.f32 %v544, %v581
      %v584 = vmul.f32 %v545, %v581
      %v585 = vmul.f32 %v546, %v581
      %v586 = vmul.f32 %v547, %v581
      %v587 = vmul.f32 %v548, %v581
      %v588 = vmul.f32 %v549, %v581
      %v589 = vmul.f32 %v550, %v581
      %v590 = vmul.f32 %v551, %v581
      %v591 = vmul.f32 %v552, %v581
      %v592 = vmul.f32 %v553, %v581
      %v593 = vmul.f32 %v554, %v581
      %v594 = vmul.f32 %v555, %v581
      %v595 = vmul.f32 %v556, %v581
      %v596 = vmul.f32 %v557, %v581
      %v597 = vmul.f32 %v558, %v581
      %v598 = vmul.f32 %v559, %v581
      %v599 = vmul.f32 %v560, %v581
      %v600 = vmul.f32 %v561, %v581
      %v601 = vmul.f32 %v562, %v581
      %v602 = vmul.f32 %v563, %v581
      %v603 = vmul.f32 %v564, %v581
      %v604 = vmul.f32 %v565, %v581
      %v605 = vmul.f32 %v566, %v581
      %v606 = vmul.f32 %v567, %v581
      %v607 = vmul.f32 %v568, %v581
      %v608 = vmul.f32 %v569, %v581
      %v609 = vmul.f32 %v570, %v581
      %v610 = vmul.f32 %v571, %v581
      %v611 = vmul.f32 %v572, %v581
      %v612 = vmul.f32 %v573, %v581
      %v613 = vmul.f32 %v574, %v581
      %v614 = vmul.f32 %v575, %v581
      %v615 = vld [vmem:[%s5] sm:$0x1]
      %v617 = vlaneseq
      %v618 = vshrl.u32 %v617, 7
      %v619 = vsub.s32 0, %v618
      %v620 = vrot.slane %v615, %v619
      %v622 = vadd.f32 %v583, %v620
      %v623 = vadd.f32 %v584, %v620
      %v624 = vadd.f32 %v585, %v620
      %v625 = vadd.f32 %v586, %v620
      %v626 = vadd.f32 %v587, %v620
      %v627 = vadd.f32 %v588, %v620
      %v628 = vadd.f32 %v589, %v620
      %v629 = vadd.f32 %v590, %v620
      %v630 = vadd.f32 %v591, %v620
      %v631 = vadd.f32 %v592, %v620
      %v632 = vadd.f32 %v593, %v620
      %v633 = vadd.f32 %v594, %v620
      %v634 = vadd.f32 %v595, %v620
      %v635 = vadd.f32 %v596, %v620
      %v636 = vadd.f32 %v597, %v620
      %v637 = vadd.f32 %v598, %v620
      %v638 = vadd.f32 %v599, %v620
      %v639 = vadd.f32 %v600, %v620
      %v640 = vadd.f32 %v601, %v620
      %v641 = vadd.f32 %v602, %v620
      %v642 = vadd.f32 %v603, %v620
      %v643 = vadd.f32 %v604, %v620
      %v644 = vadd.f32 %v605, %v620
      %v645 = vadd.f32 %v606, %v620
      %v646 = vadd.f32 %v607, %v620
      %v647 = vadd.f32 %v608, %v620
      %v648 = vadd.f32 %v609, %v620
      %v649 = vadd.f32 %v610, %v620
      %v650 = vadd.f32 %v611, %v620
      %v651 = vadd.f32 %v612, %v620
      %v652 = vadd.f32 %v613, %v620
      %v653 = vadd.f32 %v614, %v620
      %v654 = vadd.f32 %v622, %v480
      %v655 = vadd.f32 %v623, %v481
      %v656 = vadd.f32 %v624, %v482
      %v657 = vadd.f32 %v625, %v483
      %v658 = vadd.f32 %v626, %v484
      %v659 = vadd.f32 %v627, %v485
      %v660 = vadd.f32 %v628, %v486
      %v661 = vadd.f32 %v629, %v487
      %v662 = vadd.f32 %v630, %v488
      %v663 = vadd.f32 %v631, %v489
      %v664 = vadd.f32 %v632, %v490
      %v665 = vadd.f32 %v633, %v491
      %v666 = vadd.f32 %v634, %v492
      %v667 = vadd.f32 %v635, %v493
      %v668 = vadd.f32 %v636, %v494
      %v669 = vadd.f32 %v637, %v495
      %v670 = vadd.f32 %v638, %v496
      %v671 = vadd.f32 %v639, %v497
      %v672 = vadd.f32 %v640, %v498
      %v673 = vadd.f32 %v641, %v499
      %v674 = vadd.f32 %v642, %v500
      %v675 = vadd.f32 %v643, %v501
      %v676 = vadd.f32 %v644, %v502
      %v677 = vadd.f32 %v645, %v503
      %v678 = vadd.f32 %v646, %v504
      %v679 = vadd.f32 %v647, %v505
      %v680 = vadd.f32 %v648, %v506
      %v681 = vadd.f32 %v649, %v507
      %v682 = vadd.f32 %v650, %v508
      %v683 = vadd.f32 %v651, %v509
      %v684 = vadd.f32 %v652, %v510
      %v685 = vadd.f32 %v653, %v511
      %v686 = vpack.c.bf16 %v655, %v654
      %v687 = vpack.c.bf16 %v657, %v656
      %v688 = vpack.c.bf16 %v659, %v658
      %v689 = vpack.c.bf16 %v661, %v660
      %v690 = vpack.c.bf16 %v663, %v662
      %v691 = vpack.c.bf16 %v665, %v664
      %v692 = vpack.c.bf16 %v667, %v666
      %v693 = vpack.c.bf16 %v669, %v668
      %v694 = vpack.c.bf16 %v671, %v670
      %v695 = vpack.c.bf16 %v673, %v672
      %v696 = vpack.c.bf16 %v675, %v674
      %v697 = vpack.c.bf16 %v677, %v676
      %v698 = vpack.c.bf16 %v679, %v678
      %v699 = vpack.c.bf16 %v681, %v680
      %v700 = vpack.c.bf16 %v683, %v682
      %v701 = vpack.c.bf16 %v685, %v684
      %v702 = vld [vmem:[%s6] sm:$0xf]
      %v703 = vld [vmem:[%s6 + $0x4] sm:$0xf]
      %v704 = vld [vmem:[%s6 + $0x8] sm:$0xf]
      %v705 = vld [vmem:[%s6 + $0xc] sm:$0xf]
      %v706 = vld [vmem:[%s6 + $0x10] sm:$0xf]
      %v707 = vld [vmem:[%s6 + $0x14] sm:$0xf]
      %v708 = vld [vmem:[%s6 + $0x18] sm:$0xf]
      %v709 = vld [vmem:[%s6 + $0x1c] sm:$0xf]
      %v710 = vld [vmem:[%s6 + $0x20] sm:$0xf]
      %v711 = vld [vmem:[%s6 + $0x24] sm:$0xf]
      %v712 = vld [vmem:[%s6 + $0x28] sm:$0xf]
      %v713 = vld [vmem:[%s6 + $0x2c] sm:$0xf]
      %v714 = vld [vmem:[%s6 + $0x30] sm:$0xf]
      %v715 = vld [vmem:[%s6 + $0x34] sm:$0xf]
      %v716 = vld [vmem:[%s6 + $0x38] sm:$0xf]
      %v717 = vld [vmem:[%s6 + $0x3c] sm:$0xf]
      %v718 = vld [vmem:[%s7] sm:$0x1]
      %v720 = vlaneseq
      %v721 = vshrl.u32 %v720, 7
      %v722 = vsub.s32 0, %v721
      %v723 = vrot.slane %v718, %v722
      %v741 = vunpack.c.l.b16 %v702
      %v742 = vunpack.c.l.b16 %v703
      %v743 = vunpack.c.l.b16 %v704
      %v744 = vunpack.c.l.b16 %v705
      %v745 = vunpack.c.l.b16 %v706
      %v746 = vunpack.c.l.b16 %v707
      %v747 = vunpack.c.l.b16 %v708
      %v748 = vunpack.c.l.b16 %v709
      %v749 = vunpack.c.l.b16 %v710
      %v750 = vunpack.c.l.b16 %v711
      %v751 = vunpack.c.l.b16 %v712
      %v752 = vunpack.c.l.b16 %v713
      %v753 = vunpack.c.l.b16 %v714
      %v754 = vunpack.c.l.b16 %v715
      %v755 = vunpack.c.l.b16 %v716
      %v756 = vunpack.c.l.b16 %v717
      %v757 = vpack.c.b16 %v742, %v741
      %v758 = vpack.c.b16 %v744, %v743
      %v759 = vpack.c.b16 %v746, %v745
      %v760 = vpack.c.b16 %v748, %v747
      %v761 = vpack.c.b16 %v750, %v749
      %v762 = vpack.c.b16 %v752, %v751
      %v763 = vpack.c.b16 %v754, %v753
      %v764 = vpack.c.b16 %v756, %v755
      %773 = vmatprep.subr.bf16.mxu0 0
      %774 = vmatpush1.bf16.msra.mxu0 %v757
      %775 = vmatprep.subr.bf16.mxu0 0
      %776 = vmatpush1.bf16.msra.mxu0 %v758
      %777 = vmatprep.subr.bf16.mxu0 0
      %778 = vmatpush1.bf16.msra.mxu0 %v759
      %779 = vmatprep.subr.bf16.mxu0 0
      %780 = vmatpush1.bf16.msra.mxu0 %v760
      %781 = vmatprep.subr.bf16.mxu0 0
      %782 = vmatpush1.bf16.msra.mxu0 %v761
      %783 = vmatprep.subr.bf16.mxu0 0
      %784 = vmatpush1.bf16.msra.mxu0 %v762
      %785 = vmatprep.subr.bf16.mxu0 0
      %786 = vmatpush1.bf16.msra.mxu0 %v763
      %787 = vmatprep.subr.bf16.mxu0 0
      %788 = vmatpush1.bf16.msra.mxu0 %v764
      %789 = vmatprep.subr.bf16.mxu0 0
      %790 = vmatpush1.bf16.msra.mxu0 0
      %791 = vmatprep.subr.bf16.mxu0 0
      %792 = vmatpush1.bf16.msra.mxu0 0
      %793 = vmatprep.subr.bf16.mxu0 0
      %794 = vmatpush1.bf16.msra.mxu0 0
      %795 = vmatprep.subr.bf16.mxu0 0
      %796 = vmatpush1.bf16.msra.mxu0 0
      %797 = vmatprep.subr.bf16.mxu0 0
      %798 = vmatpush1.bf16.msra.mxu0 0
      %799 = vmatprep.subr.bf16.mxu0 0
      %800 = vmatpush1.bf16.msra.mxu0 0
      %801 = vmatprep.subr.bf16.mxu0 0
      %802 = vmatpush1.bf16.msra.mxu0 0
      %803 = vmatprep.subr.bf16.mxu0 0
      %804 = vmatpush1.bf16.msra.mxu0 0
      %805 = vmatprep.mubr.bf16.mxu0 0
      %806 = vmatmul.mubr.bf16.gmra.mrb[0].mxu0 %v686
      %v807 = vpop.f32.mrb[0].mxu0
      %v808 = vadd.f32 %v723, %v807
      %v809 = vpop.f32.mrb[0].mxu0
      %v810 = vpop.f32.mrb[0].mxu0
      %v811 = vadd.f32 %v723, %v810
      %v812 = vpop.f32.mrb[0].mxu0
      %813 = vmatprep.mubr.bf16.mxu0 0
      %814 = vmatmul.mubr.bf16.gmra.mrb[0].mxu0 %v687
      %v815 = vpop.f32.mrb[0].mxu0
      %v816 = vadd.f32 %v723, %v815
      %v817 = vpop.f32.mrb[0].mxu0
      %v818 = vpop.f32.mrb[0].mxu0
      %v819 = vadd.f32 %v723, %v818
      %v820 = vpop.f32.mrb[0].mxu0
      %821 = vmatprep.mubr.bf16.mxu0 0
      %822 = vmatmul.mubr.bf16.gmra.mrb[0].mxu0 %v688
      %v823 = vpop.f32.mrb[0].mxu0
      %v824 = vadd.f32 %v723, %v823
      %v825 = vpop.f32.mrb[0].mxu0
      %v826 = vpop.f32.mrb[0].mxu0
      %v827 = vadd.f32 %v723, %v826
      %v828 = vpop.f32.mrb[0].mxu0
      %829 = vmatprep.mubr.bf16.mxu0 0
      %830 = vmatmul.mubr.bf16.gmra.mrb[0].mxu0 %v689
      %v831 = vpop.f32.mrb[0].mxu0
      %v832 = vadd.f32 %v723, %v831
      %v833 = vpop.f32.mrb[0].mxu0
      %v834 = vpop.f32.mrb[0].mxu0
      %v835 = vadd.f32 %v723, %v834
      %v836 = vpop.f32.mrb[0].mxu0
      %837 = vmatprep.mubr.bf16.mxu0 0
      %838 = vmatmul.mubr.bf16.gmra.mrb[0].mxu0 %v690
      %v839 = vpop.f32.mrb[0].mxu0
      %v840 = vadd.f32 %v723, %v839
      %v841 = vpop.f32.mrb[0].mxu0
      %v842 = vpop.f32.mrb[0].mxu0
      %v843 = vadd.f32 %v723, %v842
      %v844 = vpop.f32.mrb[0].mxu0
      %845 = vmatprep.mubr.bf16.mxu0 0
      %846 = vmatmul.mubr.bf16.gmra.mrb[0].mxu0 %v691
      %v847 = vpop.f32.mrb[0].mxu0
      %v848 = vadd.f32 %v723, %v847
      %v849 = vpop.f32.mrb[0].mxu0
      %v850 = vpop.f32.mrb[0].mxu0
      %v851 = vadd.f32 %v723, %v850
      %v852 = vpop.f32.mrb[0].mxu0
      %853 = vmatprep.mubr.bf16.mxu0 0
      %854 = vmatmul.mubr.bf16.gmra.mrb[0].mxu0 %v692
      %v855 = vpop.f32.mrb[0].mxu0
      %v856 = vadd.f32 %v723, %v855
      %v857 = vpop.f32.mrb[0].mxu0
      %v858 = vpop.f32.mrb[0].mxu0
      %v859 = vadd.f32 %v723, %v858
      %v860 = vpop.f32.mrb[0].mxu0
      %861 = vmatprep.mubr.bf16.mxu0 0
      %862 = vmatmul.mubr.bf16.gmra.mrb[0].mxu0 %v693
      %v863 = vpop.f32.mrb[0].mxu0
      %v864 = vadd.f32 %v723, %v863
      %v865 = vpop.f32.mrb[0].mxu0
      %v866 = vpop.f32.mrb[0].mxu0
      %v867 = vadd.f32 %v723, %v866
      %v868 = vpop.f32.mrb[0].mxu0
      %869 = vmatprep.mubr.bf16.mxu0 0
      %870 = vmatmul.mubr.bf16.gmra.mrb[0].mxu0 %v694
      %v871 = vpop.f32.mrb[0].mxu0
      %v872 = vadd.f32 %v723, %v871
      %v873 = vpop.f32.mrb[0].mxu0
      %v874 = vpop.f32.mrb[0].mxu0
      %v875 = vadd.f32 %v723, %v874
      %v876 = vpop.f32.mrb[0].mxu0
      %877 = vmatprep.mubr.bf16.mxu0 0
      %878 = vmatmul.mubr.bf16.gmra.mrb[0].mxu0 %v695
      %v879 = vpop.f32.mrb[0].mxu0
      %v880 = vadd.f32 %v723, %v879
      %v881 = vpop.f32.mrb[0].mxu0
      %v882 = vpop.f32.mrb[0].mxu0
      %v883 = vadd.f32 %v723, %v882
      %v884 = vpop.f32.mrb[0].mxu0
      %885 = vmatprep.mubr.bf16.mxu0 0
      %886 = vmatmul.mubr.bf16.gmra.mrb[0].mxu0 %v696
      %v887 = vpop.f32.mrb[0].mxu0
      %v888 = vadd.f32 %v723, %v887
      %v889 = vpop.f32.mrb[0].mxu0
      %v890 = vpop.f32.mrb[0].mxu0
      %v891 = vadd.f32 %v723, %v890
      %v892 = vpop.f32.mrb[0].mxu0
      %893 = vmatprep.mubr.bf16.mxu0 0
      %894 = vmatmul.mubr.bf16.gmra.mrb[0].mxu0 %v697
      %v895 = vpop.f32.mrb[0].mxu0
      %v896 = vadd.f32 %v723, %v895
      %v897 = vpop.f32.mrb[0].mxu0
      %v898 = vpop.f32.mrb[0].mxu0
      %v899 = vadd.f32 %v723, %v898
      %v900 = vpop.f32.mrb[0].mxu0
      %901 = vmatprep.mubr.bf16.mxu0 0
      %902 = vmatmul.mubr.bf16.gmra.mrb[0].mxu0 %v698
      %v903 = vpop.f32.mrb[0].mxu0
      %v904 = vadd.f32 %v723, %v903
      %v905 = vpop.f32.mrb[0].mxu0
      %v906 = vpop.f32.mrb[0].mxu0
      %v907 = vadd.f32 %v723, %v906
      %v908 = vpop.f32.mrb[0].mxu0
      %909 = vmatprep.mubr.bf16.mxu0 0
      %910 = vmatmul.mubr.bf16.gmra.mrb[0].mxu0 %v699
      %v911 = vpop.f32.mrb[0].mxu0
      %v912 = vadd.f32 %v723, %v911
      %v913 = vpop.f32.mrb[0].mxu0
      %v914 = vpop.f32.mrb[0].mxu0
      %v915 = vadd.f32 %v723, %v914
      %v916 = vpop.f32.mrb[0].mxu0
      %917 = vmatprep.mubr.bf16.mxu0 0
      %918 = vmatmul.mubr.bf16.gmra.mrb[0].mxu0 %v700
      %v919 = vpop.f32.mrb[0].mxu0
      %v920 = vadd.f32 %v723, %v919
      %v921 = vpop.f32.mrb[0].mxu0
      %v922 = vpop.f32.mrb[0].mxu0
      %v923 = vadd.f32 %v723, %v922
      %v924 = vpop.f32.mrb[0].mxu0
      %925 = vmatprep.mubr.bf16.mxu0 0
      %926 = vmatmul.mubr.bf16.gmra.mrb[0].mxu0 %v701
      %v927 = vpop.f32.mrb[0].mxu0
      %v928 = vadd.f32 %v723, %v927
      %v929 = vpop.f32.mrb[0].mxu0
      %v930 = vpop.f32.mrb[0].mxu0
      %v931 = vadd.f32 %v723, %v930
      %v932 = vpop.f32.mrb[0].mxu0
      %933 = vdwg.mxu0
      %v934 = vmul.f32 %v808, 0.5
      %v935 = vmul.f32 %v811, 0.5
      %v936 = vmul.f32 %v816, 0.5
      %v937 = vmul.f32 %v819, 0.5
      %v938 = vmul.f32 %v824, 0.5
      %v939 = vmul.f32 %v827, 0.5
      %v940 = vmul.f32 %v832, 0.5
      %v941 = vmul.f32 %v835, 0.5
      %v942 = vmul.f32 %v840, 0.5
      %v943 = vmul.f32 %v843, 0.5
      %v944 = vmul.f32 %v848, 0.5
      %v945 = vmul.f32 %v851, 0.5
      %v946 = vmul.f32 %v856, 0.5
      %v947 = vmul.f32 %v859, 0.5
      %v948 = vmul.f32 %v864, 0.5
      %v949 = vmul.f32 %v867, 0.5
      %v950 = vmul.f32 %v872, 0.5
      %v951 = vmul.f32 %v875, 0.5
      %v952 = vmul.f32 %v880, 0.5
      %v953 = vmul.f32 %v883, 0.5
      %v954 = vmul.f32 %v888, 0.5
      %v955 = vmul.f32 %v891, 0.5
      %v956 = vmul.f32 %v896, 0.5
      %v957 = vmul.f32 %v899, 0.5
      %v958 = vmul.f32 %v904, 0.5
      %v959 = vmul.f32 %v907, 0.5
      %v960 = vmul.f32 %v912, 0.5
      %v961 = vmul.f32 %v915, 0.5
      %v962 = vmul.f32 %v920, 0.5
      %v963 = vmul.f32 %v923, 0.5
      %v964 = vmul.f32 %v928, 0.5
      %v965 = vmul.f32 %v931, 0.5
      %v966 = vmul.f32 %v808, 0.70710677
      %v967 = vmul.f32 %v811, 0.70710677
      %v968 = vmul.f32 %v816, 0.70710677
      %v969 = vmul.f32 %v819, 0.70710677
      %v970 = vmul.f32 %v824, 0.70710677
      %v971 = vmul.f32 %v827, 0.70710677
      %v972 = vmul.f32 %v832, 0.70710677
      %v973 = vmul.f32 %v835, 0.70710677
      %v974 = vmul.f32 %v840, 0.70710677
      %v975 = vmul.f32 %v843, 0.70710677
      %v976 = vmul.f32 %v848, 0.70710677
      %v977 = vmul.f32 %v851, 0.70710677
      %v978 = vmul.f32 %v856, 0.70710677
      %v979 = vmul.f32 %v859, 0.70710677
      %v980 = vmul.f32 %v864, 0.70710677
      %v981 = vmul.f32 %v867, 0.70710677
      %v982 = vmul.f32 %v872, 0.70710677
      %v983 = vmul.f32 %v875, 0.70710677
      %v984 = vmul.f32 %v880, 0.70710677
      %v985 = vmul.f32 %v883, 0.70710677
      %v986 = vmul.f32 %v888, 0.70710677
      %v987 = vmul.f32 %v891, 0.70710677
      %v988 = vmul.f32 %v896, 0.70710677
      %v989 = vmul.f32 %v899, 0.70710677
      %v990 = vmul.f32 %v904, 0.70710677
      %v991 = vmul.f32 %v907, 0.70710677
      %v992 = vmul.f32 %v912, 0.70710677
      %v993 = vmul.f32 %v915, 0.70710677
      %v994 = vmul.f32 %v920, 0.70710677
      %v995 = vmul.f32 %v923, 0.70710677
      %v996 = vmul.f32 %v928, 0.70710677
      %v997 = vmul.f32 %v931, 0.70710677
      %v998 = verf.f32.pop %v966
      %v999 = verf.f32.pop %v967
      %v1000 = verf.f32.pop %v968
      %v1001 = verf.f32.pop %v969
      %v1002 = verf.f32.pop %v970
      %v1003 = verf.f32.pop %v971
      %v1004 = verf.f32.pop %v972
      %v1005 = verf.f32.pop %v973
      %v1006 = verf.f32.pop %v974
      %v1007 = verf.f32.pop %v975
      %v1008 = verf.f32.pop %v976
      %v1009 = verf.f32.pop %v977
      %v1010 = verf.f32.pop %v978
      %v1011 = verf.f32.pop %v979
      %v1012 = verf.f32.pop %v980
      %v1013 = verf.f32.pop %v981
      %v1014 = verf.f32.pop %v982
      %v1015 = verf.f32.pop %v983
      %v1016 = verf.f32.pop %v984
      %v1017 = verf.f32.pop %v985
      %v1018 = verf.f32.pop %v986
      %v1019 = verf.f32.pop %v987
      %v1020 = verf.f32.pop %v988
      %v1021 = verf.f32.pop %v989
      %v1022 = verf.f32.pop %v990
      %v1023 = verf.f32.pop %v991
      %v1024 = verf.f32.pop %v992
      %v1025 = verf.f32.pop %v993
      %v1026 = verf.f32.pop %v994
      %v1027 = verf.f32.pop %v995
      %v1028 = verf.f32.pop %v996
      %v1029 = verf.f32.pop %v997
      %v1030 = vadd.f32 %v998, 1.0
      %v1031 = vadd.f32 %v999, 1.0
      %v1032 = vadd.f32 %v1000, 1.0
      %v1033 = vadd.f32 %v1001, 1.0
      %v1034 = vadd.f32 %v1002, 1.0
      %v1035 = vadd.f32 %v1003, 1.0
      %v1036 = vadd.f32 %v1004, 1.0
      %v1037 = vadd.f32 %v1005, 1.0
      %v1038 = vadd.f32 %v1006, 1.0
      %v1039 = vadd.f32 %v1007, 1.0
      %v1040 = vadd.f32 %v1008, 1.0
      %v1041 = vadd.f32 %v1009, 1.0
      %v1042 = vadd.f32 %v1010, 1.0
      %v1043 = vadd.f32 %v1011, 1.0
      %v1044 = vadd.f32 %v1012, 1.0
      %v1045 = vadd.f32 %v1013, 1.0
      %v1046 = vadd.f32 %v1014, 1.0
      %v1047 = vadd.f32 %v1015, 1.0
      %v1048 = vadd.f32 %v1016, 1.0
      %v1049 = vadd.f32 %v1017, 1.0
      %v1050 = vadd.f32 %v1018, 1.0
      %v1051 = vadd.f32 %v1019, 1.0
      %v1052 = vadd.f32 %v1020, 1.0
      %v1053 = vadd.f32 %v1021, 1.0
      %v1054 = vadd.f32 %v1022, 1.0
      %v1055 = vadd.f32 %v1023, 1.0
      %v1056 = vadd.f32 %v1024, 1.0
      %v1057 = vadd.f32 %v1025, 1.0
      %v1058 = vadd.f32 %v1026, 1.0
      %v1059 = vadd.f32 %v1027, 1.0
      %v1060 = vadd.f32 %v1028, 1.0
      %v1061 = vadd.f32 %v1029, 1.0
      %v1062 = vmul.f32 %v934, %v1030
      %v1063 = vmul.f32 %v935, %v1031
      %v1064 = vmul.f32 %v936, %v1032
      %v1065 = vmul.f32 %v937, %v1033
      %v1066 = vmul.f32 %v938, %v1034
      %v1067 = vmul.f32 %v939, %v1035
      %v1068 = vmul.f32 %v940, %v1036
      %v1069 = vmul.f32 %v941, %v1037
      %v1070 = vmul.f32 %v942, %v1038
      %v1071 = vmul.f32 %v943, %v1039
      %v1072 = vmul.f32 %v944, %v1040
      %v1073 = vmul.f32 %v945, %v1041
      %v1074 = vmul.f32 %v946, %v1042
      %v1075 = vmul.f32 %v947, %v1043
      %v1076 = vmul.f32 %v948, %v1044
      %v1077 = vmul.f32 %v949, %v1045
      %v1078 = vmul.f32 %v950, %v1046
      %v1079 = vmul.f32 %v951, %v1047
      %v1080 = vmul.f32 %v952, %v1048
      %v1081 = vmul.f32 %v953, %v1049
      %v1082 = vmul.f32 %v954, %v1050
      %v1083 = vmul.f32 %v955, %v1051
      %v1084 = vmul.f32 %v956, %v1052
      %v1085 = vmul.f32 %v957, %v1053
      %v1086 = vmul.f32 %v958, %v1054
      %v1087 = vmul.f32 %v959, %v1055
      %v1088 = vmul.f32 %v960, %v1056
      %v1089 = vmul.f32 %v961, %v1057
      %v1090 = vmul.f32 %v962, %v1058
      %v1091 = vmul.f32 %v963, %v1059
      %v1092 = vmul.f32 %v964, %v1060
      %v1093 = vmul.f32 %v965, %v1061
      %v1094 = vpack.c.bf16 %v1063, %v1062
      %v1095 = vpack.c.bf16 %v1065, %v1064
      %v1096 = vpack.c.bf16 %v1067, %v1066
      %v1097 = vpack.c.bf16 %v1069, %v1068
      %v1098 = vpack.c.bf16 %v1071, %v1070
      %v1099 = vpack.c.bf16 %v1073, %v1072
      %v1100 = vpack.c.bf16 %v1075, %v1074
      %v1101 = vpack.c.bf16 %v1077, %v1076
      %v1102 = vpack.c.bf16 %v1079, %v1078
      %v1103 = vpack.c.bf16 %v1081, %v1080
      %v1104 = vpack.c.bf16 %v1083, %v1082
      %v1105 = vpack.c.bf16 %v1085, %v1084
      %v1106 = vpack.c.bf16 %v1087, %v1086
      %v1107 = vpack.c.bf16 %v1089, %v1088
      %v1108 = vpack.c.bf16 %v1091, %v1090
      %v1109 = vpack.c.bf16 %v1093, %v1092
      %v1126 = vunpack.c.l.b16 %v1094
      %v1127 = vunpack.c.h.b16 %v1094
      %v1128 = vunpack.c.l.b16 %v1095
      %v1129 = vunpack.c.h.b16 %v1095
      %v1130 = vunpack.c.l.b16 %v1096
      %v1131 = vunpack.c.h.b16 %v1096
      %v1132 = vunpack.c.l.b16 %v1097
      %v1133 = vunpack.c.h.b16 %v1097
      %v1134 = vunpack.c.l.b16 %v1098
      %v1135 = vunpack.c.h.b16 %v1098
      %v1136 = vunpack.c.l.b16 %v1099
      %v1137 = vunpack.c.h.b16 %v1099
      %v1138 = vunpack.c.l.b16 %v1100
      %v1139 = vunpack.c.h.b16 %v1100
      %v1140 = vunpack.c.l.b16 %v1101
      %v1141 = vunpack.c.h.b16 %v1101
      %v1142 = vunpack.c.l.b16 %v1102
      %v1143 = vunpack.c.h.b16 %v1102
      %v1144 = vunpack.c.l.b16 %v1103
      %v1145 = vunpack.c.h.b16 %v1103
      %v1146 = vunpack.c.l.b16 %v1104
      %v1147 = vunpack.c.h.b16 %v1104
      %v1148 = vunpack.c.l.b16 %v1105
      %v1149 = vunpack.c.h.b16 %v1105
      %v1150 = vunpack.c.l.b16 %v1106
      %v1151 = vunpack.c.h.b16 %v1106
      %v1152 = vunpack.c.l.b16 %v1107
      %v1153 = vunpack.c.h.b16 %v1107
      %v1154 = vunpack.c.l.b16 %v1108
      %v1155 = vunpack.c.h.b16 %v1108
      %v1156 = vunpack.c.l.b16 %v1109
      %v1157 = vunpack.c.h.b16 %v1109
      %v1158 = vpack.c.b16 %v1126, %v1126
      %v1159 = vpack.c.b16 %v1127, %v1127
      %v1160 = vpack.c.b16 %v1128, %v1128
      %v1161 = vpack.c.b16 %v1129, %v1129
      %v1162 = vpack.c.b16 %v1130, %v1130
      %v1163 = vpack.c.b16 %v1131, %v1131
      %v1164 = vpack.c.b16 %v1132, %v1132
      %v1165 = vpack.c.b16 %v1133, %v1133
      %v1166 = vpack.c.b16 %v1134, %v1134
      %v1167 = vpack.c.b16 %v1135, %v1135
      %v1168 = vpack.c.b16 %v1136, %v1136
      %v1169 = vpack.c.b16 %v1137, %v1137
      %v1170 = vpack.c.b16 %v1138, %v1138
      %v1171 = vpack.c.b16 %v1139, %v1139
      %v1172 = vpack.c.b16 %v1140, %v1140
      %v1173 = vpack.c.b16 %v1141, %v1141
      %v1174 = vpack.c.b16 %v1142, %v1142
      %v1175 = vpack.c.b16 %v1143, %v1143
      %v1176 = vpack.c.b16 %v1144, %v1144
      %v1177 = vpack.c.b16 %v1145, %v1145
      %v1178 = vpack.c.b16 %v1146, %v1146
      %v1179 = vpack.c.b16 %v1147, %v1147
      %v1180 = vpack.c.b16 %v1148, %v1148
      %v1181 = vpack.c.b16 %v1149, %v1149
      %v1182 = vpack.c.b16 %v1150, %v1150
      %v1183 = vpack.c.b16 %v1151, %v1151
      %v1184 = vpack.c.b16 %v1152, %v1152
      %v1185 = vpack.c.b16 %v1153, %v1153
      %v1186 = vpack.c.b16 %v1154, %v1154
      %v1187 = vpack.c.b16 %v1155, %v1155
      %v1188 = vpack.c.b16 %v1156, %v1156
      %v1189 = vpack.c.b16 %v1157, %v1157
      %1222 = vst [vmem:[%s363] sm:$0xf] %v1158
      %1223 = vst [vmem:[%s363 + $0x4] sm:$0xf] %v1159
      %1224 = vst [vmem:[%s363 + $0x8] sm:$0xf] %v1160
      %1225 = vst [vmem:[%s363 + $0xc] sm:$0xf] %v1161
      %1226 = vst [vmem:[%s363 + $0x10] sm:$0xf] %v1162
      %1227 = vst [vmem:[%s363 + $0x14] sm:$0xf] %v1163
      %1228 = vst [vmem:[%s363 + $0x18] sm:$0xf] %v1164
      %1229 = vst [vmem:[%s363 + $0x1c] sm:$0xf] %v1165
      %1230 = vst [vmem:[%s363 + $0x20] sm:$0xf] %v1166
      %1231 = vst [vmem:[%s363 + $0x24] sm:$0xf] %v1167
      %1232 = vst [vmem:[%s363 + $0x28] sm:$0xf] %v1168
      %1233 = vst [vmem:[%s363 + $0x2c] sm:$0xf] %v1169
      %1234 = vst [vmem:[%s363 + $0x30] sm:$0xf] %v1170
      %1235 = vst [vmem:[%s363 + $0x34] sm:$0xf] %v1171
      %1236 = vst [vmem:[%s363 + $0x38] sm:$0xf] %v1172
      %1237 = vst [vmem:[%s363 + $0x3c] sm:$0xf] %v1173
      %1238 = vst [vmem:[%s363 + $0x40] sm:$0xf] %v1174
      %1239 = vst [vmem:[%s363 + $0x44] sm:$0xf] %v1175
      %1240 = vst [vmem:[%s363 + $0x48] sm:$0xf] %v1176
      %1241 = vst [vmem:[%s363 + $0x4c] sm:$0xf] %v1177
      %1242 = vst [vmem:[%s363 + $0x50] sm:$0xf] %v1178
      %1243 = vst [vmem:[%s363 + $0x54] sm:$0xf] %v1179
      %1244 = vst [vmem:[%s363 + $0x58] sm:$0xf] %v1180
      %1245 = vst [vmem:[%s363 + $0x5c] sm:$0xf] %v1181
      %1246 = vst [vmem:[%s363 + $0x60] sm:$0xf] %v1182
      %1247 = vst [vmem:[%s363 + $0x64] sm:$0xf] %v1183
      %1248 = vst [vmem:[%s363 + $0x68] sm:$0xf] %v1184
      %1249 = vst [vmem:[%s363 + $0x6c] sm:$0xf] %v1185
      %1250 = vst [vmem:[%s363 + $0x70] sm:$0xf] %v1186
      %1251 = vst [vmem:[%s363 + $0x74] sm:$0xf] %v1187
      %1252 = vst [vmem:[%s363 + $0x78] sm:$0xf] %v1188
      %1253 = vst [vmem:[%s363 + $0x7c] sm:$0xf] %v1189
      %v1254 = vunpack.c.l.bf16 %v1094
      %v1255 = vunpack.c.h.bf16 %v1094
      %v1256 = vunpack.c.l.bf16 %v1095
      %v1257 = vunpack.c.h.bf16 %v1095
      %v1258 = vunpack.c.l.bf16 %v1096
      %v1259 = vunpack.c.h.bf16 %v1096
      %v1260 = vunpack.c.l.bf16 %v1097
      %v1261 = vunpack.c.h.bf16 %v1097
      %v1262 = vunpack.c.l.bf16 %v1098
      %v1263 = vunpack.c.h.bf16 %v1098
      %v1264 = vunpack.c.l.bf16 %v1099
      %v1265 = vunpack.c.h.bf16 %v1099
      %v1266 = vunpack.c.l.bf16 %v1100
      %v1267 = vunpack.c.h.bf16 %v1100
      %v1268 = vunpack.c.l.bf16 %v1101
      %v1269 = vunpack.c.h.bf16 %v1101
      %v1270 = vunpack.c.l.bf16 %v1102
      %v1271 = vunpack.c.h.bf16 %v1102
      %v1272 = vunpack.c.l.bf16 %v1103
      %v1273 = vunpack.c.h.bf16 %v1103
      %v1274 = vunpack.c.l.bf16 %v1104
      %v1275 = vunpack.c.h.bf16 %v1104
      %v1276 = vunpack.c.l.bf16 %v1105
      %v1277 = vunpack.c.h.bf16 %v1105
      %v1278 = vunpack.c.l.bf16 %v1106
      %v1279 = vunpack.c.h.bf16 %v1106
      %v1280 = vunpack.c.l.bf16 %v1107
      %v1281 = vunpack.c.h.bf16 %v1107
      %v1282 = vunpack.c.l.bf16 %v1108
      %v1283 = vunpack.c.h.bf16 %v1108
      %v1284 = vunpack.c.l.bf16 %v1109
      %v1285 = vunpack.c.h.bf16 %v1109
      %v1286 = vadd.f32 %v1254, %v1255
      %v1287 = vadd.f32 %v1286, %v1256
      %v1288 = vadd.f32 %v1287, %v1257
      %v1289 = vadd.f32 %v1288, %v1258
      %v1290 = vadd.f32 %v1289, %v1259
      %v1291 = vadd.f32 %v1290, %v1260
      %v1292 = vadd.f32 %v1291, %v1261
      %v1293 = vadd.f32 %v1292, %v1262
      %v1294 = vadd.f32 %v1293, %v1263
      %v1295 = vadd.f32 %v1294, %v1264
      %v1296 = vadd.f32 %v1295, %v1265
      %v1297 = vadd.f32 %v1296, %v1266
      %v1298 = vadd.f32 %v1297, %v1267
      %v1299 = vadd.f32 %v1298, %v1268
      %v1300 = vadd.f32 %v1299, %v1269
      %v1301 = vadd.f32 %v1300, %v1270
      %v1302 = vadd.f32 %v1301, %v1271
      %v1303 = vadd.f32 %v1302, %v1272
      %v1304 = vadd.f32 %v1303, %v1273
      %v1305 = vadd.f32 %v1304, %v1274
      %v1306 = vadd.f32 %v1305, %v1275
      %v1307 = vadd.f32 %v1306, %v1276
      %v1308 = vadd.f32 %v1307, %v1277
      %v1309 = vadd.f32 %v1308, %v1278
      %v1310 = vadd.f32 %v1309, %v1279
      %v1311 = vadd.f32 %v1310, %v1280
      %v1312 = vadd.f32 %v1311, %v1281
      %v1313 = vadd.f32 %v1312, %v1282
      %v1314 = vadd.f32 %v1313, %v1283
      %v1315 = vadd.f32 %v1314, %v1284
      %v1316 = vadd.f32 %v1315, %v1285
      %v1317 = vrot.slane %v1316, 4
      %v1318 = vadd.f32 %v1316, %v1317
      %v1319 = vrot.slane %v1318, 2
      %v1320 = vadd.f32 %v1318, %v1319
      %v1321 = vrot.slane %v1320, 1
      %v1322 = vadd.f32 %v1320, %v1321
      %v1323 = vmul.f32 %v1254, %v1254
      %v1324 = vmul.f32 %v1255, %v1255
      %v1325 = vmul.f32 %v1256, %v1256
      %v1326 = vmul.f32 %v1257, %v1257
      %v1327 = vmul.f32 %v1258, %v1258
      %v1328 = vmul.f32 %v1259, %v1259
      %v1329 = vmul.f32 %v1260, %v1260
      %v1330 = vmul.f32 %v1261, %v1261
      %v1331 = vmul.f32 %v1262, %v1262
      %v1332 = vmul.f32 %v1263, %v1263
      %v1333 = vmul.f32 %v1264, %v1264
      %v1334 = vmul.f32 %v1265, %v1265
      %v1335 = vmul.f32 %v1266, %v1266
      %v1336 = vmul.f32 %v1267, %v1267
      %v1337 = vmul.f32 %v1268, %v1268
      %v1338 = vmul.f32 %v1269, %v1269
      %v1339 = vmul.f32 %v1270, %v1270
      %v1340 = vmul.f32 %v1271, %v1271
      %v1341 = vmul.f32 %v1272, %v1272
      %v1342 = vmul.f32 %v1273, %v1273
      %v1343 = vmul.f32 %v1274, %v1274
      %v1344 = vmul.f32 %v1275, %v1275
      %v1345 = vmul.f32 %v1276, %v1276
      %v1346 = vmul.f32 %v1277, %v1277
      %v1347 = vmul.f32 %v1278, %v1278
      %v1348 = vmul.f32 %v1279, %v1279
      %v1349 = vmul.f32 %v1280, %v1280
      %v1350 = vmul.f32 %v1281, %v1281
      %v1351 = vmul.f32 %v1282, %v1282
      %v1352 = vmul.f32 %v1283, %v1283
      %v1353 = vmul.f32 %v1284, %v1284
      %v1354 = vmul.f32 %v1285, %v1285
      %v1355 = vadd.f32 %v1323, %v1324
      %v1356 = vadd.f32 %v1355, %v1325
      %v1357 = vadd.f32 %v1356, %v1326
      %v1358 = vadd.f32 %v1357, %v1327
      %v1359 = vadd.f32 %v1358, %v1328
      %v1360 = vadd.f32 %v1359, %v1329
      %v1361 = vadd.f32 %v1360, %v1330
      %v1362 = vadd.f32 %v1361, %v1331
      %v1363 = vadd.f32 %v1362, %v1332
      %v1364 = vadd.f32 %v1363, %v1333
      %v1365 = vadd.f32 %v1364, %v1334
      %v1366 = vadd.f32 %v1365, %v1335
      %v1367 = vadd.f32 %v1366, %v1336
      %v1368 = vadd.f32 %v1367, %v1337
      %v1369 = vadd.f32 %v1368, %v1338
      %v1370 = vadd.f32 %v1369, %v1339
      %v1371 = vadd.f32 %v1370, %v1340
      %v1372 = vadd.f32 %v1371, %v1341
      %v1373 = vadd.f32 %v1372, %v1342
      %v1374 = vadd.f32 %v1373, %v1343
      %v1375 = vadd.f32 %v1374, %v1344
      %v1376 = vadd.f32 %v1375, %v1345
      %v1377 = vadd.f32 %v1376, %v1346
      %v1378 = vadd.f32 %v1377, %v1347
      %v1379 = vadd.f32 %v1378, %v1348
      %v1380 = vadd.f32 %v1379, %v1349
      %v1381 = vadd.f32 %v1380, %v1350
      %v1382 = vadd.f32 %v1381, %v1351
      %v1383 = vadd.f32 %v1382, %v1352
      %v1384 = vadd.f32 %v1383, %v1353
      %v1385 = vadd.f32 %v1384, %v1354
      %v1386 = vrot.slane %v1385, 4
      %v1387 = vadd.f32 %v1385, %v1386
      %v1388 = vrot.slane %v1387, 2
      %v1389 = vadd.f32 %v1387, %v1388
      %v1390 = vrot.slane %v1389, 1
      %v1391 = vadd.f32 %v1389, %v1390
      %vm1392 = vcmask 1040384
      %v1393 = vsel %vm1392, %v1322, %v1391
      %1394 = vst [vmem:[%s368] sm:$0x3] %v1393
      %s1395 = smul.u32 32, %s21
      %p1396 = scmp.lt.s32.totalorder %s1395, 63
      %s1397 = scalar_select %p1396, %s1395, 63
      %s1398 = smul.addr %s1397, 4
      %s1399 = scalar_lea.vmem %s8, %s1398
      %p1400 = scmp.lt.s32.totalorder %s21, 1
      %s1401 = scalar_select %p1400, %s21, 1
      %s1402 = smul.addr %s1401, 2
      %s1403 = scalar_lea.vmem %s9, %s1402
      // Predicated region
      $region53: #{conv_mixer_forward.8} parent=51 // pred_check
        %p1404 = pneg %p217
      $region54: #{conv_mixer_forward.8} parent=51 // pred_check_branch
        %1406 = sbr.rel (%p1404) target = $region56
      $region55: #{conv_mixer_forward.8} parent=51 // pred_region
        %s1407 = smul.u32 32, %s21
      $region56: #{conv_mixer_forward.8} parent=51 // pred_fallthru
        _
      // Predicated region
      $region57: #{conv_mixer_forward.8} parent=51 // pred_check
        %p1408 = pneg %p243
      $region58: #{conv_mixer_forward.8} parent=51 // pred_check_branch
        %1410 = sbr.rel (%p1408) target = $region60
      $region59: #{conv_mixer_forward.8} parent=51 // pred_region
        _
      $region60: #{conv_mixer_forward.8} parent=51 // pred_fallthru
        _
    $region52: #{conv_mixer_forward.8} parent=5 // pred_fallthru
      _
    %p1411 = scmp.le.s32.totalorder 2, %s16
    // Predicated region
    $region61: #{conv_mixer_forward.8} parent=5 // pred_check
      %p1412 = pneg %p1411
    $region62: #{conv_mixer_forward.8} parent=5 // pred_check_branch
      %1414 = sbr.rel (%p1412) target = $region64
    $region63: #{conv_mixer_forward.8} parent=5 // pred_region
      %s1415 = ssub.s32 %s16, 2
      // Predicated region
      $region65: #{conv_mixer_forward.8} parent=63 // pred_check
        %p1416 = pneg %p223
      $region66: #{conv_mixer_forward.8} parent=63 // pred_check_branch
        %1418 = sbr.rel (%p1416) target = $region68
      $region67: #{conv_mixer_forward.8} parent=63 // pred_region
        %s1419 = smul.u32 32, %s22
        %p1420 = scmp.lt.s32.totalorder %s1419, 63
        %s1421 = scalar_select %p1420, %s1419, 63
        %s1422 = smul.addr %s1421, 4
        %s1423 = scalar_lea.vmem %s8, %s1422
      $region68: #{conv_mixer_forward.8} parent=63 // pred_fallthru
        _
      // Predicated region
      $region69: #{conv_mixer_forward.8} parent=63 // pred_check
        %p1424 = pneg %p249
      $region70: #{conv_mixer_forward.8} parent=63 // pred_check_branch
        %1426 = sbr.rel (%p1424) target = $region72
      $region71: #{conv_mixer_forward.8} parent=63 // pred_region
        %p1427 = scmp.lt.s32.totalorder %s22, 1
        %s1428 = scalar_select %p1427, %s22, 1
        %s1429 = smul.addr %s1428, 2
        %s1430 = scalar_lea.vmem %s9, %s1429
      $region72: #{conv_mixer_forward.8} parent=63 // pred_fallthru
        _
    $region64: #{conv_mixer_forward.8} parent=5 // pred_fallthru
      _
  $region6: #{conv_mixer_forward.8} parent=0 // loop_footer
    %s20 = sadd.s32 1, %s16
  $region7: #{conv_mixer_forward.8} parent=0 // loop_footer_branch
    %15 = sbr.rel target = $region3
  $region8: #{conv_mixer_forward.8} parent=0 // loop_exit
    _

// kernel: conv_mixer_forward.7
$region0: #{conv_mixer_forward.7}
  #allocation0 [shape = 'u32[]', space=smem, size = 0x4, offset = 0x4, fixed_abs, tag = 'smem constant byte address 0x4 - core index']
  #allocation1 [shape = 'u32[144,128]{1,0:T(1,128)}', space=vmem, size = 0x12000, scoped, tag = 'internal scratch']
  #allocation2 [shape = 'f32[16,16,128]{2,1,0:T(8,128)}', space=vmem, size = 0x20000, scoped, tag = 'scratch operand']
  %s0 = inlined_call_operand.vmem [shape: bf16[2,16,16,128], index: 0, kind: input, shape index: {}]
  %s1 = inlined_call_operand.vmem [shape: f32[1,128], index: 1, kind: input, shape index: {}]
  %s2 = inlined_call_operand.vmem [shape: f32[1,128], index: 2, kind: input, shape index: {}]
  %s3 = inlined_call_operand.vmem [shape: f32[3,3,128], index: 3, kind: input, shape index: {}]
  %s4 = inlined_call_operand.vmem [shape: f32[1,128], index: 4, kind: input, shape index: {}]
  %s5 = inlined_call_operand.vmem [shape: bf16[2,16,16,128], index: 5, kind: output, shape index: {0}]
  %s6 = inlined_call_operand.vmem [shape: f32[2,2,128], index: 6, kind: output, shape index: {1}]
  %7 = xla_tuple %s5, %s6
  %s8 = sld [smem:[#allocation0]]
  $region61: #{conv_mixer_forward.7} parent=0
    _
  %s10 = ssub.s32 1, %s8
  %s11 = scalar_select 0, %s10, %s8
  loop: start=0, step=1, limit=4
  $region2: #{conv_mixer_forward.7} parent=0 // loop_pre_header
    _
  $region3: #{conv_mixer_forward.7} parent=0 // loop_header
    %s13 = sphi 0, %s17
    %p14 = scmp.ge.s32.totalorder %s13, 4
    %s23 = sphi 0, %s25
    %s26 = sphi 0, %s23
    %s27 = sphi 0, %s26
    %s43 = sphi 0, %s27
    %s47 = sphi 0, %s47
    %s49 = sphi 0, %s47
    %s50 = sphi 0, %s49
    %s64 = sphi 0, %s50
    %s68 = sphi 0, %s68
    %s70 = sphi 0, %s68
    %s71 = sphi 0, %s70
    %s85 = sphi 0, %s71
    %s89 = sphi 0, %s89
    %s91 = sphi 0, %s89
    %s92 = sphi 0, %s91
    %s106 = sphi 0, %s92
    %s110 = sphi 0, %s110
    %s112 = sphi 0, %s110
    %s113 = sphi 0, %s112
    %s127 = sphi 0, %s113
    %s133 = sphi 0, %s135
    %s136 = sphi 0, %s133
    %s137 = sphi 0, %s136
    %s153 = sphi 0, %s137
    %s159 = sphi 0, %s161
    %s162 = sphi 0, %s159
    %s163 = sphi 0, %s162
    %s179 = sphi 0, %s163
  $region4: #{conv_mixer_forward.7} parent=0 // loop_header_branch
    %16 = sbr.rel (%p14) target = $region8
  $region5: #{conv_mixer_forward.7} parent=0 // loop_body
    %s18 = ssub.s32 %s13, 1
    %s19 = ssub.s32 %s13, 2
    %s20 = sadd.s32 %s13, 1
    %s21 = ssub.s32 %s13, %s20
    %p22 = scmp.eq.s32.totalorder %s21, 0
    %s24 = sadd.s32 %s23, 1
    %s25 = scalar_select %p22, %s23, %s24
    %p28 = pneg %p22
    %p29 = scmp.eq.s32.totalorder %s13, 1
    %p30 = por %p28, %p29
    %p31 = scmp.ne.s32.totalorder %s23, %s26
    %p32 = scmp.eq.s32.totalorder %s13, 0
    %p33 = por %p31, %p32
    %p34 = scmp.ne.s32.totalorder %s23, %s26
    %p35 = scmp.eq.s32.totalorder %s18, 1
    %p36 = por %p34, %p35
    %p37 = scmp.ne.s32.totalorder %s26, %s27
    %p38 = scmp.eq.s32.totalorder %s18, 0
    %p39 = por %p37, %p38
    %p40 = scmp.ne.s32.totalorder %s26, %s27
    %p41 = scmp.eq.s32.totalorder %s19, 1
    %p42 = por %p40, %p41
    %p44 = scmp.ne.s32.totalorder %s27, %s43
    %p45 = scmp.eq.s32.totalorder %s19, 0
    %p46 = por %p44, %p45
    %s48 = sadd.s32 %s47, 1
    %p51 = scmp.eq.s32.totalorder %s13, 1
    %p52 = scmp.ne.s32.totalorder %s47, %s49
    %p53 = scmp.eq.s32.totalorder %s13, 0
    %p54 = por %p52, %p53
    %p55 = scmp.ne.s32.totalorder %s47, %s49
    %p56 = scmp.eq.s32.totalorder %s18, 1
    %p57 = por %p55, %p56
    %p58 = scmp.ne.s32.totalorder %s49, %s50
    %p59 = scmp.eq.s32.totalorder %s18, 0
    %p60 = por %p58, %p59
    %p61 = scmp.ne.s32.totalorder %s49, %s50
    %p62 = scmp.eq.s32.totalorder %s19, 1
    %p63 = por %p61, %p62
    %p65 = scmp.ne.s32.totalorder %s50, %s64
    %p66 = scmp.eq.s32.totalorder %s19, 0
    %p67 = por %p65, %p66
    %s69 = sadd.s32 %s68, 1
    %p72 = scmp.eq.s32.totalorder %s13, 1
    %p73 = scmp.ne.s32.totalorder %s68, %s70
    %p74 = scmp.eq.s32.totalorder %s13, 0
    %p75 = por %p73, %p74
    %p76 = scmp.ne.s32.totalorder %s68, %s70
    %p77 = scmp.eq.s32.totalorder %s18, 1
    %p78 = por %p76, %p77
    %p79 = scmp.ne.s32.totalorder %s70, %s71
    %p80 = scmp.eq.s32.totalorder %s18, 0
    %p81 = por %p79, %p80
    %p82 = scmp.ne.s32.totalorder %s70, %s71
    %p83 = scmp.eq.s32.totalorder %s19, 1
    %p84 = por %p82, %p83
    %p86 = scmp.ne.s32.totalorder %s71, %s85
    %p87 = scmp.eq.s32.totalorder %s19, 0
    %p88 = por %p86, %p87
    %s90 = sadd.s32 %s89, 1
    %p93 = scmp.eq.s32.totalorder %s13, 1
    %p94 = scmp.ne.s32.totalorder %s89, %s91
    %p95 = scmp.eq.s32.totalorder %s13, 0
    %p96 = por %p94, %p95
    %p97 = scmp.ne.s32.totalorder %s89, %s91
    %p98 = scmp.eq.s32.totalorder %s18, 1
    %p99 = por %p97, %p98
    %p100 = scmp.ne.s32.totalorder %s91, %s92
    %p101 = scmp.eq.s32.totalorder %s18, 0
    %p102 = por %p100, %p101
    %p103 = scmp.ne.s32.totalorder %s91, %s92
    %p104 = scmp.eq.s32.totalorder %s19, 1
    %p105 = por %p103, %p104
    %p107 = scmp.ne.s32.totalorder %s92, %s106
    %p108 = scmp.eq.s32.totalorder %s19, 0
    %p109 = por %p107, %p108
    %s111 = sadd.s32 %s110, 1
    %p114 = scmp.eq.s32.totalorder %s13, 1
    %p115 = scmp.ne.s32.totalorder %s110, %s112
    %p116 = scmp.eq.s32.totalorder %s13, 0
    %p117 = por %p115, %p116
    %p118 = scmp.ne.s32.totalorder %s110, %s112
    %p119 = scmp.eq.s32.totalorder %s18, 1
    %p120 = por %p118, %p119
    %p121 = scmp.ne.s32.totalorder %s112, %s113
    %p122 = scmp.eq.s32.totalorder %s18, 0
    %p123 = por %p121, %p122
    %p124 = scmp.ne.s32.totalorder %s112, %s113
    %p125 = scmp.eq.s32.totalorder %s19, 1
    %p126 = por %p124, %p125
    %p128 = scmp.ne.s32.totalorder %s113, %s127
    %p129 = scmp.eq.s32.totalorder %s19, 0
    %p130 = por %p128, %p129
    %s131 = ssub.s32 %s13, %s20
    %p132 = scmp.eq.s32.totalorder %s131, 0
    %s134 = sadd.s32 %s133, 1
    %s135 = scalar_select %p132, %s133, %s134
    %p138 = pneg %p132
    %p139 = scmp.eq.s32.totalorder %s13, 1
    %p140 = por %p138, %p139
    %p141 = scmp.ne.s32.totalorder %s133, %s136
    %p142 = scmp.eq.s32.totalorder %s13, 0
    %p143 = por %p141, %p142
    %p144 = scmp.ne.s32.totalorder %s133, %s136
    %p145 = scmp.eq.s32.totalorder %s18, 1
    %p146 = por %p144, %p145
    %p147 = scmp.ne.s32.totalorder %s136, %s137
    %p148 = scmp.eq.s32.totalorder %s18, 0
    %p149 = por %p147, %p148
    %p150 = scmp.ne.s32.totalorder %s136, %s137
    %p151 = scmp.eq.s32.totalorder %s19, 1
    %p152 = por %p150, %p151
    %p154 = scmp.ne.s32.totalorder %s137, %s153
    %p155 = scmp.eq.s32.totalorder %s19, 0
    %p156 = por %p154, %p155
    %s157 = ssub.s32 %s13, %s20
    %p158 = scmp.eq.s32.totalorder %s157, 0
    %s160 = sadd.s32 %s159, 1
    %s161 = scalar_select %p158, %s159, %s160
    %p164 = pneg %p158
    %p165 = scmp.eq.s32.totalorder %s13, 1
    %p166 = por %p164, %p165
    %p167 = scmp.ne.s32.totalorder %s159, %s162
    %p168 = scmp.eq.s32.totalorder %s13, 0
    %p169 = por %p167, %p168
    %p170 = scmp.ne.s32.totalorder %s159, %s162
    %p171 = scmp.eq.s32.totalorder %s18, 1
    %p172 = por %p170, %p171
    %p173 = scmp.ne.s32.totalorder %s162, %s163
    %p174 = scmp.eq.s32.totalorder %s18, 0
    %p175 = por %p173, %p174
    %p176 = scmp.ne.s32.totalorder %s162, %s163
    %p177 = scmp.eq.s32.totalorder %s19, 1
    %p178 = por %p176, %p177
    %p180 = scmp.ne.s32.totalorder %s163, %s179
    %p181 = scmp.eq.s32.totalorder %s19, 0
    %p182 = por %p180, %p181
    %p183 = scmp.le.s32.totalorder 1, %s13
    %p184 = scmp.lt.s32.totalorder %s13, 3
    %p185 = pnand %p183, %p184
    %p186 = pneg %p185
    // Predicated region
    $region9: #{conv_mixer_forward.7} parent=5 // pred_check
      _
    $region10: #{conv_mixer_forward.7} parent=5 // pred_check_branch
      %188 = sbr.rel (%p185) target = $region12
    $region11: #{conv_mixer_forward.7} parent=5 // pred_region
      %s189 = ssub.s32 %s13, 1
      // Predicated region
      $region13: #{conv_mixer_forward.7} parent=11 // pred_check
        %p190 = pneg %p60
      $region14: #{conv_mixer_forward.7} parent=11 // pred_check_branch
        %192 = sbr.rel (%p190) target = $region16
      $region15: #{conv_mixer_forward.7} parent=11 // pred_region
        _
      $region16: #{conv_mixer_forward.7} parent=11 // pred_fallthru
        _
      // Predicated region
      $region17: #{conv_mixer_forward.7} parent=11 // pred_check
        %p193 = pneg %p81
      $region18: #{conv_mixer_forward.7} parent=11 // pred_check_branch
        %195 = sbr.rel (%p193) target = $region20
      $region19: #{conv_mixer_forward.7} parent=11 // pred_region
        _
      $region20: #{conv_mixer_forward.7} parent=11 // pred_fallthru
        _
      // Predicated region
      $region21: #{conv_mixer_forward.7} parent=11 // pred_check
        %p196 = pneg %p102
      $region22: #{conv_mixer_forward.7} parent=11 // pred_check_branch
        %198 = sbr.rel (%p196) target = $region24
      $region23: #{conv_mixer_forward.7} parent=11 // pred_region
        _
      $region24: #{conv_mixer_forward.7} parent=11 // pred_fallthru
        _
      // Predicated region
      $region25: #{conv_mixer_forward.7} parent=11 // pred_check
        %p199 = pneg %p123
      $region26: #{conv_mixer_forward.7} parent=11 // pred_check_branch
        %201 = sbr.rel (%p199) target = $region28
      $region27: #{conv_mixer_forward.7} parent=11 // pred_region
        _
      $region28: #{conv_mixer_forward.7} parent=11 // pred_fallthru
        _
    $region12: #{conv_mixer_forward.7} parent=5 // pred_fallthru
      _
    %p202 = scmp.lt.s32.totalorder %s13, 2
    // Predicated region
    $region29: #{conv_mixer_forward.7} parent=5 // pred_check
      %p203 = pneg %p202
    $region30: #{conv_mixer_forward.7} parent=5 // pred_check_branch
      %205 = sbr.rel (%p203) target = $region32
    $region31: #{conv_mixer_forward.7} parent=5 // pred_region
      // Predicated region
      $region33: #{conv_mixer_forward.7} parent=31 // pred_check
        %p206 = pneg %p33
      $region34: #{conv_mixer_forward.7} parent=31 // pred_check_branch
        %208 = sbr.rel (%p206) target = $region36
      $region35: #{conv_mixer_forward.7} parent=31 // pred_region
        %p209 = scmp.lt.s32.totalorder %s13, 1
        %s210 = scalar_select %p209, %s13, 1
        %s211 = smul.addr %s210, 32
        %s212 = smul.addr %s211, 4
        %s213 = scalar_lea.vmem %s0, %s212
      $region36: #{conv_mixer_forward.7} parent=31 // pred_fallthru
        _
    $region32: #{conv_mixer_forward.7} parent=5 // pred_fallthru
      _
    %p214 = scmp.le.s32.totalorder 1, %s13
    %p215 = scmp.lt.s32.totalorder %s13, 3
    %p216 = pnand %p214, %p215
    %p217 = pneg %p216
    // Predicated region
    $region37: #{conv_mixer_forward.7} parent=5 // pred_check
      _
    $region38: #{conv_mixer_forward.7} parent=5 // pred_check_branch
      %219 = sbr.rel (%p216) target = $region40
    $region39: #{conv_mixer_forward.7} parent=5 // pred_region
      %s220 = ssub.s32 %s13, 1
      %p221 = scmp.lt.s32.totalorder %s18, 1
      %s222 = scalar_select %p221, %s18, 1
      %s223 = smul.addr %s222, 32
      %s224 = smul.addr %s223, 4
      %s225 = scalar_lea.vmem %s0, %s224
      %p226 = pneg %p39
      %p227 = pneg %p36
      %p228 = pneg %p60
      %p229 = pneg %p57
      %p230 = pneg %p81
      %p231 = pneg %p78
      %p232 = pneg %p102
      %p233 = pneg %p99
      %p234 = pneg %p123
      %p235 = pneg %p120
      %p236 = pneg %p149
      %p237 = pneg %p146
      %p238 = scmp.lt.s32.totalorder %s18, 1
      %s239 = scalar_select %p238, %s18, 1
      %s240 = smul.addr %s239, 32
      %s241 = smul.addr %s240, 4
      %s242 = scalar_lea.vmem %s5, %s241
      %p243 = pneg %p175
      %p244 = pneg %p172
      %p245 = scmp.lt.s32.totalorder %s18, 1
      %s246 = scalar_select %p245, %s18, 1
      %s247 = smul.addr %s246, 2
      %s248 = scalar_lea.vmem %s6, %s247
      %p249 = scmp.lt.s32.totalorder %s18, 1
      %s250 = scalar_select %p249, %s18, 1
      %s251 = smul.addr %s250, 32
      %s252 = smul.addr %s251, 4
      %s253 = scalar_lea.vmem %s0, %s252
      %p254 = scmp.lt.s32.totalorder %s18, 1
      %s255 = scalar_select %p254, %s18, 1
      %s256 = smul.addr %s255, 32
      %s257 = smul.addr %s256, 4
      %s258 = scalar_lea.vmem %s5, %s257
      %p259 = scmp.lt.s32.totalorder %s18, 1
      %s260 = scalar_select %p259, %s18, 1
      %s261 = smul.addr %s260, 2
      %s262 = scalar_lea.vmem %s6, %s261
      %v264 = vld [vmem:[%s3] sm:$0x7]
      %v265 = vld [vmem:[%s3 + $0x4] sm:$0x7]
      %v266 = vld [vmem:[%s3 + $0x8] sm:$0x7]
      %v267 = vld [vmem:[%s253] sm:$0xf]
      %v268 = vld [vmem:[%s253 + $0x4] sm:$0xf]
      %v269 = vld [vmem:[%s253 + $0x8] sm:$0xf]
      %v270 = vld [vmem:[%s253 + $0xc] sm:$0xf]
      %v271 = vld [vmem:[%s253 + $0x10] sm:$0xf]
      %v272 = vld [vmem:[%s253 + $0x14] sm:$0xf]
      %v273 = vld [vmem:[%s253 + $0x18] sm:$0xf]
      %v274 = vld [vmem:[%s253 + $0x1c] sm:$0xf]
      %v275 = vld [vmem:[%s253 + $0x20] sm:$0xf]
      %v276 = vld [vmem:[%s253 + $0x24] sm:$0xf]
      %v277 = vld [vmem:[%s253 + $0x28] sm:$0xf]
      %v278 = vld [vmem:[%s253 + $0x2c] sm:$0xf]
      %v279 = vld [vmem:[%s253 + $0x30] sm:$0xf]
      %v280 = vld [vmem:[%s253 + $0x34] sm:$0xf]
      %v281 = vld [vmem:[%s253 + $0x38] sm:$0xf]
      %v282 = vld [vmem:[%s253 + $0x3c] sm:$0xf]
      %v283 = vld [vmem:[%s253 + $0x40] sm:$0xf]
      %v284 = vld [vmem:[%s253 + $0x44] sm:$0xf]
      %v285 = vld [vmem:[%s253 + $0x48] sm:$0xf]
      %v286 = vld [vmem:[%s253 + $0x4c] sm:$0xf]
      %v287 = vld [vmem:[%s253 + $0x50] sm:$0xf]
      %v288 = vld [vmem:[%s253 + $0x54] sm:$0xf]
      %v289 = vld [vmem:[%s253 + $0x58] sm:$0xf]
      %v290 = vld [vmem:[%s253 + $0x5c] sm:$0xf]
      %v291 = vld [vmem:[%s253 + $0x60] sm:$0xf]
      %v292 = vld [vmem:[%s253 + $0x64] sm:$0xf]
      %v293 = vld [vmem:[%s253 + $0x68] sm:$0xf]
      %v294 = vld [vmem:[%s253 + $0x6c] sm:$0xf]
      %v295 = vld [vmem:[%s253 + $0x70] sm:$0xf]
      %v296 = vld [vmem:[%s253 + $0x74] sm:$0xf]
      %v297 = vld [vmem:[%s253 + $0x78] sm:$0xf]
      %v298 = vld [vmem:[%s253 + $0x7c] sm:$0xf]
      %v299 = vunpack.c.l.bf16 %v267
      %v300 = vunpack.c.l.bf16 %v268
      %v301 = vunpack.c.l.bf16 %v269
      %v302 = vunpack.c.l.bf16 %v270
      %v303 = vunpack.c.l.bf16 %v271
      %v304 = vunpack.c.l.bf16 %v272
      %v305 = vunpack.c.l.bf16 %v273
      %v306 = vunpack.c.l.bf16 %v274
      %v307 = vunpack.c.l.bf16 %v275
      %v308 = vunpack.c.l.bf16 %v276
      %v309 = vunpack.c.l.bf16 %v277
      %v310 = vunpack.c.l.bf16 %v278
      %v311 = vunpack.c.l.bf16 %v279
      %v312 = vunpack.c.l.bf16 %v280
      %v313 = vunpack.c.l.bf16 %v281
      %v314 = vunpack.c.l.bf16 %v282
      %v315 = vunpack.c.l.bf16 %v283
      %v316 = vunpack.c.l.bf16 %v284
      %v317 = vunpack.c.l.bf16 %v285
      %v318 = vunpack.c.l.bf16 %v286
      %v319 = vunpack.c.l.bf16 %v287
      %v320 = vunpack.c.l.bf16 %v288
      %v321 = vunpack.c.l.bf16 %v289
      %v322 = vunpack.c.l.bf16 %v290
      %v323 = vunpack.c.l.bf16 %v291
      %v324 = vunpack.c.l.bf16 %v292
      %v325 = vunpack.c.l.bf16 %v293
      %v326 = vunpack.c.l.bf16 %v294
      %v327 = vunpack.c.l.bf16 %v295
      %v328 = vunpack.c.l.bf16 %v296
      %v329 = vunpack.c.l.bf16 %v297
      %v330 = vunpack.c.l.bf16 %v298
      %v331 = vld [vmem:[%s1] sm:$0x1]
      %v333 = vlaneseq
      %v334 = vshrl.u32 %v333, 7
      %v335 = vsub.s32 0, %v334
      %v336 = vrot.slane %v331, %v335
      %v338 = vmul.f32 %v299, %v336
      %v339 = vmul.f32 %v300, %v336
      %v340 = vmul.f32 %v301, %v336
      %v341 = vmul.f32 %v302, %v336
      %v342 = vmul.f32 %v303, %v336
      %v343 = vmul.f32 %v304, %v336
      %v344 = vmul.f32 %v305, %v336
      %v345 = vmul.f32 %v306, %v336
      %v346 = vmul.f32 %v307, %v336
      %v347 = vmul.f32 %v308, %v336
      %v348 = vmul.f32 %v309, %v336
      %v349 = vmul.f32 %v310, %v336
      %v350 = vmul.f32 %v311, %v336
      %v351 = vmul.f32 %v312, %v336
      %v352 = vmul.f32 %v313, %v336
      %v353 = vmul.f32 %v314, %v336
      %v354 = vmul.f32 %v315, %v336
      %v355 = vmul.f32 %v316, %v336
      %v356 = vmul.f32 %v317, %v336
      %v357 = vmul.f32 %v318, %v336
      %v358 = vmul.f32 %v319, %v336
      %v359 = vmul.f32 %v320, %v336
      %v360 = vmul.f32 %v321, %v336
      %v361 = vmul.f32 %v322, %v336
      %v362 = vmul.f32 %v323, %v336
      %v363 = vmul.f32 %v324, %v336
      %v364 = vmul.f32 %v325, %v336
      %v365 = vmul.f32 %v326, %v336
      %v366 = vmul.f32 %v327, %v336
      %v367 = vmul.f32 %v328, %v336
      %v368 = vmul.f32 %v329, %v336
      %v369 = vmul.f32 %v330, %v336
      %v370 = vld [vmem:[%s2] sm:$0x1]
      %v372 = vlaneseq
      %v373 = vshrl.u32 %v372, 7
      %v374 = vsub.s32 0, %v373
      %v375 = vrot.slane %v370, %v374
      %v377 = vadd.f32 %v338, %v375
      %v378 = vadd.f32 %v339, %v375
      %v379 = vadd.f32 %v340, %v375
      %v380 = vadd.f32 %v341, %v375
      %v381 = vadd.f32 %v342, %v375
      %v382 = vadd.f32 %v343, %v375
      %v383 = vadd.f32 %v344, %v375
      %v384 = vadd.f32 %v345, %v375
      %v385 = vadd.f32 %v346, %v375
      %v386 = vadd.f32 %v347, %v375
      %v387 = vadd.f32 %v348, %v375
      %v388 = vadd.f32 %v349, %v375
      %v389 = vadd.f32 %v350, %v375
      %v390 = vadd.f32 %v351, %v375
      %v391 = vadd.f32 %v352, %v375
      %v392 = vadd.f32 %v353, %v375
      %v393 = vadd.f32 %v354, %v375
      %v394 = vadd.f32 %v355, %v375
      %v395 = vadd.f32 %v356, %v375
      %v396 = vadd.f32 %v357, %v375
      %v397 = vadd.f32 %v358, %v375
      %v398 = vadd.f32 %v359, %v375
      %v399 = vadd.f32 %v360, %v375
      %v400 = vadd.f32 %v361, %v375
      %v401 = vadd.f32 %v362, %v375
      %v402 = vadd.f32 %v363, %v375
      %v403 = vadd.f32 %v364, %v375
      %v404 = vadd.f32 %v365, %v375
      %v405 = vadd.f32 %v366, %v375
      %v406 = vadd.f32 %v367, %v375
      %v407 = vadd.f32 %v368, %v375
      %v408 = vadd.f32 %v369, %v375
      %v409 = vpack.c.bf16 %v378, %v377
      %v410 = vpack.c.bf16 %v380, %v379
      %v411 = vpack.c.bf16 %v382, %v381
      %v412 = vpack.c.bf16 %v384, %v383
      %v413 = vpack.c.bf16 %v386, %v385
      %v414 = vpack.c.bf16 %v388, %v387
      %v415 = vpack.c.bf16 %v390, %v389
      %v416 = vpack.c.bf16 %v392, %v391
      %v417 = vpack.c.bf16 %v394, %v393
      %v418 = vpack.c.bf16 %v396, %v395
      %v419 = vpack.c.bf16 %v398, %v397
      %v420 = vpack.c.bf16 %v400, %v399
      %v421 = vpack.c.bf16 %v402, %v401
      %v422 = vpack.c.bf16 %v404, %v403
      %v423 = vpack.c.bf16 %v406, %v405
      %v424 = vpack.c.bf16 %v408, %v407
      %425 = vst [vmem:[#allocation2] sm:$0xff] 0.0
      %426 = vst [vmem:[#allocation2 + $0x8] sm:$0xff] 0.0
      %427 = vst [vmem:[#allocation2 + $0x10] sm:$0xff] 0.0
      %428 = vst [vmem:[#allocation2 + $0x18] sm:$0xff] 0.0
      %429 = vst [vmem:[#allocation2 + $0x20] sm:$0xff] 0.0
      %430 = vst [vmem:[#allocation2 + $0x28] sm:$0xff] 0.0
      %431 = vst [vmem:[#allocation2 + $0x30] sm:$0xff] 0.0
      %432 = vst [vmem:[#allocation2 + $0x38] sm:$0xff] 0.0
      %433 = vst [vmem:[#allocation2 + $0x40] sm:$0xff] 0.0
      %434 = vst [vmem:[#allocation2 + $0x48] sm:$0xff] 0.0
      %435 = vst [vmem:[#allocation2 + $0x50] sm:$0xff] 0.0
      %436 = vst [vmem:[#allocation2 + $0x58] sm:$0xff] 0.0
      %437 = vst [vmem:[#allocation2 + $0x60] sm:$0xff] 0.0
      %438 = vst [vmem:[#allocation2 + $0x68] sm:$0xff] 0.0
      %439 = vst [vmem:[#allocation2 + $0x70] sm:$0xff] 0.0
      %440 = vst [vmem:[#allocation2 + $0x78] sm:$0xff] 0.0
      %441 = vst [vmem:[#allocation2 + $0x80] sm:$0xff] 0.0
      %442 = vst [vmem:[#allocation2 + $0x88] sm:$0xff] 0.0
      %443 = vst [vmem:[#allocation2 + $0x90] sm:$0xff] 0.0
      %444 = vst [vmem:[#allocation2 + $0x98] sm:$0xff] 0.0
      %445 = vst [vmem:[#allocation2 + $0xa0] sm:$0xff] 0.0
      %446 = vst [vmem:[#allocation2 + $0xa8] sm:$0xff] 0.0
      %447 = vst [vmem:[#allocation2 + $0xb0] sm:$0xff] 0.0
      %448 = vst [vmem:[#allocation2 + $0xb8] sm:$0xff] 0.0
      %449 = vst [vmem:[#allocation2 + $0xc0] sm:$0xff] 0.0
      %450 = vst [vmem:[#allocation2 + $0xc8] sm:$0xff] 0.0
      %451 = vst [vmem:[#allocation2 + $0xd0] sm:$0xff] 0.0
      %452 = vst [vmem:[#allocation2 + $0xd8] sm:$0xff] 0.0
      %453 = vst [vmem:[#allocation2 + $0xe0] sm:$0xff] 0.0
      %454 = vst [vmem:[#allocation2 + $0xe8] sm:$0xff] 0.0
      %455 = vst [vmem:[#allocation2 + $0xf0] sm:$0xff] 0.0
      %456 = vst [vmem:[#allocation2 + $0xf8] sm:$0xff] 0.0
      %v458 = vshrl.u32 %v409, 16
      %v460 = vrot.slane %v458, 7
      %v461 = vshll.u32 %v409, 16
      %v463 = vor.u32 %v460, %v461
      %v465 = vshrl.u32 %v410, 16
      %v467 = vrot.slane %v465, 7
      %v468 = vshll.u32 %v410, 16
      %v470 = vor.u32 %v467, %v468
      %v472 = vshrl.u32 %v411, 16
      %v474 = vrot.slane %v472, 7
      %v475 = vshll.u32 %v411, 16
      %v477 = vor.u32 %v474, %v475
      %v479 = vshrl.u32 %v412, 16
      %v481 = vrot.slane %v479, 7
      %v482 = vshll.u32 %v412, 16
      %v484 = vor.u32 %v481, %v482
      %v486 = vshrl.u32 %v413, 16
      %v488 = vrot.slane %v486, 7
      %v489 = vshll.u32 %v413, 16
      %v491 = vor.u32 %v488, %v489
      %v493 = vshrl.u32 %v414, 16
      %v495 = vrot.slane %v493, 7
      %v496 = vshll.u32 %v414, 16
      %v498 = vor.u32 %v495, %v496
      %v500 = vshrl.u32 %v415, 16
      %v502 = vrot.slane %v500, 7
      %v503 = vshll.u32 %v415, 16
      %v505 = vor.u32 %v502, %v503
      %v507 = vshrl.u32 %v416, 16
      %v509 = vrot.slane %v507, 7
      %v510 = vshll.u32 %v416, 16
      %v512 = vor.u32 %v509, %v510
      %v514 = vshrl.u32 %v417, 16
      %v516 = vrot.slane %v514, 7
      %v517 = vshll.u32 %v417, 16
      %v519 = vor.u32 %v516, %v517
      %v521 = vshrl.u32 %v418, 16
      %v523 = vrot.slane %v521, 7
      %v524 = vshll.u32 %v418, 16
      %v526 = vor.u32 %v523, %v524
      %v528 = vshrl.u32 %v419, 16
      %v530 = vrot.slane %v528, 7
      %v531 = vshll.u32 %v419, 16
      %v533 = vor.u32 %v530, %v531
      %v535 = vshrl.u32 %v420, 16
      %v537 = vrot.slane %v535, 7
      %v538 = vshll.u32 %v420, 16
      %v540 = vor.u32 %v537, %v538
      %v542 = vshrl.u32 %v421, 16
      %v544 = vrot.slane %v542, 7
      %v545 = vshll.u32 %v421, 16
      %v547 = vor.u32 %v544, %v545
      %v549 = vshrl.u32 %v422, 16
      %v551 = vrot.slane %v549, 7
      %v552 = vshll.u32 %v422, 16
      %v554 = vor.u32 %v551, %v552
      %v556 = vshrl.u32 %v423, 16
      %v558 = vrot.slane %v556, 7
      %v559 = vshll.u32 %v423, 16
      %v561 = vor.u32 %v558, %v559
      %v563 = vshrl.u32 %v424, 16
      %v565 = vrot.slane %v563, 7
      %v566 = vshll.u32 %v424, 16
      %v568 = vor.u32 %v565, %v566
      %vm585 = vcmask 1040384
      %vm586 = vsmask.f32 256
      %vm587 = vmand %vm585, %vm586
      %v588 = vsel %vm587, 0, %v463
      %v589 = vsel %vm587, 0, %v470
      %v590 = vsel %vm587, 0, %v477
      %v591 = vsel %vm587, 0, %v484
      %v592 = vsel %vm587, 0, %v491
      %v593 = vsel %vm587, 0, %v498
      %v594 = vsel %vm587, 0, %v505
      %v595 = vsel %vm587, 0, %v512
      %v596 = vsel %vm587, 0, %v519
      %v597 = vsel %vm587, 0, %v526
      %v598 = vsel %vm587, 0, %v533
      %v599 = vsel %vm587, 0, %v540
      %v600 = vsel %vm587, 0, %v547
      %v601 = vsel %vm587, 0, %v554
      %v602 = vsel %vm587, 0, %v561
      %v603 = vsel %vm587, 0, %v568
      %s604 = scalar_lea.vmem [#allocation2], 16
      %v605 = vld [vmem:[%s604] sm:$0xff]
      %v606 = vld [vmem:[%s604 + $0x8] sm:$0xff]
      %v607 = vld [vmem:[%s604 + $0x10] sm:$0xff]
      %v608 = vld [vmem:[%s604 + $0x18] sm:$0xff]
      %v609 = vld [vmem:[%s604 + $0x20] sm:$0xff]
      %v610 = vld [vmem:[%s604 + $0x28] sm:$0xff]
      %v611 = vld [vmem:[%s604 + $0x30] sm:$0xff]
      %v612 = vld [vmem:[%s604 + $0x38] sm:$0xff]
      %v613 = vld [vmem:[%s604 + $0x40] sm:$0xff]
      %v614 = vld [vmem:[%s604 + $0x48] sm:$0xff]
      %v615 = vld [vmem:[%s604 + $0x50] sm:$0xff]
      %v616 = vld [vmem:[%s604 + $0x58] sm:$0xff]
      %v617 = vld [vmem:[%s604 + $0x60] sm:$0xff]
      %v618 = vld [vmem:[%s604 + $0x68] sm:$0xff]
      %v619 = vld [vmem:[%s604 + $0x70] sm:$0xff]
      %v620 = vld [vmem:[%s604 + $0x78] sm:$0xff]
      %v621 = vld [vmem:[%s604 + $0x80] sm:$0xff]
      %v622 = vld [vmem:[%s604 + $0x88] sm:$0xff]
      %v623 = vld [vmem:[%s604 + $0x90] sm:$0xff]
      %v624 = vld [vmem:[%s604 + $0x98] sm:$0xff]
      %v625 = vld [vmem:[%s604 + $0xa0] sm:$0xff]
      %v626 = vld [vmem:[%s604 + $0xa8] sm:$0xff]
      %v627 = vld [vmem:[%s604 + $0xb0] sm:$0xff]
      %v628 = vld [vmem:[%s604 + $0xb8] sm:$0xff]
      %v629 = vld [vmem:[%s604 + $0xc0] sm:$0xff]
      %v630 = vld [vmem:[%s604 + $0xc8] sm:$0xff]
      %v631 = vld [vmem:[%s604 + $0xd0] sm:$0xff]
      %v632 = vld [vmem:[%s604 + $0xd8] sm:$0xff]
      %v633 = vld [vmem:[%s604 + $0xe0] sm:$0xff]
      %v634 = vld [vmem:[%s604 + $0xe8] sm:$0xff]
      %v635 = vunpack.c.l.bf16 %v588
      %v636 = vunpack.c.h.bf16 %v588
      %v637 = vunpack.c.l.bf16 %v589
      %v638 = vunpack.c.h.bf16 %v589
      %v639 = vunpack.c.l.bf16 %v590
      %v640 = vunpack.c.h.bf16 %v590
      %v641 = vunpack.c.l.bf16 %v591
      %v642 = vunpack.c.h.bf16 %v591
      %v643 = vunpack.c.l.bf16 %v592
      %v644 = vunpack.c.h.bf16 %v592
      %v645 = vunpack.c.l.bf16 %v593
      %v646 = vunpack.c.h.bf16 %v593
      %v647 = vunpack.c.l.bf16 %v594
      %v648 = vunpack.c.h.bf16 %v594
      %v649 = vunpack.c.l.bf16 %v595
      %v650 = vunpack.c.h.bf16 %v595
      %v651 = vunpack.c.l.bf16 %v596
      %v652 = vunpack.c.h.bf16 %v596
      %v653 = vunpack.c.l.bf16 %v597
      %v654 = vunpack.c.h.bf16 %v597
      %v655 = vunpack.c.l.bf16 %v598
      %v656 = vunpack.c.h.bf16 %v598
      %v657 = vunpack.c.l.bf16 %v599
      %v658 = vunpack.c.h.bf16 %v599
      %v659 = vunpack.c.l.bf16 %v600
      %v660 = vunpack.c.h.bf16 %v600
      %v661 = vunpack.c.l.bf16 %v601
      %v662 = vunpack.c.h.bf16 %v601
      %v663 = vunpack.c.l.bf16 %v602
      %v664 = vunpack.c.h.bf16 %v602
      %v665 = vlaneseq
      %v666 = vshrl.u32 %v665, 7
      %v667 = vsub.s32 0, %v666
      %v668 = vrot.slane %v264, %v667
      %v669 = vmul.f32 %v635, %v668
      %v670 = vmul.f32 %v636, %v668
      %v671 = vmul.f32 %v637, %v668
      %v672 = vmul.f32 %v638, %v668
      %v673 = vmul.f32 %v639, %v668
      %v674 = vmul.f32 %v640, %v668
      %v675 = vmul.f32 %v641, %v668
      %v676 = vmul.f32 %v642, %v668
      %v677 = vmul.f32 %v643, %v668
      %v678 = vmul.f32 %v644, %v668
      %v679 = vmul.f32 %v645, %v668
      %v680 = vmul.f32 %v646, %v668
      %v681 = vmul.f32 %v647, %v668
      %v682 = vmul.f32 %v648, %v668
      %v683 = vmul.f32 %v649, %v668
      %v684 = vmul.f32 %v650, %v668
      %v685 = vmul.f32 %v651, %v668
      %v686 = vmul.f32 %v652, %v668
      %v687 = vmul.f32 %v653, %v668
      %v688 = vmul.f32 %v654, %v668
      %v689 = vmul.f32 %v655, %v668
      %v690 = vmul.f32 %v656, %v668
      %v691 = vmul.f32 %v657, %v668
      %v692 = vmul.f32 %v658, %v668
      %v693 = vmul.f32 %v659, %v668
      %v694 = vmul.f32 %v660, %v668
      %v695 = vmul.f32 %v661, %v668
      %v696 = vmul.f32 %v662, %v668
      %v697 = vmul.f32 %v663, %v668
      %v698 = vmul.f32 %v664, %v668
      %v699 = vadd.f32 %v605, %v669
      %v700 = vadd.f32 %v606, %v670
      %v701 = vadd.f32 %v607, %v671
      %v702 = vadd.f32 %v608, %v672
      %v703 = vadd.f32 %v609, %v673
      %v704 = vadd.f32 %v610, %v674
      %v705 = vadd.f32 %v611, %v675
      %v706 = vadd.f32 %v612, %v676
      %v707 = vadd.f32 %v613, %v677
      %v708 = vadd.f32 %v614, %v678
      %v709 = vadd.f32 %v615, %v679
      %v710 = vadd.f32 %v616, %v680
      %v711 = vadd.f32 %v617, %v681
      %v712 = vadd.f32 %v618, %v682
      %v713 = vadd.f32 %v619, %v683
      %v714 = vadd.f32 %v620, %v684
      %v715 = vadd.f32 %v621, %v685
      %v716 = vadd.f32 %v622, %v686
      %v717 = vadd.f32 %v623, %v687
      %v718 = vadd.f32 %v624, %v688
      %v719 = vadd.f32 %v625, %v689
      %v720 = vadd.f32 %v626, %v690
      %v721 = vadd.f32 %v627, %v691
      %v722 = vadd.f32 %v628, %v692
      %v723 = vadd.f32 %v629, %v693
      %v724 = vadd.f32 %v630, %v694
      %v725 = vadd.f32 %v631, %v695
      %v726 = vadd.f32 %v632, %v696
      %v727 = vadd.f32 %v633, %v697
      %v728 = vadd.f32 %v634, %v698
      %729 = vst [vmem:[%s604] sm:$0xff] %v699
      %730 = vst [vmem:[%s604 + $0x8] sm:$0xff] %v700
      %731 = vst [vmem:[%s604 + $0x10] sm:$0xff] %v701
      %732 = vst [vmem:[%s604 + $0x18] sm:$0xff] %v702
      %733 = vst [vmem:[%s604 + $0x20] sm:$0xff] %v703
      %734 = vst [vmem:[%s604 + $0x28] sm:$0xff] %v704
      %735 = vst [vmem:[%s604 + $0x30] sm:$0xff] %v705
      %736 = vst [vmem:[%s604 + $0x38] sm:$0xff] %v706
      %737 = vst [vmem:[%s604 + $0x40] sm:$0xff] %v707
      %738 = vst [vmem:[%s604 + $0x48] sm:$0xff] %v708
      %739 = vst [vmem:[%s604 + $0x50] sm:$0xff] %v709
      %740 = vst [vmem:[%s604 + $0x58] sm:$0xff] %v710
      %741 = vst [vmem:[%s604 + $0x60] sm:$0xff] %v711
      %742 = vst [vmem:[%s604 + $0x68] sm:$0xff] %v712
      %743 = vst [vmem:[%s604 + $0x70] sm:$0xff] %v713
      %744 = vst [vmem:[%s604 + $0x78] sm:$0xff] %v714
      %745 = vst [vmem:[%s604 + $0x80] sm:$0xff] %v715
      %746 = vst [vmem:[%s604 + $0x88] sm:$0xff] %v716
      %747 = vst [vmem:[%s604 + $0x90] sm:$0xff] %v717
      %748 = vst [vmem:[%s604 + $0x98] sm:$0xff] %v718
      %749 = vst [vmem:[%s604 + $0xa0] sm:$0xff] %v719
      %750 = vst [vmem:[%s604 + $0xa8] sm:$0xff] %v720
      %751 = vst [vmem:[%s604 + $0xb0] sm:$0xff] %v721
      %752 = vst [vmem:[%s604 + $0xb8] sm:$0xff] %v722
      %753 = vst [vmem:[%s604 + $0xc0] sm:$0xff] %v723
      %754 = vst [vmem:[%s604 + $0xc8] sm:$0xff] %v724
      %755 = vst [vmem:[%s604 + $0xd0] sm:$0xff] %v725
      %756 = vst [vmem:[%s604 + $0xd8] sm:$0xff] %v726
      %757 = vst [vmem:[%s604 + $0xe0] sm:$0xff] %v727
      %758 = vst [vmem:[%s604 + $0xe8] sm:$0xff] %v728
      %v759 = vld [vmem:[#allocation2] sm:$0xff]
      %v760 = vld [vmem:[#allocation2 + $0x8] sm:$0xff]
      %v761 = vld [vmem:[#allocation2 + $0x10] sm:$0xff]
      %v762 = vld [vmem:[#allocation2 + $0x18] sm:$0xff]
      %v763 = vld [vmem:[#allocation2 + $0x20] sm:$0xff]
      %v764 = vld [vmem:[#allocation2 + $0x28] sm:$0xff]
      %v765 = vld [vmem:[#allocation2 + $0x30] sm:$0xff]
      %v766 = vld [vmem:[#allocation2 + $0x38] sm:$0xff]
      %v767 = vld [vmem:[#allocation2 + $0x40] sm:$0xff]
      %v768 = vld [vmem:[#allocation2 + $0x48] sm:$0xff]
      %v769 = vld [vmem:[#allocation2 + $0x50] sm:$0xff]
      %v770 = vld [vmem:[#allocation2 + $0x58] sm:$0xff]
      %v771 = vld [vmem:[#allocation2 + $0x60] sm:$0xff]
      %v772 = vld [vmem:[#allocation2 + $0x68] sm:$0xff]
      %v773 = vld [vmem:[#allocation2 + $0x70] sm:$0xff]
      %v774 = vld [vmem:[#allocation2 + $0x78] sm:$0xff]
      %v775 = vld [vmem:[#allocation2 + $0x80] sm:$0xff]
      %v776 = vld [vmem:[#allocation2 + $0x88] sm:$0xff]
      %v777 = vld [vmem:[#allocation2 + $0x90] sm:$0xff]
      %v778 = vld [vmem:[#allocation2 + $0x98] sm:$0xff]
      %v779 = vld [vmem:[#allocation2 + $0xa0] sm:$0xff]
      %v780 = vld [vmem:[#allocation2 + $0xa8] sm:$0xff]
      %v781 = vld [vmem:[#allocation2 + $0xb0] sm:$0xff]
      %v782 = vld [vmem:[#allocation2 + $0xb8] sm:$0xff]
      %v783 = vld [vmem:[#allocation2 + $0xc0] sm:$0xff]
      %v784 = vld [vmem:[#allocation2 + $0xc8] sm:$0xff]
      %v785 = vld [vmem:[#allocation2 + $0xd0] sm:$0xff]
      %v786 = vld [vmem:[#allocation2 + $0xd8] sm:$0xff]
      %v787 = vld [vmem:[#allocation2 + $0xe0] sm:$0xff]
      %v788 = vld [vmem:[#allocation2 + $0xe8] sm:$0xff]
      %v789 = vld [vmem:[#allocation2 + $0xf0] sm:$0xff]
      %v790 = vld [vmem:[#allocation2 + $0xf8] sm:$0xff]
      %v791 = vunpack.c.l.bf16 %v603
      %v792 = vunpack.c.h.bf16 %v603
      %v793 = vlaneseq
      %v794 = vshrl.u32 %v793, 7
      %v795 = vsub.s32 0, %v794
      %v796 = vrot.slane %v265, %v795
      %v797 = vmul.f32 %v635, %v796
      %v798 = vmul.f32 %v636, %v796
      %v799 = vmul.f32 %v637, %v796
      %v800 = vmul.f32 %v638, %v796
      %v801 = vmul.f32 %v639, %v796
      %v802 = vmul.f32 %v640, %v796
      %v803 = vmul.f32 %v641, %v796
      %v804 = vmul.f32 %v642, %v796
      %v805 = vmul.f32 %v643, %v796
      %v806 = vmul.f32 %v644, %v796
      %v807 = vmul.f32 %v645, %v796
      %v808 = vmul.f32 %v646, %v796
      %v809 = vmul.f32 %v647, %v796
      %v810 = vmul.f32 %v648, %v796
      %v811 = vmul.f32 %v649, %v796
      %v812 = vmul.f32 %v650, %v796
      %v813 = vmul.f32 %v651, %v796
      %v814 = vmul.f32 %v652, %v796
      %v815 = vmul.f32 %v653, %v796
      %v816 = vmul.f32 %v654, %v796
      %v817 = vmul.f32 %v655, %v796
      %v818 = vmul.f32 %v656, %v796
      %v819 = vmul.f32 %v657, %v796
      %v820 = vmul.f32 %v658, %v796
      %v821 = vmul.f32 %v659, %v796
      %v822 = vmul.f32 %v660, %v796
      %v823 = vmul.f32 %v661, %v796
      %v824 = vmul.f32 %v662, %v796
      %v825 = vmul.f32 %v663, %v796
      %v826 = vmul.f32 %v664, %v796
      %v827 = vmul.f32 %v791, %v796
      %v828 = vmul.f32 %v792, %v796
      %v829 = vadd.f32 %v759, %v797
      %v830 = vadd.f32 %v760, %v798
      %v831 = vadd.f32 %v761, %v799
      %v832 = vadd.f32 %v762, %v800
      %v833 = vadd.f32 %v763, %v801
      %v834 = vadd.f32 %v764, %v802
      %v835 = vadd.f32 %v765, %v803
      %v836 = vadd.f32 %v766, %v804
      %v837 = vadd.f32 %v767, %v805
      %v838 = vadd.f32 %v768, %v806
      %v839 = vadd.f32 %v769, %v807
      %v840 = vadd.f32 %v770, %v808
      %v841 = vadd.f32 %v771, %v809
      %v842 = vadd.f32 %v772, %v810
      %v843 = vadd.f32 %v773, %v811
      %v844 = vadd.f32 %v774, %v812
      %v845 = vadd.f32 %v775, %v813
      %v846 = vadd.f32 %v776, %v814
      %v847 = vadd.f32 %v777, %v815
      %v848 = vadd.f32 %v778, %v816
      %v849 = vadd.f32 %v779, %v817
      %v850 = vadd.f32 %v780, %v818
      %v851 = vadd.f32 %v781, %v819
      %v852 = vadd.f32 %v782, %v820
      %v853 = vadd.f32 %v783, %v821
      %v854 = vadd.f32 %v784, %v822
      %v855 = vadd.f32 %v785, %v823
      %v856 = vadd.f32 %v786, %v824
      %v857 = vadd.f32 %v787, %v825
      %v858 = vadd.f32 %v788, %v826
      %v859 = vadd.f32 %v789, %v827
      %v860 = vadd.f32 %v790, %v828
      %861 = vst [vmem:[#allocation2] sm:$0xff] %v829
      %862 = vst [vmem:[#allocation2 + $0x8] sm:$0xff] %v830
      %863 = vst [vmem:[#allocation2 + $0x10] sm:$0xff] %v831
      %864 = vst [vmem:[#allocation2 + $0x18] sm:$0xff] %v832
      %865 = vst [vmem:[#allocation2 + $0x20] sm:$0xff] %v833
      %866 = vst [vmem:[#allocation2 + $0x28] sm:$0xff] %v834
      %867 = vst [vmem:[#allocation2 + $0x30] sm:$0xff] %v835
      %868 = vst [vmem:[#allocation2 + $0x38] sm:$0xff] %v836
      %869 = vst [vmem:[#allocation2 + $0x40] sm:$0xff] %v837
      %870 = vst [vmem:[#allocation2 + $0x48] sm:$0xff] %v838
      %871 = vst [vmem:[#allocation2 + $0x50] sm:$0xff] %v839
      %872 = vst [vmem:[#allocation2 + $0x58] sm:$0xff] %v840
      %873 = vst [vmem:[#allocation2 + $0x60] sm:$0xff] %v841
      %874 = vst [vmem:[#allocation2 + $0x68] sm:$0xff] %v842
      %875 = vst [vmem:[#allocation2 + $0x70] sm:$0xff] %v843
      %876 = vst [vmem:[#allocation2 + $0x78] sm:$0xff] %v844
      %877 = vst [vmem:[#allocation2 + $0x80] sm:$0xff] %v845
      %878 = vst [vmem:[#allocation2 + $0x88] sm:$0xff] %v846
      %879 = vst [vmem:[#allocation2 + $0x90] sm:$0xff] %v847
      %880 = vst [vmem:[#allocation2 + $0x98] sm:$0xff] %v848
      %881 = vst [vmem:[#allocation2 + $0xa0] sm:$0xff] %v849
      %882 = vst [vmem:[#allocation2 + $0xa8] sm:$0xff] %v850
      %883 = vst [vmem:[#allocation2 + $0xb0] sm:$0xff] %v851
      %884 = vst [vmem:[#allocation2 + $0xb8] sm:$0xff] %v852
      %885 = vst [vmem:[#allocation2 + $0xc0] sm:$0xff] %v853
      %886 = vst [vmem:[#allocation2 + $0xc8] sm:$0xff] %v854
      %887 = vst [vmem:[#allocation2 + $0xd0] sm:$0xff] %v855
      %888 = vst [vmem:[#allocation2 + $0xd8] sm:$0xff] %v856
      %889 = vst [vmem:[#allocation2 + $0xe0] sm:$0xff] %v857
      %890 = vst [vmem:[#allocation2 + $0xe8] sm:$0xff] %v858
      %891 = vst [vmem:[#allocation2 + $0xf0] sm:$0xff] %v859
      %892 = vst [vmem:[#allocation2 + $0xf8] sm:$0xff] %v860
      %v893 = vld [vmem:[#allocation2] sm:$0xff]
      %v894 = vld [vmem:[#allocation2 + $0x8] sm:$0xff]
      %v895 = vld [vmem:[#allocation2 + $0x10] sm:$0xff]
      %v896 = vld [vmem:[#allocation2 + $0x18] sm:$0xff]
      %v897 = vld [vmem:[#allocation2 + $0x20] sm:$0xff]
      %v898 = vld [vmem:[#allocation2 + $0x28] sm:$0xff]
      %v899 = vld [vmem:[#allocation2 + $0x30] sm:$0xff]
      %v900 = vld [vmem:[#allocation2 + $0x38] sm:$0xff]
      %v901 = vld [vmem:[#allocation2 + $0x40] sm:$0xff]
      %v902 = vld [vmem:[#allocation2 + $0x48] sm:$0xff]
      %v903 = vld [vmem:[#allocation2 + $0x50] sm:$0xff]
      %v904 = vld [vmem:[#allocation2 + $0x58] sm:$0xff]
      %v905 = vld [vmem:[#allocation2 + $0x60] sm:$0xff]
      %v906 = vld [vmem:[#allocation2 + $0x68] sm:$0xff]
      %v907 = vld [vmem:[#allocation2 + $0x70] sm:$0xff]
      %v908 = vld [vmem:[#allocation2 + $0x78] sm:$0xff]
      %v909 = vld [vmem:[#allocation2 + $0x80] sm:$0xff]
      %v910 = vld [vmem:[#allocation2 + $0x88] sm:$0xff]
      %v911 = vld [vmem:[#allocation2 + $0x90] sm:$0xff]
      %v912 = vld [vmem:[#allocation2 + $0x98] sm:$0xff]
      %v913 = vld [vmem:[#allocation2 + $0xa0] sm:$0xff]
      %v914 = vld [vmem:[#allocation2 + $0xa8] sm:$0xff]
      %v915 = vld [vmem:[#allocation2 + $0xb0] sm:$0xff]
      %v916 = vld [vmem:[#allocation2 + $0xb8] sm:$0xff]
      %v917 = vld [vmem:[#allocation2 + $0xc0] sm:$0xff]
      %v918 = vld [vmem:[#allocation2 + $0xc8] sm:$0xff]
      %v919 = vld [vmem:[#allocation2 + $0xd0] sm:$0xff]
      %v920 = vld [vmem:[#allocation2 + $0xd8] sm:$0xff]
      %v921 = vld [vmem:[#allocation2 + $0xe0] sm:$0xff]
      %v922 = vld [vmem:[#allocation2 + $0xe8] sm:$0xff]
      %v923 = vlaneseq
      %v924 = vshrl.u32 %v923, 7
      %v925 = vsub.s32 0, %v924
      %v926 = vrot.slane %v266, %v925
      %v927 = vmul.f32 %v637, %v926
      %v928 = vmul.f32 %v638, %v926
      %v929 = vmul.f32 %v639, %v926
      %v930 = vmul.f32 %v640, %v926
      %v931 = vmul.f32 %v641, %v926
      %v932 = vmul.f32 %v642, %v926
      %v933 = vmul.f32 %v643, %v926
      %v934 = vmul.f32 %v644, %v926
      %v935 = vmul.f32 %v645, %v926
      %v936 = vmul.f32 %v646, %v926
      %v937 = vmul.f32 %v647, %v926
      %v938 = vmul.f32 %v648, %v926
      %v939 = vmul.f32 %v649, %v926
      %v940 = vmul.f32 %v650, %v926
      %v941 = vmul.f32 %v651, %v926
      %v942 = vmul.f32 %v652, %v926
      %v943 = vmul.f32 %v653, %v926
      %v944 = vmul.f32 %v654, %v926
      %v945 = vmul.f32 %v655, %v926
      %v946 = vmul.f32 %v656, %v926
      %v947 = vmul.f32 %v657, %v926
      %v948 = vmul.f32 %v658, %v926
      %v949 = vmul.f32 %v659, %v926
      %v950 = vmul.f32 %v660, %v926
      %v951 = vmul.f32 %v661, %v926
      %v952 = vmul.f32 %v662, %v926
      %v953 = vmul.f32 %v663, %v926
      %v954 = vmul.f32 %v664, %v926
      %v955 = vmul.f32 %v791, %v926
      %v956 = vmul.f32 %v792, %v926
      %v957 = vadd.f32 %v893, %v927
      %v958 = vadd.f32 %v894, %v928
      %v959 = vadd.f32 %v895, %v929
      %v960 = vadd.f32 %v896, %v930
      %v961 = vadd.f32 %v897, %v931
      %v962 = vadd.f32 %v898, %v932
      %v963 = vadd.f32 %v899, %v933
      %v964 = vadd.f32 %v900, %v934
      %v965 = vadd.f32 %v901, %v935
      %v966 = vadd.f32 %v902, %v936
      %v967 = vadd.f32 %v903, %v937
      %v968 = vadd.f32 %v904, %v938
      %v969 = vadd.f32 %v905, %v939
      %v970 = vadd.f32 %v906, %v940
      %v971 = vadd.f32 %v907, %v941
      %v972 = vadd.f32 %v908, %v942
      %v973 = vadd.f32 %v909, %v943
      %v974 = vadd.f32 %v910, %v944
      %v975 = vadd.f32 %v911, %v945
      %v976 = vadd.f32 %v912, %v946
      %v977 = vadd.f32 %v913, %v947
      %v978 = vadd.f32 %v914, %v948
      %v979 = vadd.f32 %v915, %v949
      %v980 = vadd.f32 %v916, %v950
      %v981 = vadd.f32 %v917, %v951
      %v982 = vadd.f32 %v918, %v952
      %v983 = vadd.f32 %v919, %v953
      %v984 = vadd.f32 %v920, %v954
      %v985 = vadd.f32 %v921, %v955
      %v986 = vadd.f32 %v922, %v956
      %987 = vst [vmem:[#allocation2] sm:$0xff] %v957
      %988 = vst [vmem:[#allocation2 + $0x8] sm:$0xff] %v958
      %989 = vst [vmem:[#allocation2 + $0x10] sm:$0xff] %v959
      %990 = vst [vmem:[#allocation2 + $0x18] sm:$0xff] %v960
      %991 = vst [vmem:[#allocation2 + $0x20] sm:$0xff] %v961
      %992 = vst [vmem:[#allocation2 + $0x28] sm:$0xff] %v962
      %993 = vst [vmem:[#allocation2 + $0x30] sm:$0xff] %v963
      %994 = vst [vmem:[#allocation2 + $0x38] sm:$0xff] %v964
      %995 = vst [vmem:[#allocation2 + $0x40] sm:$0xff] %v965
      %996 = vst [vmem:[#allocation2 + $0x48] sm:$0xff] %v966
      %997 = vst [vmem:[#allocation2 + $0x50] sm:$0xff] %v967
      %998 = vst [vmem:[#allocation2 + $0x58] sm:$0xff] %v968
      %999 = vst [vmem:[#allocation2 + $0x60] sm:$0xff] %v969
      %1000 = vst [vmem:[#allocation2 + $0x68] sm:$0xff] %v970
      %1001 = vst [vmem:[#allocation2 + $0x70] sm:$0xff] %v971
      %1002 = vst [vmem:[#allocation2 + $0x78] sm:$0xff] %v972
      %1003 = vst [vmem:[#allocation2 + $0x80] sm:$0xff] %v973
      %1004 = vst [vmem:[#allocation2 + $0x88] sm:$0xff] %v974
      %1005 = vst [vmem:[#allocation2 + $0x90] sm:$0xff] %v975
      %1006 = vst [vmem:[#allocation2 + $0x98] sm:$0xff] %v976
      %1007 = vst [vmem:[#allocation2 + $0xa0] sm:$0xff] %v977
      %1008 = vst [vmem:[#allocation2 + $0xa8] sm:$0xff] %v978
      %1009 = vst [vmem:[#allocation2 + $0xb0] sm:$0xff] %v979
      %1010 = vst [vmem:[#allocation2 + $0xb8] sm:$0xff] %v980
      %1011 = vst [vmem:[#allocation2 + $0xc0] sm:$0xff] %v981
      %1012 = vst [vmem:[#allocation2 + $0xc8] sm:$0xff] %v982
      %1013 = vst [vmem:[#allocation2 + $0xd0] sm:$0xff] %v983
      %1014 = vst [vmem:[#allocation2 + $0xd8] sm:$0xff] %v984
      %1015 = vst [vmem:[#allocation2 + $0xe0] sm:$0xff] %v985
      %1016 = vst [vmem:[#allocation2 + $0xe8] sm:$0xff] %v986
      %v1017 = vld [vmem:[%s604] sm:$0xff]
      %v1018 = vld [vmem:[%s604 + $0x8] sm:$0xff]
      %v1019 = vld [vmem:[%s604 + $0x10] sm:$0xff]
      %v1020 = vld [vmem:[%s604 + $0x18] sm:$0xff]
      %v1021 = vld [vmem:[%s604 + $0x20] sm:$0xff]
      %v1022 = vld [vmem:[%s604 + $0x28] sm:$0xff]
      %v1023 = vld [vmem:[%s604 + $0x30] sm:$0xff]
      %v1024 = vld [vmem:[%s604 + $0x38] sm:$0xff]
      %v1025 = vld [vmem:[%s604 + $0x40] sm:$0xff]
      %v1026 = vld [vmem:[%s604 + $0x48] sm:$0xff]
      %v1027 = vld [vmem:[%s604 + $0x50] sm:$0xff]
      %v1028 = vld [vmem:[%s604 + $0x58] sm:$0xff]
      %v1029 = vld [vmem:[%s604 + $0x60] sm:$0xff]
      %v1030 = vld [vmem:[%s604 + $0x68] sm:$0xff]
      %v1031 = vld [vmem:[%s604 + $0x70] sm:$0xff]
      %v1032 = vld [vmem:[%s604 + $0x78] sm:$0xff]
      %v1033 = vld [vmem:[%s604 + $0x80] sm:$0xff]
      %v1034 = vld [vmem:[%s604 + $0x88] sm:$0xff]
      %v1035 = vld [vmem:[%s604 + $0x90] sm:$0xff]
      %v1036 = vld [vmem:[%s604 + $0x98] sm:$0xff]
      %v1037 = vld [vmem:[%s604 + $0xa0] sm:$0xff]
      %v1038 = vld [vmem:[%s604 + $0xa8] sm:$0xff]
      %v1039 = vld [vmem:[%s604 + $0xb0] sm:$0xff]
      %v1040 = vld [vmem:[%s604 + $0xb8] sm:$0xff]
      %v1041 = vld [vmem:[%s604 + $0xc0] sm:$0xff]
      %v1042 = vld [vmem:[%s604 + $0xc8] sm:$0xff]
      %v1043 = vld [vmem:[%s604 + $0xd0] sm:$0xff]
      %v1044 = vld [vmem:[%s604 + $0xd8] sm:$0xff]
      %v1045 = vld [vmem:[%s604 + $0xe0] sm:$0xff]
      %v1046 = vld [vmem:[%s604 + $0xe8] sm:$0xff]
      %v1047 = vunpack.c.l.bf16 %v409
      %v1048 = vunpack.c.h.bf16 %v409
      %v1049 = vunpack.c.l.bf16 %v410
      %v1050 = vunpack.c.h.bf16 %v410
      %v1051 = vunpack.c.l.bf16 %v411
      %v1052 = vunpack.c.h.bf16 %v411
      %v1053 = vunpack.c.l.bf16 %v412
      %v1054 = vunpack.c.h.bf16 %v412
      %v1055 = vunpack.c.l.bf16 %v413
      %v1056 = vunpack.c.h.bf16 %v413
      %v1057 = vunpack.c.l.bf16 %v414
      %v1058 = vunpack.c.h.bf16 %v414
      %v1059 = vunpack.c.l.bf16 %v415
      %v1060 = vunpack.c.h.bf16 %v415
      %v1061 = vunpack.c.l.bf16 %v416
      %v1062 = vunpack.c.h.bf16 %v416
      %v1063 = vunpack.c.l.bf16 %v417
      %v1064 = vunpack.c.h.bf16 %v417
      %v1065 = vunpack.c.l.bf16 %v418
      %v1066 = vunpack.c.h.bf16 %v418
      %v1067 = vunpack.c.l.bf16 %v419
      %v1068 = vunpack.c.h.bf16 %v419
      %v1069 = vunpack.c.l.bf16 %v420
      %v1070 = vunpack.c.h.bf16 %v420
      %v1071 = vunpack.c.l.bf16 %v421
      %v1072 = vunpack.c.h.bf16 %v421
      %v1073 = vunpack.c.l.bf16 %v422
      %v1074 = vunpack.c.h.bf16 %v422
      %v1075 = vunpack.c.l.bf16 %v423
      %v1076 = vunpack.c.h.bf16 %v423
      %v1077 = vlaneseq
      %v1078 = vshrl.u32 %v1077, 7
      %v1079 = vsub.s32 1, %v1078
      %v1080 = vrot.slane %v264, %v1079
      %v1081 = vmul.f32 %v1047, %v1080
      %v1082 = vmul.f32 %v1048, %v1080
      %v1083 = vmul.f32 %v1049, %v1080
      %v1084 = vmul.f32 %v1050, %v1080
      %v1085 = vmul.f32 %v1051, %v1080
      %v1086 = vmul.f32 %v1052, %v1080
      %v1087 = vmul.f32 %v1053, %v1080
      %v1088 = vmul.f32 %v1054, %v1080
      %v1089 = vmul.f32 %v1055, %v1080
      %v1090 = vmul.f32 %v1056, %v1080
      %v1091 = vmul.f32 %v1057, %v1080
      %v1092 = vmul.f32 %v1058, %v1080
      %v1093 = vmul.f32 %v1059, %v1080
      %v1094 = vmul.f32 %v1060, %v1080
      %v1095 = vmul.f32 %v1061, %v1080
      %v1096 = vmul.f32 %v1062, %v1080
      %v1097 = vmul.f32 %v1063, %v1080
      %v1098 = vmul.f32 %v1064, %v1080
      %v1099 = vmul.f32 %v1065, %v1080
      %v1100 = vmul.f32 %v1066, %v1080
      %v1101 = vmul.f32 %v1067, %v1080
      %v1102 = vmul.f32 %v1068, %v1080
      %v1103 = vmul.f32 %v1069, %v1080
      %v1104 = vmul.f32 %v1070, %v1080
      %v1105 = vmul.f32 %v1071, %v1080
      %v1106 = vmul.f32 %v1072, %v1080
      %v1107 = vmul.f32 %v1073, %v1080
      %v1108 = vmul.f32 %v1074, %v1080
      %v1109 = vmul.f32 %v1075, %v1080
      %v1110 = vmul.f32 %v1076, %v1080
      %v1111 = vadd.f32 %v1017, %v1081
      %v1112 = vadd.f32 %v1018, %v1082
      %v1113 = vadd.f32 %v1019, %v1083
      %v1114 = vadd.f32 %v1020, %v1084
      %v1115 = vadd.f32 %v1021, %v1085
      %v1116 = vadd.f32 %v1022, %v1086
      %v1117 = vadd.f32 %v1023, %v1087
      %v1118 = vadd.f32 %v1024, %v1088
      %v1119 = vadd.f32 %v1025, %v1089
      %v1120 = vadd.f32 %v1026, %v1090
      %v1121 = vadd.f32 %v1027, %v1091
      %v1122 = vadd.f32 %v1028, %v1092
      %v1123 = vadd.f32 %v1029, %v1093
      %v1124 = vadd.f32 %v1030, %v1094
      %v1125 = vadd.f32 %v1031, %v1095
      %v1126 = vadd.f32 %v1032, %v1096
      %v1127 = vadd.f32 %v1033, %v1097
      %v1128 = vadd.f32 %v1034, %v1098
      %v1129 = vadd.f32 %v1035, %v1099
      %v1130 = vadd.f32 %v1036, %v1100
      %v1131 = vadd.f32 %v1037, %v1101
      %v1132 = vadd.f32 %v1038, %v1102
      %v1133 = vadd.f32 %v1039, %v1103
      %v1134 = vadd.f32 %v1040, %v1104
      %v1135 = vadd.f32 %v1041, %v1105
      %v1136 = vadd.f32 %v1042, %v1106
      %v1137 = vadd.f32 %v1043, %v1107
      %v1138 = vadd.f32 %v1044, %v1108
      %v1139 = vadd.f32 %v1045, %v1109
      %v1140 = vadd.f32 %v1046, %v1110
      %1141 = vst [vmem:[%s604] sm:$0xff] %v1111
      %1142 = vst [vmem:[%s604 + $0x8] sm:$0xff] %v1112
      %1143 = vst [vmem:[%s604 + $0x10] sm:$0xff] %v1113
      %1144 = vst [vmem:[%s604 + $0x18] sm:$0xff] %v1114
      %1145 = vst [vmem:[%s604 + $0x20] sm:$0xff] %v1115
      %1146 = vst [vmem:[%s604 + $0x28] sm:$0xff] %v1116
      %1147 = vst [vmem:[%s604 + $0x30] sm:$0xff] %v1117
      %1148 = vst [vmem:[%s604 + $0x38] sm:$0xff] %v1118
      %1149 = vst [vmem:[%s604 + $0x40] sm:$0xff] %v1119
      %1150 = vst [vmem:[%s604 + $0x48] sm:$0xff] %v1120
      %1151 = vst [vmem:[%s604 + $0x50] sm:$0xff] %v1121
      %1152 = vst [vmem:[%s604 + $0x58] sm:$0xff] %v1122
      %1153 = vst [vmem:[%s604 + $0x60] sm:$0xff] %v1123
      %1154 = vst [vmem:[%s604 + $0x68] sm:$0xff] %v1124
      %1155 = vst [vmem:[%s604 + $0x70] sm:$0xff] %v1125
      %1156 = vst [vmem:[%s604 + $0x78] sm:$0xff] %v1126
      %1157 = vst [vmem:[%s604 + $0x80] sm:$0xff] %v1127
      %1158 = vst [vmem:[%s604 + $0x88] sm:$0xff] %v1128
      %1159 = vst [vmem:[%s604 + $0x90] sm:$0xff] %v1129
      %1160 = vst [vmem:[%s604 + $0x98] sm:$0xff] %v1130
      %1161 = vst [vmem:[%s604 + $0xa0] sm:$0xff] %v1131
      %1162 = vst [vmem:[%s604 + $0xa8] sm:$0xff] %v1132
      %1163 = vst [vmem:[%s604 + $0xb0] sm:$0xff] %v1133
      %1164 = vst [vmem:[%s604 + $0xb8] sm:$0xff] %v1134
      %1165 = vst [vmem:[%s604 + $0xc0] sm:$0xff] %v1135
      %1166 = vst [vmem:[%s604 + $0xc8] sm:$0xff] %v1136
      %1167 = vst [vmem:[%s604 + $0xd0] sm:$0xff] %v1137
      %1168 = vst [vmem:[%s604 + $0xd8] sm:$0xff] %v1138
      %1169 = vst [vmem:[%s604 + $0xe0] sm:$0xff] %v1139
      %1170 = vst [vmem:[%s604 + $0xe8] sm:$0xff] %v1140
      %v1171 = vld [vmem:[#allocation2] sm:$0xff]
      %v1172 = vld [vmem:[#allocation2 + $0x8] sm:$0xff]
      %v1173 = vld [vmem:[#allocation2 + $0x10] sm:$0xff]
      %v1174 = vld [vmem:[#allocation2 + $0x18] sm:$0xff]
      %v1175 = vld [vmem:[#allocation2 + $0x20] sm:$0xff]
      %v1176 = vld [vmem:[#allocation2 + $0x28] sm:$0xff]
      %v1177 = vld [vmem:[#allocation2 + $0x30] sm:$0xff]
      %v1178 = vld [vmem:[#allocation2 + $0x38] sm:$0xff]
      %v1179 = vld [vmem:[#allocation2 + $0x40] sm:$0xff]
      %v1180 = vld [vmem:[#allocation2 + $0x48] sm:$0xff]
      %v1181 = vld [vmem:[#allocation2 + $0x50] sm:$0xff]
      %v1182 = vld [vmem:[#allocation2 + $0x58] sm:$0xff]
      %v1183 = vld [vmem:[#allocation2 + $0x60] sm:$0xff]
      %v1184 = vld [vmem:[#allocation2 + $0x68] sm:$0xff]
      %v1185 = vld [vmem:[#allocation2 + $0x70] sm:$0xff]
      %v1186 = vld [vmem:[#allocation2 + $0x78] sm:$0xff]
      %v1187 = vld [vmem:[#allocation2 + $0x80] sm:$0xff]
      %v1188 = vld [vmem:[#allocation2 + $0x88] sm:$0xff]
      %v1189 = vld [vmem:[#allocation2 + $0x90] sm:$0xff]
      %v1190 = vld [vmem:[#allocation2 + $0x98] sm:$0xff]
      %v1191 = vld [vmem:[#allocation2 + $0xa0] sm:$0xff]
      %v1192 = vld [vmem:[#allocation2 + $0xa8] sm:$0xff]
      %v1193 = vld [vmem:[#allocation2 + $0xb0] sm:$0xff]
      %v1194 = vld [vmem:[#allocation2 + $0xb8] sm:$0xff]
      %v1195 = vld [vmem:[#allocation2 + $0xc0] sm:$0xff]
      %v1196 = vld [vmem:[#allocation2 + $0xc8] sm:$0xff]
      %v1197 = vld [vmem:[#allocation2 + $0xd0] sm:$0xff]
      %v1198 = vld [vmem:[#allocation2 + $0xd8] sm:$0xff]
      %v1199 = vld [vmem:[#allocation2 + $0xe0] sm:$0xff]
      %v1200 = vld [vmem:[#allocation2 + $0xe8] sm:$0xff]
      %v1201 = vld [vmem:[#allocation2 + $0xf0] sm:$0xff]
      %v1202 = vld [vmem:[#allocation2 + $0xf8] sm:$0xff]
      %v1203 = vunpack.c.l.bf16 %v424
      %v1204 = vunpack.c.h.bf16 %v424
      %v1205 = vlaneseq
      %v1206 = vshrl.u32 %v1205, 7
      %v1207 = vsub.s32 1, %v1206
      %v1208 = vrot.slane %v265, %v1207
      %v1209 = vmul.f32 %v1047, %v1208
      %v1210 = vmul.f32 %v1048, %v1208
      %v1211 = vmul.f32 %v1049, %v1208
      %v1212 = vmul.f32 %v1050, %v1208
      %v1213 = vmul.f32 %v1051, %v1208
      %v1214 = vmul.f32 %v1052, %v1208
      %v1215 = vmul.f32 %v1053, %v1208
      %v1216 = vmul.f32 %v1054, %v1208
      %v1217 = vmul.f32 %v1055, %v1208
      %v1218 = vmul.f32 %v1056, %v1208
      %v1219 = vmul.f32 %v1057, %v1208
      %v1220 = vmul.f32 %v1058, %v1208
      %v1221 = vmul.f32 %v1059, %v1208
      %v1222 = vmul.f32 %v1060, %v1208
      %v1223 = vmul.f32 %v1061, %v1208
      %v1224 = vmul.f32 %v1062, %v1208
      %v1225 = vmul.f32 %v1063, %v1208
      %v1226 = vmul.f32 %v1064, %v1208
      %v1227 = vmul.f32 %v1065, %v1208
      %v1228 = vmul.f32 %v1066, %v1208
      %v1229 = vmul.f32 %v1067, %v1208
      %v1230 = vmul.f32 %v1068, %v1208
      %v1231 = vmul.f32 %v1069, %v1208
      %v1232 = vmul.f32 %v1070, %v1208
      %v1233 = vmul.f32 %v1071, %v1208
      %v1234 = vmul.f32 %v1072, %v1208
      %v1235 = vmul.f32 %v1073, %v1208
      %v1236 = vmul.f32 %v1074, %v1208
      %v1237 = vmul.f32 %v1075, %v1208
      %v1238 = vmul.f32 %v1076, %v1208
      %v1239 = vmul.f32 %v1203, %v1208
      %v1240 = vmul.f32 %v1204, %v1208
      %v1241 = vadd.f32 %v1171, %v1209
      %v1242 = vadd.f32 %v1172, %v1210
      %v1243 = vadd.f32 %v1173, %v1211
      %v1244 = vadd.f32 %v1174, %v1212
      %v1245 = vadd.f32 %v1175, %v1213
      %v1246 = vadd.f32 %v1176, %v1214
      %v1247 = vadd.f32 %v1177, %v1215
      %v1248 = vadd.f32 %v1178, %v1216
      %v1249 = vadd.f32 %v1179, %v1217
      %v1250 = vadd.f32 %v1180, %v1218
      %v1251 = vadd.f32 %v1181, %v1219
      %v1252 = vadd.f32 %v1182, %v1220
      %v1253 = vadd.f32 %v1183, %v1221
      %v1254 = vadd.f32 %v1184, %v1222
      %v1255 = vadd.f32 %v1185, %v1223
      %v1256 = vadd.f32 %v1186, %v1224
      %v1257 = vadd.f32 %v1187, %v1225
      %v1258 = vadd.f32 %v1188, %v1226
      %v1259 = vadd.f32 %v1189, %v1227
      %v1260 = vadd.f32 %v1190, %v1228
      %v1261 = vadd.f32 %v1191, %v1229
      %v1262 = vadd.f32 %v1192, %v1230
      %v1263 = vadd.f32 %v1193, %v1231
      %v1264 = vadd.f32 %v1194, %v1232
      %v1265 = vadd.f32 %v1195, %v1233
      %v1266 = vadd.f32 %v1196, %v1234
      %v1267 = vadd.f32 %v1197, %v1235
      %v1268 = vadd.f32 %v1198, %v1236
      %v1269 = vadd.f32 %v1199, %v1237
      %v1270 = vadd.f32 %v1200, %v1238
      %v1271 = vadd.f32 %v1201, %v1239
      %v1272 = vadd.f32 %v1202, %v1240
      %1273 = vst [vmem:[#allocation2] sm:$0xff] %v1241
      %1274 = vst [vmem:[#allocation2 + $0x8] sm:$0xff] %v1242
      %1275 = vst [vmem:[#allocation2 + $0x10] sm:$0xff] %v1243
      %1276 = vst [vmem:[#allocation2 + $0x18] sm:$0xff] %v1244
      %1277 = vst [vmem:[#allocation2 + $0x20] sm:$0xff] %v1245
      %1278 = vst [vmem:[#allocation2 + $0x28] sm:$0xff] %v1246
      %1279 = vst [vmem:[#allocation2 + $0x30] sm:$0xff] %v1247
      %1280 = vst [vmem:[#allocation2 + $0x38] sm:$0xff] %v1248
      %1281 = vst [vmem:[#allocation2 + $0x40] sm:$0xff] %v1249
      %1282 = vst [vmem:[#allocation2 + $0x48] sm:$0xff] %v1250
      %1283 = vst [vmem:[#allocation2 + $0x50] sm:$0xff] %v1251
      %1284 = vst [vmem:[#allocation2 + $0x58] sm:$0xff] %v1252
      %1285 = vst [vmem:[#allocation2 + $0x60] sm:$0xff] %v1253
      %1286 = vst [vmem:[#allocation2 + $0x68] sm:$0xff] %v1254
      %1287 = vst [vmem:[#allocation2 + $0x70] sm:$0xff] %v1255
      %1288 = vst [vmem:[#allocation2 + $0x78] sm:$0xff] %v1256
      %1289 = vst [vmem:[#allocation2 + $0x80] sm:$0xff] %v1257
      %1290 = vst [vmem:[#allocation2 + $0x88] sm:$0xff] %v1258
      %1291 = vst [vmem:[#allocation2 + $0x90] sm:$0xff] %v1259
      %1292 = vst [vmem:[#allocation2 + $0x98] sm:$0xff] %v1260
      %1293 = vst [vmem:[#allocation2 + $0xa0] sm:$0xff] %v1261
      %1294 = vst [vmem:[#allocation2 + $0xa8] sm:$0xff] %v1262
      %1295 = vst [vmem:[#allocation2 + $0xb0] sm:$0xff] %v1263
      %1296 = vst [vmem:[#allocation2 + $0xb8] sm:$0xff] %v1264
      %1297 = vst [vmem:[#allocation2 + $0xc0] sm:$0xff] %v1265
      %1298 = vst [vmem:[#allocation2 + $0xc8] sm:$0xff] %v1266
      %1299 = vst [vmem:[#allocation2 + $0xd0] sm:$0xff] %v1267
      %1300 = vst [vmem:[#allocation2 + $0xd8] sm:$0xff] %v1268
      %1301 = vst [vmem:[#allocation2 + $0xe0] sm:$0xff] %v1269
      %1302 = vst [vmem:[#allocation2 + $0xe8] sm:$0xff] %v1270
      %1303 = vst [vmem:[#allocation2 + $0xf0] sm:$0xff] %v1271
      %1304 = vst [vmem:[#allocation2 + $0xf8] sm:$0xff] %v1272
      %v1305 = vld [vmem:[#allocation2] sm:$0xff]
      %v1306 = vld [vmem:[#allocation2 + $0x8] sm:$0xff]
      %v1307 = vld [vmem:[#allocation2 + $0x10] sm:$0xff]
      %v1308 = vld [vmem:[#allocation2 + $0x18] sm:$0xff]
      %v1309 = vld [vmem:[#allocation2 + $0x20] sm:$0xff]
      %v1310 = vld [vmem:[#allocation2 + $0x28] sm:$0xff]
      %v1311 = vld [vmem:[#allocation2 + $0x30] sm:$0xff]
      %v1312 = vld [vmem:[#allocation2 + $0x38] sm:$0xff]
      %v1313 = vld [vmem:[#allocation2 + $0x40] sm:$0xff]
      %v1314 = vld [vmem:[#allocation2 + $0x48] sm:$0xff]
      %v1315 = vld [vmem:[#allocation2 + $0x50] sm:$0xff]
      %v1316 = vld [vmem:[#allocation2 + $0x58] sm:$0xff]
      %v1317 = vld [vmem:[#allocation2 + $0x60] sm:$0xff]
      %v1318 = vld [vmem:[#allocation2 + $0x68] sm:$0xff]
      %v1319 = vld [vmem:[#allocation2 + $0x70] sm:$0xff]
      %v1320 = vld [vmem:[#allocation2 + $0x78] sm:$0xff]
      %v1321 = vld [vmem:[#allocation2 + $0x80] sm:$0xff]
      %v1322 = vld [vmem:[#allocation2 + $0x88] sm:$0xff]
      %v1323 = vld [vmem:[#allocation2 + $0x90] sm:$0xff]
      %v1324 = vld [vmem:[#allocation2 + $0x98] sm:$0xff]
      %v1325 = vld [vmem:[#allocation2 + $0xa0] sm:$0xff]
      %v1326 = vld [vmem:[#allocation2 + $0xa8] sm:$0xff]
      %v1327 = vld [vmem:[#allocation2 + $0xb0] sm:$0xff]
      %v1328 = vld [vmem:[#allocation2 + $0xb8] sm:$0xff]
      %v1329 = vld [vmem:[#allocation2 + $0xc0] sm:$0xff]
      %v1330 = vld [vmem:[#allocation2 + $0xc8] sm:$0xff]
      %v1331 = vld [vmem:[#allocation2 + $0xd0] sm:$0xff]
      %v1332 = vld [vmem:[#allocation2 + $0xd8] sm:$0xff]
      %v1333 = vld [vmem:[#allocation2 + $0xe0] sm:$0xff]
      %v1334 = vld [vmem:[#allocation2 + $0xe8] sm:$0xff]
      %v1335 = vlaneseq
      %v1336 = vshrl.u32 %v1335, 7
      %v1337 = vsub.s32 1, %v1336
      %v1338 = vrot.slane %v266, %v1337
      %v1339 = vmul.f32 %v1049, %v1338
      %v1340 = vmul.f32 %v1050, %v1338
      %v1341 = vmul.f32 %v1051, %v1338
      %v1342 = vmul.f32 %v1052, %v1338
      %v1343 = vmul.f32 %v1053, %v1338
      %v1344 = vmul.f32 %v1054, %v1338
      %v1345 = vmul.f32 %v1055, %v1338
      %v1346 = vmul.f32 %v1056, %v1338
      %v1347 = vmul.f32 %v1057, %v1338
      %v1348 = vmul.f32 %v1058, %v1338
      %v1349 = vmul.f32 %v1059, %v1338
      %v1350 = vmul.f32 %v1060, %v1338
      %v1351 = vmul.f32 %v1061, %v1338
      %v1352 = vmul.f32 %v1062, %v1338
      %v1353 = vmul.f32 %v1063, %v1338
      %v1354 = vmul.f32 %v1064, %v1338
      %v1355 = vmul.f32 %v1065, %v1338
      %v1356 = vmul.f32 %v1066, %v1338
      %v1357 = vmul.f32 %v1067, %v1338
      %v1358 = vmul.f32 %v1068, %v1338
      %v1359 = vmul.f32 %v1069, %v1338
      %v1360 = vmul.f32 %v1070, %v1338
      %v1361 = vmul.f32 %v1071, %v1338
      %v1362 = vmul.f32 %v1072, %v1338
      %v1363 = vmul.f32 %v1073, %v1338
      %v1364 = vmul.f32 %v1074, %v1338
      %v1365 = vmul.f32 %v1075, %v1338
      %v1366 = vmul.f32 %v1076, %v1338
      %v1367 = vmul.f32 %v1203, %v1338
      %v1368 = vmul.f32 %v1204, %v1338
      %v1369 = vadd.f32 %v1305, %v1339
      %v1370 = vadd.f32 %v1306, %v1340
      %v1371 = vadd.f32 %v1307, %v1341
      %v1372 = vadd.f32 %v1308, %v1342
      %v1373 = vadd.f32 %v1309, %v1343
      %v1374 = vadd.f32 %v1310, %v1344
      %v1375 = vadd.f32 %v1311, %v1345
      %v1376 = vadd.f32 %v1312, %v1346
      %v1377 = vadd.f32 %v1313, %v1347
      %v1378 = vadd.f32 %v1314, %v1348
      %v1379 = vadd.f32 %v1315, %v1349
      %v1380 = vadd.f32 %v1316, %v1350
      %v1381 = vadd.f32 %v1317, %v1351
      %v1382 = vadd.f32 %v1318, %v1352
      %v1383 = vadd.f32 %v1319, %v1353
      %v1384 = vadd.f32 %v1320, %v1354
      %v1385 = vadd.f32 %v1321, %v1355
      %v1386 = vadd.f32 %v1322, %v1356
      %v1387 = vadd.f32 %v1323, %v1357
      %v1388 = vadd.f32 %v1324, %v1358
      %v1389 = vadd.f32 %v1325, %v1359
      %v1390 = vadd.f32 %v1326, %v1360
      %v1391 = vadd.f32 %v1327, %v1361
      %v1392 = vadd.f32 %v1328, %v1362
      %v1393 = vadd.f32 %v1329, %v1363
      %v1394 = vadd.f32 %v1330, %v1364
      %v1395 = vadd.f32 %v1331, %v1365
      %v1396 = vadd.f32 %v1332, %v1366
      %v1397 = vadd.f32 %v1333, %v1367
      %v1398 = vadd.f32 %v1334, %v1368
      %1399 = vst [vmem:[#allocation2] sm:$0xff] %v1369
      %1400 = vst [vmem:[#allocation2 + $0x8] sm:$0xff] %v1370
      %1401 = vst [vmem:[#allocation2 + $0x10] sm:$0xff] %v1371
      %1402 = vst [vmem:[#allocation2 + $0x18] sm:$0xff] %v1372
      %1403 = vst [vmem:[#allocation2 + $0x20] sm:$0xff] %v1373
      %1404 = vst [vmem:[#allocation2 + $0x28] sm:$0xff] %v1374
      %1405 = vst [vmem:[#allocation2 + $0x30] sm:$0xff] %v1375
      %1406 = vst [vmem:[#allocation2 + $0x38] sm:$0xff] %v1376
      %1407 = vst [vmem:[#allocation2 + $0x40] sm:$0xff] %v1377
      %1408 = vst [vmem:[#allocation2 + $0x48] sm:$0xff] %v1378
      %1409 = vst [vmem:[#allocation2 + $0x50] sm:$0xff] %v1379
      %1410 = vst [vmem:[#allocation2 + $0x58] sm:$0xff] %v1380
      %1411 = vst [vmem:[#allocation2 + $0x60] sm:$0xff] %v1381
      %1412 = vst [vmem:[#allocation2 + $0x68] sm:$0xff] %v1382
      %1413 = vst [vmem:[#allocation2 + $0x70] sm:$0xff] %v1383
      %1414 = vst [vmem:[#allocation2 + $0x78] sm:$0xff] %v1384
      %1415 = vst [vmem:[#allocation2 + $0x80] sm:$0xff] %v1385
      %1416 = vst [vmem:[#allocation2 + $0x88] sm:$0xff] %v1386
      %1417 = vst [vmem:[#allocation2 + $0x90] sm:$0xff] %v1387
      %1418 = vst [vmem:[#allocation2 + $0x98] sm:$0xff] %v1388
      %1419 = vst [vmem:[#allocation2 + $0xa0] sm:$0xff] %v1389
      %1420 = vst [vmem:[#allocation2 + $0xa8] sm:$0xff] %v1390
      %1421 = vst [vmem:[#allocation2 + $0xb0] sm:$0xff] %v1391
      %1422 = vst [vmem:[#allocation2 + $0xb8] sm:$0xff] %v1392
      %1423 = vst [vmem:[#allocation2 + $0xc0] sm:$0xff] %v1393
      %1424 = vst [vmem:[#allocation2 + $0xc8] sm:$0xff] %v1394
      %1425 = vst [vmem:[#allocation2 + $0xd0] sm:$0xff] %v1395
      %1426 = vst [vmem:[#allocation2 + $0xd8] sm:$0xff] %v1396
      %1427 = vst [vmem:[#allocation2 + $0xe0] sm:$0xff] %v1397
      %1428 = vst [vmem:[#allocation2 + $0xe8] sm:$0xff] %v1398
      %v1429 = vrot.slane %v461, 1
      %v1430 = vor.u32 %v458, %v1429
      %v1431 = vrot.slane %v468, 1
      %v1432 = vor.u32 %v465, %v1431
      %v1433 = vrot.slane %v475, 1
      %v1434 = vor.u32 %v472, %v1433
      %v1435 = vrot.slane %v482, 1
      %v1436 = vor.u32 %v479, %v1435
      %v1437 = vrot.slane %v489, 1
      %v1438 = vor.u32 %v486, %v1437
      %v1439 = vrot.slane %v496, 1
      %v1440 = vor.u32 %v493, %v1439
      %v1441 = vrot.slane %v503, 1
      %v1442 = vor.u32 %v500, %v1441
      %v1443 = vrot.slane %v510, 1
      %v1444 = vor.u32 %v507, %v1443
      %v1445 = vrot.slane %v517, 1
      %v1446 = vor.u32 %v514, %v1445
      %v1447 = vrot.slane %v524, 1
      %v1448 = vor.u32 %v521, %v1447
      %v1449 = vrot.slane %v531, 1
      %v1450 = vor.u32 %v528, %v1449
      %v1451 = vrot.slane %v538, 1
      %v1452 = vor.u32 %v535, %v1451
      %v1453 = vrot.slane %v545, 1
      %v1454 = vor.u32 %v542, %v1453
      %v1455 = vrot.slane %v552, 1
      %v1456 = vor.u32 %v549, %v1455
      %v1457 = vrot.slane %v559, 1
      %v1458 = vor.u32 %v556, %v1457
      %v1459 = vrot.slane %v566, 1
      %v1460 = vor.u32 %v563, %v1459
      %vm1477 = vcmask 1047552
      %vm1478 = vsmask.f32 7424
      %vm1479 = vmand %vm1477, %vm1478
      %v1480 = vsel %vm1479, %v1430, 0
      %v1481 = vsel %vm1479, %v1432, 0
      %v1482 = vsel %vm1479, %v1434, 0
      %v1483 = vsel %vm1479, %v1436, 0
      %v1484 = vsel %vm1479, %v1438, 0
      %v1485 = vsel %vm1479, %v1440, 0
      %v1486 = vsel %vm1479, %v1442, 0
      %v1487 = vsel %vm1479, %v1444, 0
      %v1488 = vsel %vm1479, %v1446, 0
      %v1489 = vsel %vm1479, %v1448, 0
      %v1490 = vsel %vm1479, %v1450, 0
      %v1491 = vsel %vm1479, %v1452, 0
      %v1492 = vsel %vm1479, %v1454, 0
      %v1493 = vsel %vm1479, %v1456, 0
      %v1494 = vsel %vm1479, %v1458, 0
      %v1495 = vsel %vm1479, %v1460, 0
      %v1496 = vld [vmem:[%s604] sm:$0xff]
      %v1497 = vld [vmem:[%s604 + $0x8] sm:$0xff]
      %v1498 = vld [vmem:[%s604 + $0x10] sm:$0xff]
      %v1499 = vld [vmem:[%s604 + $0x18] sm:$0xff]
      %v1500 = vld [vmem:[%s604 + $0x20] sm:$0xff]
      %v1501 = vld [vmem:[%s604 + $0x28] sm:$0xff]
      %v1502 = vld [vmem:[%s604 + $0x30] sm:$0xff]
      %v1503 = vld [vmem:[%s604 + $0x38] sm:$0xff]
      %v1504 = vld [vmem:[%s604 + $0x40] sm:$0xff]
      %v1505 = vld [vmem:[%s604 + $0x48] sm:$0xff]
      %v1506 = vld [vmem:[%s604 + $0x50] sm:$0xff]
      %v1507 = vld [vmem:[%s604 + $0x58] sm:$0xff]
      %v1508 = vld [vmem:[%s604 + $0x60] sm:$0xff]
      %v1509 = vld [vmem:[%s604 + $0x68] sm:$0xff]
      %v1510 = vld [vmem:[%s604 + $0x70] sm:$0xff]
      %v1511 = vld [vmem:[%s604 + $0x78] sm:$0xff]
      %v1512 = vld [vmem:[%s604 + $0x80] sm:$0xff]
      %v1513 = vld [vmem:[%s604 + $0x88] sm:$0xff]
      %v1514 = vld [vmem:[%s604 + $0x90] sm:$0xff]
      %v1515 = vld [vmem:[%s604 + $0x98] sm:$0xff]
      %v1516 = vld [vmem:[%s604 + $0xa0] sm:$0xff]
      %v1517 = vld [vmem:[%s604 + $0xa8] sm:$0xff]
      %v1518 = vld [vmem:[%s604 + $0xb0] sm:$0xff]
      %v1519 = vld [vmem:[%s604 + $0xb8] sm:$0xff]
      %v1520 = vld [vmem:[%s604 + $0xc0] sm:$0xff]
      %v1521 = vld [vmem:[%s604 + $0xc8] sm:$0xff]
      %v1522 = vld [vmem:[%s604 + $0xd0] sm:$0xff]
      %v1523 = vld [vmem:[%s604 + $0xd8] sm:$0xff]
      %v1524 = vld [vmem:[%s604 + $0xe0] sm:$0xff]
      %v1525 = vld [vmem:[%s604 + $0xe8] sm:$0xff]
      %v1526 = vunpack.c.l.bf16 %v1480
      %v1527 = vunpack.c.h.bf16 %v1480
      %v1528 = vunpack.c.l.bf16 %v1481
      %v1529 = vunpack.c.h.bf16 %v1481
      %v1530 = vunpack.c.l.bf16 %v1482
      %v1531 = vunpack.c.h.bf16 %v1482
      %v1532 = vunpack.c.l.bf16 %v1483
      %v1533 = vunpack.c.h.bf16 %v1483
      %v1534 = vunpack.c.l.bf16 %v1484
      %v1535 = vunpack.c.h.bf16 %v1484
      %v1536 = vunpack.c.l.bf16 %v1485
      %v1537 = vunpack.c.h.bf16 %v1485
      %v1538 = vunpack.c.l.bf16 %v1486
      %v1539 = vunpack.c.h.bf16 %v1486
      %v1540 = vunpack.c.l.bf16 %v1487
      %v1541 = vunpack.c.h.bf16 %v1487
      %v1542 = vunpack.c.l.bf16 %v1488
      %v1543 = vunpack.c.h.bf16 %v1488
      %v1544 = vunpack.c.l.bf16 %v1489
      %v1545 = vunpack.c.h.bf16 %v1489
      %v1546 = vunpack.c.l.bf16 %v1490
      %v1547 = vunpack.c.h.bf16 %v1490
      %v1548 = vunpack.c.l.bf16 %v1491
      %v1549 = vunpack.c.h.bf16 %v1491
      %v1550 = vunpack.c.l.bf16 %v1492
      %v1551 = vunpack.c.h.bf16 %v1492
      %v1552 = vunpack.c.l.bf16 %v1493
      %v1553 = vunpack.c.h.bf16 %v1493
      %v1554 = vunpack.c.l.bf16 %v1494
      %v1555 = vunpack.c.h.bf16 %v1494
      %v1556 = vlaneseq
      %v1557 = vshrl.u32 %v1556, 7
      %v1558 = vsub.s32 2, %v1557
      %v1559 = vrot.slane %v264, %v1558
      %v1560 = vmul.f32 %v1526, %v1559
      %v1561 = vmul.f32 %v1527, %v1559
      %v1562 = vmul.f32 %v1528, %v1559
      %v1563 = vmul.f32 %v1529, %v1559
      %v1564 = vmul.f32 %v1530, %v1559
      %v1565 = vmul.f32 %v1531, %v1559
      %v1566 = vmul.f32 %v1532, %v1559
      %v1567 = vmul.f32 %v1533, %v1559
      %v1568 = vmul.f32 %v1534, %v1559
      %v1569 = vmul.f32 %v1535, %v1559
      %v1570 = vmul.f32 %v1536, %v1559
      %v1571 = vmul.f32 %v1537, %v1559
      %v1572 = vmul.f32 %v1538, %v1559
      %v1573 = vmul.f32 %v1539, %v1559
      %v1574 = vmul.f32 %v1540, %v1559
      %v1575 = vmul.f32 %v1541, %v1559
      %v1576 = vmul.f32 %v1542, %v1559
      %v1577 = vmul.f32 %v1543, %v1559
      %v1578 = vmul.f32 %v1544, %v1559
      %v1579 = vmul.f32 %v1545, %v1559
      %v1580 = vmul.f32 %v1546, %v1559
      %v1581 = vmul.f32 %v1547, %v1559
      %v1582 = vmul.f32 %v1548, %v1559
      %v1583 = vmul.f32 %v1549, %v1559
      %v1584 = vmul.f32 %v1550, %v1559
      %v1585 = vmul.f32 %v1551, %v1559
      %v1586 = vmul.f32 %v1552, %v1559
      %v1587 = vmul.f32 %v1553, %v1559
      %v1588 = vmul.f32 %v1554, %v1559
      %v1589 = vmul.f32 %v1555, %v1559
      %v1590 = vadd.f32 %v1496, %v1560
      %v1591 = vadd.f32 %v1497, %v1561
      %v1592 = vadd.f32 %v1498, %v1562
      %v1593 = vadd.f32 %v1499, %v1563
      %v1594 = vadd.f32 %v1500, %v1564
      %v1595 = vadd.f32 %v1501, %v1565
      %v1596 = vadd.f32 %v1502, %v1566
      %v1597 = vadd.f32 %v1503, %v1567
      %v1598 = vadd.f32 %v1504, %v1568
      %v1599 = vadd.f32 %v1505, %v1569
      %v1600 = vadd.f32 %v1506, %v1570
      %v1601 = vadd.f32 %v1507, %v1571
      %v1602 = vadd.f32 %v1508, %v1572
      %v1603 = vadd.f32 %v1509, %v1573
      %v1604 = vadd.f32 %v1510, %v1574
      %v1605 = vadd.f32 %v1511, %v1575
      %v1606 = vadd.f32 %v1512, %v1576
      %v1607 = vadd.f32 %v1513, %v1577
      %v1608 = vadd.f32 %v1514, %v1578
      %v1609 = vadd.f32 %v1515, %v1579
      %v1610 = vadd.f32 %v1516, %v1580
      %v1611 = vadd.f32 %v1517, %v1581
      %v1612 = vadd.f32 %v1518, %v1582
      %v1613 = vadd.f32 %v1519, %v1583
      %v1614 = vadd.f32 %v1520, %v1584
      %v1615 = vadd.f32 %v1521, %v1585
      %v1616 = vadd.f32 %v1522, %v1586
      %v1617 = vadd.f32 %v1523, %v1587
      %v1618 = vadd.f32 %v1524, %v1588
      %v1619 = vadd.f32 %v1525, %v1589
      %1620 = vst [vmem:[%s604] sm:$0xff] %v1590
      %1621 = vst [vmem:[%s604 + $0x8] sm:$0xff] %v1591
      %1622 = vst [vmem:[%s604 + $0x10] sm:$0xff] %v1592
      %1623 = vst [vmem:[%s604 + $0x18] sm:$0xff] %v1593
      %1624 = vst [vmem:[%s604 + $0x20] sm:$0xff] %v1594
      %1625 = vst [vmem:[%s604 + $0x28] sm:$0xff] %v1595
      %1626 = vst [vmem:[%s604 + $0x30] sm:$0xff] %v1596
      %1627 = vst [vmem:[%s604 + $0x38] sm:$0xff] %v1597
      %1628 = vst [vmem:[%s604 + $0x40] sm:$0xff] %v1598
      %1629 = vst [vmem:[%s604 + $0x48] sm:$0xff] %v1599
      %1630 = vst [vmem:[%s604 + $0x50] sm:$0xff] %v1600
      %1631 = vst [vmem:[%s604 + $0x58] sm:$0xff] %v1601
      %1632 = vst [vmem:[%s604 + $0x60] sm:$0xff] %v1602
      %1633 = vst [vmem:[%s604 + $0x68] sm:$0xff] %v1603
      %1634 = vst [vmem:[%s604 + $0x70] sm:$0xff] %v1604
      %1635 = vst [vmem:[%s604 + $0x78] sm:$0xff] %v1605
      %1636 = vst [vmem:[%s604 + $0x80] sm:$0xff] %v1606
      %1637 = vst [vmem:[%s604 + $0x88] sm:$0xff] %v1607
      %1638 = vst [vmem:[%s604 + $0x90] sm:$0xff] %v1608
      %1639 = vst [vmem:[%s604 + $0x98] sm:$0xff] %v1609
      %1640 = vst [vmem:[%s604 + $0xa0] sm:$0xff] %v1610
      %1641 = vst [vmem:[%s604 + $0xa8] sm:$0xff] %v1611
      %1642 = vst [vmem:[%s604 + $0xb0] sm:$0xff] %v1612
      %1643 = vst [vmem:[%s604 + $0xb8] sm:$0xff] %v1613
      %1644 = vst [vmem:[%s604 + $0xc0] sm:$0xff] %v1614
      %1645 = vst [vmem:[%s604 + $0xc8] sm:$0xff] %v1615
      %1646 = vst [vmem:[%s604 + $0xd0] sm:$0xff] %v1616
      %1647 = vst [vmem:[%s604 + $0xd8] sm:$0xff] %v1617
      %1648 = vst [vmem:[%s604 + $0xe0] sm:$0xff] %v1618
      %1649 = vst [vmem:[%s604 + $0xe8] sm:$0xff] %v1619
      %v1650 = vld [vmem:[#allocation2] sm:$0xff]
      %v1651 = vld [vmem:[#allocation2 + $0x8] sm:$0xff]
      %v1652 = vld [vmem:[#allocation2 + $0x10] sm:$0xff]
      %v1653 = vld [vmem:[#allocation2 + $0x18] sm:$0xff]
      %v1654 = vld [vmem:[#allocation2 + $0x20] sm:$0xff]
      %v1655 = vld [vmem:[#allocation2 + $0x28] sm:$0xff]
      %v1656 = vld [vmem:[#allocation2 + $0x30] sm:$0xff]
      %v1657 = vld [vmem:[#allocation2 + $0x38] sm:$0xff]
      %v1658 = vld [vmem:[#allocation2 + $0x40] sm:$0xff]
      %v1659 = vld [vmem:[#allocation2 + $0x48] sm:$0xff]
      %v1660 = vld [vmem:[#allocation2 + $0x50] sm:$0xff]
      %v1661 = vld [vmem:[#allocation2 + $0x58] sm:$0xff]
      %v1662 = vld [vmem:[#allocation2 + $0x60] sm:$0xff]
      %v1663 = vld [vmem:[#allocation2 + $0x68] sm:$0xff]
      %v1664 = vld [vmem:[#allocation2 + $0x70] sm:$0xff]
      %v1665 = vld [vmem:[#allocation2 + $0x78] sm:$0xff]
      %v1666 = vld [vmem:[#allocation2 + $0x80] sm:$0xff]
      %v1667 = vld [vmem:[#allocation2 + $0x88] sm:$0xff]
      %v1668 = vld [vmem:[#allocation2 + $0x90] sm:$0xff]
      %v1669 = vld [vmem:[#allocation2 + $0x98] sm:$0xff]
      %v1670 = vld [vmem:[#allocation2 + $0xa0] sm:$0xff]
      %v1671 = vld [vmem:[#allocation2 + $0xa8] sm:$0xff]
      %v1672 = vld [vmem:[#allocation2 + $0xb0] sm:$0xff]
      %v1673 = vld [vmem:[#allocation2 + $0xb8] sm:$0xff]
      %v1674 = vld [vmem:[#allocation2 + $0xc0] sm:$0xff]
      %v1675 = vld [vmem:[#allocation2 + $0xc8] sm:$0xff]
      %v1676 = vld [vmem:[#allocation2 + $0xd0] sm:$0xff]
      %v1677 = vld [vmem:[#allocation2 + $0xd8] sm:$0xff]
      %v1678 = vld [vmem:[#allocation2 + $0xe0] sm:$0xff]
      %v1679 = vld [vmem:[#allocation2 + $0xe8] sm:$0xff]
      %v1680 = vld [vmem:[#allocation2 + $0xf0] sm:$0xff]
      %v1681 = vld [vmem:[#allocation2 + $0xf8] sm:$0xff]
      %v1682 = vunpack.c.l.bf16 %v1495
      %v1683 = vunpack.c.h.bf16 %v1495
      %v1684 = vlaneseq
      %v1685 = vshrl.u32 %v1684, 7
      %v1686 = vsub.s32 2, %v1685
      %v1687 = vrot.slane %v265, %v1686
      %v1688 = vmul.f32 %v1526, %v1687
      %v1689 = vmul.f32 %v1527, %v1687
      %v1690 = vmul.f32 %v1528, %v1687
      %v1691 = vmul.f32 %v1529, %v1687
      %v1692 = vmul.f32 %v1530, %v1687
      %v1693 = vmul.f32 %v1531, %v1687
      %v1694 = vmul.f32 %v1532, %v1687
      %v1695 = vmul.f32 %v1533, %v1687
      %v1696 = vmul.f32 %v1534, %v1687
      %v1697 = vmul.f32 %v1535, %v1687
      %v1698 = vmul.f32 %v1536, %v1687
      %v1699 = vmul.f32 %v1537, %v1687
      %v1700 = vmul.f32 %v1538, %v1687
      %v1701 = vmul.f32 %v1539, %v1687
      %v1702 = vmul.f32 %v1540, %v1687
      %v1703 = vmul.f32 %v1541, %v1687
      %v1704 = vmul.f32 %v1542, %v1687
      %v1705 = vmul.f32 %v1543, %v1687
      %v1706 = vmul.f32 %v1544, %v1687
      %v1707 = vmul.f32 %v1545, %v1687
      %v1708 = vmul.f32 %v1546, %v1687
      %v1709 = vmul.f32 %v1547, %v1687
      %v1710 = vmul.f32 %v1548, %v1687
      %v1711 = vmul.f32 %v1549, %v1687
      %v1712 = vmul.f32 %v1550, %v1687
      %v1713 = vmul.f32 %v1551, %v1687
      %v1714 = vmul.f32 %v1552, %v1687
      %v1715 = vmul.f32 %v1553, %v1687
      %v1716 = vmul.f32 %v1554, %v1687
      %v1717 = vmul.f32 %v1555, %v1687
      %v1718 = vmul.f32 %v1682, %v1687
      %v1719 = vmul.f32 %v1683, %v1687
      %v1720 = vadd.f32 %v1650, %v1688
      %v1721 = vadd.f32 %v1651, %v1689
      %v1722 = vadd.f32 %v1652, %v1690
      %v1723 = vadd.f32 %v1653, %v1691
      %v1724 = vadd.f32 %v1654, %v1692
      %v1725 = vadd.f32 %v1655, %v1693
      %v1726 = vadd.f32 %v1656, %v1694
      %v1727 = vadd.f32 %v1657, %v1695
      %v1728 = vadd.f32 %v1658, %v1696
      %v1729 = vadd.f32 %v1659, %v1697
      %v1730 = vadd.f32 %v1660, %v1698
      %v1731 = vadd.f32 %v1661, %v1699
      %v1732 = vadd.f32 %v1662, %v1700
      %v1733 = vadd.f32 %v1663, %v1701
      %v1734 = vadd.f32 %v1664, %v1702
      %v1735 = vadd.f32 %v1665, %v1703
      %v1736 = vadd.f32 %v1666, %v1704
      %v1737 = vadd.f32 %v1667, %v1705
      %v1738 = vadd.f32 %v1668, %v1706
      %v1739 = vadd.f32 %v1669, %v1707
      %v1740 = vadd.f32 %v1670, %v1708
      %v1741 = vadd.f32 %v1671, %v1709
      %v1742 = vadd.f32 %v1672, %v1710
      %v1743 = vadd.f32 %v1673, %v1711
      %v1744 = vadd.f32 %v1674, %v1712
      %v1745 = vadd.f32 %v1675, %v1713
      %v1746 = vadd.f32 %v1676, %v1714
      %v1747 = vadd.f32 %v1677, %v1715
      %v1748 = vadd.f32 %v1678, %v1716
      %v1749 = vadd.f32 %v1679, %v1717
      %v1750 = vadd.f32 %v1680, %v1718
      %v1751 = vadd.f32 %v1681, %v1719
      %1752 = vst [vmem:[#allocation2] sm:$0xff] %v1720
      %1753 = vst [vmem:[#allocation2 + $0x8] sm:$0xff] %v1721
      %1754 = vst [vmem:[#allocation2 + $0x10] sm:$0xff] %v1722
      %1755 = vst [vmem:[#allocation2 + $0x18] sm:$0xff] %v1723
      %1756 = vst [vmem:[#allocation2 + $0x20] sm:$0xff] %v1724
      %1757 = vst [vmem:[#allocation2 + $0x28] sm:$0xff] %v1725
      %1758 = vst [vmem:[#allocation2 + $0x30] sm:$0xff] %v1726
      %1759 = vst [vmem:[#allocation2 + $0x38] sm:$0xff] %v1727
      %1760 = vst [vmem:[#allocation2 + $0x40] sm:$0xff] %v1728
      %1761 = vst [vmem:[#allocation2 + $0x48] sm:$0xff] %v1729
      %1762 = vst [vmem:[#allocation2 + $0x50] sm:$0xff] %v1730
      %1763 = vst [vmem:[#allocation2 + $0x58] sm:$0xff] %v1731
      %1764 = vst [vmem:[#allocation2 + $0x60] sm:$0xff] %v1732
      %1765 = vst [vmem:[#allocation2 + $0x68] sm:$0xff] %v1733
      %1766 = vst [vmem:[#allocation2 + $0x70] sm:$0xff] %v1734
      %1767 = vst [vmem:[#allocation2 + $0x78] sm:$0xff] %v1735
      %1768 = vst [vmem:[#allocation2 + $0x80] sm:$0xff] %v1736
      %1769 = vst [vmem:[#allocation2 + $0x88] sm:$0xff] %v1737
      %1770 = vst [vmem:[#allocation2 + $0x90] sm:$0xff] %v1738
      %1771 = vst [vmem:[#allocation2 + $0x98] sm:$0xff] %v1739
      %1772 = vst [vmem:[#allocation2 + $0xa0] sm:$0xff] %v1740
      %1773 = vst [vmem:[#allocation2 + $0xa8] sm:$0xff] %v1741
      %1774 = vst [vmem:[#allocation2 + $0xb0] sm:$0xff] %v1742
      %1775 = vst [vmem:[#allocation2 + $0xb8] sm:$0xff] %v1743
      %1776 = vst [vmem:[#allocation2 + $0xc0] sm:$0xff] %v1744
      %1777 = vst [vmem:[#allocation2 + $0xc8] sm:$0xff] %v1745
      %1778 = vst [vmem:[#allocation2 + $0xd0] sm:$0xff] %v1746
      %1779 = vst [vmem:[#allocation2 + $0xd8] sm:$0xff] %v1747
      %1780 = vst [vmem:[#allocation2 + $0xe0] sm:$0xff] %v1748
      %1781 = vst [vmem:[#allocation2 + $0xe8] sm:$0xff] %v1749
      %1782 = vst [vmem:[#allocation2 + $0xf0] sm:$0xff] %v1750
      %1783 = vst [vmem:[#allocation2 + $0xf8] sm:$0xff] %v1751
      %v1784 = vld [vmem:[#allocation2] sm:$0xff]
      %v1785 = vld [vmem:[#allocation2 + $0x8] sm:$0xff]
      %v1786 = vld [vmem:[#allocation2 + $0x10] sm:$0xff]
      %v1787 = vld [vmem:[#allocation2 + $0x18] sm:$0xff]
      %v1788 = vld [vmem:[#allocation2 + $0x20] sm:$0xff]
      %v1789 = vld [vmem:[#allocation2 + $0x28] sm:$0xff]
      %v1790 = vld [vmem:[#allocation2 + $0x30] sm:$0xff]
      %v1791 = vld [vmem:[#allocation2 + $0x38] sm:$0xff]
      %v1792 = vld [vmem:[#allocation2 + $0x40] sm:$0xff]
      %v1793 = vld [vmem:[#allocation2 + $0x48] sm:$0xff]
      %v1794 = vld [vmem:[#allocation2 + $0x50] sm:$0xff]
      %v1795 = vld [vmem:[#allocation2 + $0x58] sm:$0xff]
      %v1796 = vld [vmem:[#allocation2 + $0x60] sm:$0xff]
      %v1797 = vld [vmem:[#allocation2 + $0x68] sm:$0xff]
      %v1798 = vld [vmem:[#allocation2 + $0x70] sm:$0xff]
      %v1799 = vld [vmem:[#allocation2 + $0x78] sm:$0xff]
      %v1800 = vld [vmem:[#allocation2 + $0x80] sm:$0xff]
      %v1801 = vld [vmem:[#allocation2 + $0x88] sm:$0xff]
      %v1802 = vld [vmem:[#allocation2 + $0x90] sm:$0xff]
      %v1803 = vld [vmem:[#allocation2 + $0x98] sm:$0xff]
      %v1804 = vld [vmem:[#allocation2 + $0xa0] sm:$0xff]
      %v1805 = vld [vmem:[#allocation2 + $0xa8] sm:$0xff]
      %v1806 = vld [vmem:[#allocation2 + $0xb0] sm:$0xff]
      %v1807 = vld [vmem:[#allocation2 + $0xb8] sm:$0xff]
      %v1808 = vld [vmem:[#allocation2 + $0xc0] sm:$0xff]
      %v1809 = vld [vmem:[#allocation2 + $0xc8] sm:$0xff]
      %v1810 = vld [vmem:[#allocation2 + $0xd0] sm:$0xff]
      %v1811 = vld [vmem:[#allocation2 + $0xd8] sm:$0xff]
      %v1812 = vld [vmem:[#allocation2 + $0xe0] sm:$0xff]
      %v1813 = vld [vmem:[#allocation2 + $0xe8] sm:$0xff]
      %v1814 = vlaneseq
      %v1815 = vshrl.u32 %v1814, 7
      %v1816 = vsub.s32 2, %v1815
      %v1817 = vrot.slane %v266, %v1816
      %v1818 = vmul.f32 %v1528, %v1817
      %v1819 = vmul.f32 %v1529, %v1817
      %v1820 = vmul.f32 %v1530, %v1817
      %v1821 = vmul.f32 %v1531, %v1817
      %v1822 = vmul.f32 %v1532, %v1817
      %v1823 = vmul.f32 %v1533, %v1817
      %v1824 = vmul.f32 %v1534, %v1817
      %v1825 = vmul.f32 %v1535, %v1817
      %v1826 = vmul.f32 %v1536, %v1817
      %v1827 = vmul.f32 %v1537, %v1817
      %v1828 = vmul.f32 %v1538, %v1817
      %v1829 = vmul.f32 %v1539, %v1817
      %v1830 = vmul.f32 %v1540, %v1817
      %v1831 = vmul.f32 %v1541, %v1817
      %v1832 = vmul.f32 %v1542, %v1817
      %v1833 = vmul.f32 %v1543, %v1817
      %v1834 = vmul.f32 %v1544, %v1817
      %v1835 = vmul.f32 %v1545, %v1817
      %v1836 = vmul.f32 %v1546, %v1817
      %v1837 = vmul.f32 %v1547, %v1817
      %v1838 = vmul.f32 %v1548, %v1817
      %v1839 = vmul.f32 %v1549, %v1817
      %v1840 = vmul.f32 %v1550, %v1817
      %v1841 = vmul.f32 %v1551, %v1817
      %v1842 = vmul.f32 %v1552, %v1817
      %v1843 = vmul.f32 %v1553, %v1817
      %v1844 = vmul.f32 %v1554, %v1817
      %v1845 = vmul.f32 %v1555, %v1817
      %v1846 = vmul.f32 %v1682, %v1817
      %v1847 = vmul.f32 %v1683, %v1817
      %v1848 = vadd.f32 %v1784, %v1818
      %v1849 = vadd.f32 %v1785, %v1819
      %v1850 = vadd.f32 %v1786, %v1820
      %v1851 = vadd.f32 %v1787, %v1821
      %v1852 = vadd.f32 %v1788, %v1822
      %v1853 = vadd.f32 %v1789, %v1823
      %v1854 = vadd.f32 %v1790, %v1824
      %v1855 = vadd.f32 %v1791, %v1825
      %v1856 = vadd.f32 %v1792, %v1826
      %v1857 = vadd.f32 %v1793, %v1827
      %v1858 = vadd.f32 %v1794, %v1828
      %v1859 = vadd.f32 %v1795, %v1829
      %v1860 = vadd.f32 %v1796, %v1830
      %v1861 = vadd.f32 %v1797, %v1831
      %v1862 = vadd.f32 %v1798, %v1832
      %v1863 = vadd.f32 %v1799, %v1833
      %v1864 = vadd.f32 %v1800, %v1834
      %v1865 = vadd.f32 %v1801, %v1835
      %v1866 = vadd.f32 %v1802, %v1836
      %v1867 = vadd.f32 %v1803, %v1837
      %v1868 = vadd.f32 %v1804, %v1838
      %v1869 = vadd.f32 %v1805, %v1839
      %v1870 = vadd.f32 %v1806, %v1840
      %v1871 = vadd.f32 %v1807, %v1841
      %v1872 = vadd.f32 %v1808, %v1842
      %v1873 = vadd.f32 %v1809, %v1843
      %v1874 = vadd.f32 %v1810, %v1844
      %v1875 = vadd.f32 %v1811, %v1845
      %v1876 = vadd.f32 %v1812, %v1846
      %v1877 = vadd.f32 %v1813, %v1847
      %1878 = vst [vmem:[#allocation2] sm:$0xff] %v1848
      %1879 = vst [vmem:[#allocation2 + $0x8] sm:$0xff] %v1849
      %1880 = vst [vmem:[#allocation2 + $0x10] sm:$0xff] %v1850
      %1881 = vst [vmem:[#allocation2 + $0x18] sm:$0xff] %v1851
      %1882 = vst [vmem:[#allocation2 + $0x20] sm:$0xff] %v1852
      %1883 = vst [vmem:[#allocation2 + $0x28] sm:$0xff] %v1853
      %1884 = vst [vmem:[#allocation2 + $0x30] sm:$0xff] %v1854
      %1885 = vst [vmem:[#allocation2 + $0x38] sm:$0xff] %v1855
      %1886 = vst [vmem:[#allocation2 + $0x40] sm:$0xff] %v1856
      %1887 = vst [vmem:[#allocation2 + $0x48] sm:$0xff] %v1857
      %1888 = vst [vmem:[#allocation2 + $0x50] sm:$0xff] %v1858
      %1889 = vst [vmem:[#allocation2 + $0x58] sm:$0xff] %v1859
      %1890 = vst [vmem:[#allocation2 + $0x60] sm:$0xff] %v1860
      %1891 = vst [vmem:[#allocation2 + $0x68] sm:$0xff] %v1861
      %1892 = vst [vmem:[#allocation2 + $0x70] sm:$0xff] %v1862
      %1893 = vst [vmem:[#allocation2 + $0x78] sm:$0xff] %v1863
      %1894 = vst [vmem:[#allocation2 + $0x80] sm:$0xff] %v1864
      %1895 = vst [vmem:[#allocation2 + $0x88] sm:$0xff] %v1865
      %1896 = vst [vmem:[#allocation2 + $0x90] sm:$0xff] %v1866
      %1897 = vst [vmem:[#allocation2 + $0x98] sm:$0xff] %v1867
      %1898 = vst [vmem:[#allocation2 + $0xa0] sm:$0xff] %v1868
      %1899 = vst [vmem:[#allocation2 + $0xa8] sm:$0xff] %v1869
      %1900 = vst [vmem:[#allocation2 + $0xb0] sm:$0xff] %v1870
      %1901 = vst [vmem:[#allocation2 + $0xb8] sm:$0xff] %v1871
      %1902 = vst [vmem:[#allocation2 + $0xc0] sm:$0xff] %v1872
      %1903 = vst [vmem:[#allocation2 + $0xc8] sm:$0xff] %v1873
      %1904 = vst [vmem:[#allocation2 + $0xd0] sm:$0xff] %v1874
      %1905 = vst [vmem:[#allocation2 + $0xd8] sm:$0xff] %v1875
      %1906 = vst [vmem:[#allocation2 + $0xe0] sm:$0xff] %v1876
      %1907 = vst [vmem:[#allocation2 + $0xe8] sm:$0xff] %v1877
      %v1908 = vld [vmem:[#allocation2] sm:$0xff]
      %v1909 = vld [vmem:[#allocation2 + $0x8] sm:$0xff]
      %v1910 = vld [vmem:[#allocation2 + $0x10] sm:$0xff]
      %v1911 = vld [vmem:[#allocation2 + $0x18] sm:$0xff]
      %v1912 = vld [vmem:[#allocation2 + $0x20] sm:$0xff]
      %v1913 = vld [vmem:[#allocation2 + $0x28] sm:$0xff]
      %v1914 = vld [vmem:[#allocation2 + $0x30] sm:$0xff]
      %v1915 = vld [vmem:[#allocation2 + $0x38] sm:$0xff]
      %v1916 = vld [vmem:[#allocation2 + $0x40] sm:$0xff]
      %v1917 = vld [vmem:[#allocation2 + $0x48] sm:$0xff]
      %v1918 = vld [vmem:[#allocation2 + $0x50] sm:$0xff]
      %v1919 = vld [vmem:[#allocation2 + $0x58] sm:$0xff]
      %v1920 = vld [vmem:[#allocation2 + $0x60] sm:$0xff]
      %v1921 = vld [vmem:[#allocation2 + $0x68] sm:$0xff]
      %v1922 = vld [vmem:[#allocation2 + $0x70] sm:$0xff]
      %v1923 = vld [vmem:[#allocation2 + $0x78] sm:$0xff]
      %v1924 = vld [vmem:[#allocation2 + $0x80] sm:$0xff]
      %v1925 = vld [vmem:[#allocation2 + $0x88] sm:$0xff]
      %v1926 = vld [vmem:[#allocation2 + $0x90] sm:$0xff]
      %v1927 = vld [vmem:[#allocation2 + $0x98] sm:$0xff]
      %v1928 = vld [vmem:[#allocation2 + $0xa0] sm:$0xff]
      %v1929 = vld [vmem:[#allocation2 + $0xa8] sm:$0xff]
      %v1930 = vld [vmem:[#allocation2 + $0xb0] sm:$0xff]
      %v1931 = vld [vmem:[#allocation2 + $0xb8] sm:$0xff]
      %v1932 = vld [vmem:[#allocation2 + $0xc0] sm:$0xff]
      %v1933 = vld [vmem:[#allocation2 + $0xc8] sm:$0xff]
      %v1934 = vld [vmem:[#allocation2 + $0xd0] sm:$0xff]
      %v1935 = vld [vmem:[#allocation2 + $0xd8] sm:$0xff]
      %v1936 = vld [vmem:[#allocation2 + $0xe0] sm:$0xff]
      %v1937 = vld [vmem:[#allocation2 + $0xe8] sm:$0xff]
      %v1938 = vld [vmem:[#allocation2 + $0xf0] sm:$0xff]
      %v1939 = vld [vmem:[#allocation2 + $0xf8] sm:$0xff]
      %v1940 = vld [vmem:[%s4] sm:$0x1]
      %v1942 = vlaneseq
      %v1943 = vshrl.u32 %v1942, 7
      %v1944 = vsub.s32 0, %v1943
      %v1945 = vrot.slane %v1940, %v1944
      %v1947 = vadd.f32 %v1908, %v1945
      %v1948 = vadd.f32 %v1909, %v1945
      %v1949 = vadd.f32 %v1910, %v1945
      %v1950 = vadd.f32 %v1911, %v1945
      %v1951 = vadd.f32 %v1912, %v1945
      %v1952 = vadd.f32 %v1913, %v1945
      %v1953 = vadd.f32 %v1914, %v1945
      %v1954 = vadd.f32 %v1915, %v1945
      %v1955 = vadd.f32 %v1916, %v1945
      %v1956 = vadd.f32 %v1917, %v1945
      %v1957 = vadd.f32 %v1918, %v1945
      %v1958 = vadd.f32 %v1919, %v1945
      %v1959 = vadd.f32 %v1920, %v1945
      %v1960 = vadd.f32 %v1921, %v1945
      %v1961 = vadd.f32 %v1922, %v1945
      %v1962 = vadd.f32 %v1923, %v1945
      %v1963 = vadd.f32 %v1924, %v1945
      %v1964 = vadd.f32 %v1925, %v1945
      %v1965 = vadd.f32 %v1926, %v1945
      %v1966 = vadd.f32 %v1927, %v1945
      %v1967 = vadd.f32 %v1928, %v1945
      %v1968 = vadd.f32 %v1929, %v1945
      %v1969 = vadd.f32 %v1930, %v1945
      %v1970 = vadd.f32 %v1931, %v1945
      %v1971 = vadd.f32 %v1932, %v1945
      %v1972 = vadd.f32 %v1933, %v1945
      %v1973 = vadd.f32 %v1934, %v1945
      %v1974 = vadd.f32 %v1935, %v1945
      %v1975 = vadd.f32 %v1936, %v1945
      %v1976 = vadd.f32 %v1937, %v1945
      %v1977 = vadd.f32 %v1938, %v1945
      %v1978 = vadd.f32 %v1939, %v1945
      %v1979 = vmul.f32 %v1947, 0.5
      %v1980 = vmul.f32 %v1948, 0.5
      %v1981 = vmul.f32 %v1949, 0.5
      %v1982 = vmul.f32 %v1950, 0.5
      %v1983 = vmul.f32 %v1951, 0.5
      %v1984 = vmul.f32 %v1952, 0.5
      %v1985 = vmul.f32 %v1953, 0.5
      %v1986 = vmul.f32 %v1954, 0.5
      %v1987 = vmul.f32 %v1955, 0.5
      %v1988 = vmul.f32 %v1956, 0.5
      %v1989 = vmul.f32 %v1957, 0.5
      %v1990 = vmul.f32 %v1958, 0.5
      %v1991 = vmul.f32 %v1959, 0.5
      %v1992 = vmul.f32 %v1960, 0.5
      %v1993 = vmul.f32 %v1961, 0.5
      %v1994 = vmul.f32 %v1962, 0.5
      %v1995 = vmul.f32 %v1963, 0.5
      %v1996 = vmul.f32 %v1964, 0.5
      %v1997 = vmul.f32 %v1965, 0.5
      %v1998 = vmul.f32 %v1966, 0.5
      %v1999 = vmul.f32 %v1967, 0.5
      %v2000 = vmul.f32 %v1968, 0.5
      %v2001 = vmul.f32 %v1969, 0.5
      %v2002 = vmul.f32 %v1970, 0.5
      %v2003 = vmul.f32 %v1971, 0.5
      %v2004 = vmul.f32 %v1972, 0.5
      %v2005 = vmul.f32 %v1973, 0.5
      %v2006 = vmul.f32 %v1974, 0.5
      %v2007 = vmul.f32 %v1975, 0.5
      %v2008 = vmul.f32 %v1976, 0.5
      %v2009 = vmul.f32 %v1977, 0.5
      %v2010 = vmul.f32 %v1978, 0.5
      %v2011 = vmul.f32 %v1947, 0.70710677
      %v2012 = vmul.f32 %v1948, 0.70710677
      %v2013 = vmul.f32 %v1949, 0.70710677
      %v2014 = vmul.f32 %v1950, 0.70710677
      %v2015 = vmul.f32 %v1951, 0.70710677
      %v2016 = vmul.f32 %v1952, 0.70710677
      %v2017 = vmul.f32 %v1953, 0.70710677
      %v2018 = vmul.f32 %v1954, 0.70710677
      %v2019 = vmul.f32 %v1955, 0.70710677
      %v2020 = vmul.f32 %v1956, 0.70710677
      %v2021 = vmul.f32 %v1957, 0.70710677
      %v2022 = vmul.f32 %v1958, 0.70710677
      %v2023 = vmul.f32 %v1959, 0.70710677
      %v2024 = vmul.f32 %v1960, 0.70710677
      %v2025 = vmul.f32 %v1961, 0.70710677
      %v2026 = vmul.f32 %v1962, 0.70710677
      %v2027 = vmul.f32 %v1963, 0.70710677
      %v2028 = vmul.f32 %v1964, 0.70710677
      %v2029 = vmul.f32 %v1965, 0.70710677
      %v2030 = vmul.f32 %v1966, 0.70710677
      %v2031 = vmul.f32 %v1967, 0.70710677
      %v2032 = vmul.f32 %v1968, 0.70710677
      %v2033 = vmul.f32 %v1969, 0.70710677
      %v2034 = vmul.f32 %v1970, 0.70710677
      %v2035 = vmul.f32 %v1971, 0.70710677
      %v2036 = vmul.f32 %v1972, 0.70710677
      %v2037 = vmul.f32 %v1973, 0.70710677
      %v2038 = vmul.f32 %v1974, 0.70710677
      %v2039 = vmul.f32 %v1975, 0.70710677
      %v2040 = vmul.f32 %v1976, 0.70710677
      %v2041 = vmul.f32 %v1977, 0.70710677
      %v2042 = vmul.f32 %v1978, 0.70710677
      %v2043 = verf.f32.pop %v2011
      %v2044 = verf.f32.pop %v2012
      %v2045 = verf.f32.pop %v2013
      %v2046 = verf.f32.pop %v2014
      %v2047 = verf.f32.pop %v2015
      %v2048 = verf.f32.pop %v2016
      %v2049 = verf.f32.pop %v2017
      %v2050 = verf.f32.pop %v2018
      %v2051 = verf.f32.pop %v2019
      %v2052 = verf.f32.pop %v2020
      %v2053 = verf.f32.pop %v2021
      %v2054 = verf.f32.pop %v2022
      %v2055 = verf.f32.pop %v2023
      %v2056 = verf.f32.pop %v2024
      %v2057 = verf.f32.pop %v2025
      %v2058 = verf.f32.pop %v2026
      %v2059 = verf.f32.pop %v2027
      %v2060 = verf.f32.pop %v2028
      %v2061 = verf.f32.pop %v2029
      %v2062 = verf.f32.pop %v2030
      %v2063 = verf.f32.pop %v2031
      %v2064 = verf.f32.pop %v2032
      %v2065 = verf.f32.pop %v2033
      %v2066 = verf.f32.pop %v2034
      %v2067 = verf.f32.pop %v2035
      %v2068 = verf.f32.pop %v2036
      %v2069 = verf.f32.pop %v2037
      %v2070 = verf.f32.pop %v2038
      %v2071 = verf.f32.pop %v2039
      %v2072 = verf.f32.pop %v2040
      %v2073 = verf.f32.pop %v2041
      %v2074 = verf.f32.pop %v2042
      %v2075 = vadd.f32 %v2043, 1.0
      %v2076 = vadd.f32 %v2044, 1.0
      %v2077 = vadd.f32 %v2045, 1.0
      %v2078 = vadd.f32 %v2046, 1.0
      %v2079 = vadd.f32 %v2047, 1.0
      %v2080 = vadd.f32 %v2048, 1.0
      %v2081 = vadd.f32 %v2049, 1.0
      %v2082 = vadd.f32 %v2050, 1.0
      %v2083 = vadd.f32 %v2051, 1.0
      %v2084 = vadd.f32 %v2052, 1.0
      %v2085 = vadd.f32 %v2053, 1.0
      %v2086 = vadd.f32 %v2054, 1.0
      %v2087 = vadd.f32 %v2055, 1.0
      %v2088 = vadd.f32 %v2056, 1.0
      %v2089 = vadd.f32 %v2057, 1.0
      %v2090 = vadd.f32 %v2058, 1.0
      %v2091 = vadd.f32 %v2059, 1.0
      %v2092 = vadd.f32 %v2060, 1.0
      %v2093 = vadd.f32 %v2061, 1.0
      %v2094 = vadd.f32 %v2062, 1.0
      %v2095 = vadd.f32 %v2063, 1.0
      %v2096 = vadd.f32 %v2064, 1.0
      %v2097 = vadd.f32 %v2065, 1.0
      %v2098 = vadd.f32 %v2066, 1.0
      %v2099 = vadd.f32 %v2067, 1.0
      %v2100 = vadd.f32 %v2068, 1.0
      %v2101 = vadd.f32 %v2069, 1.0
      %v2102 = vadd.f32 %v2070, 1.0
      %v2103 = vadd.f32 %v2071, 1.0
      %v2104 = vadd.f32 %v2072, 1.0
      %v2105 = vadd.f32 %v2073, 1.0
      %v2106 = vadd.f32 %v2074, 1.0
      %v2107 = vmul.f32 %v1979, %v2075
      %v2108 = vmul.f32 %v1980, %v2076
      %v2109 = vmul.f32 %v1981, %v2077
      %v2110 = vmul.f32 %v1982, %v2078
      %v2111 = vmul.f32 %v1983, %v2079
      %v2112 = vmul.f32 %v1984, %v2080
      %v2113 = vmul.f32 %v1985, %v2081
      %v2114 = vmul.f32 %v1986, %v2082
      %v2115 = vmul.f32 %v1987, %v2083
      %v2116 = vmul.f32 %v1988, %v2084
      %v2117 = vmul.f32 %v1989, %v2085
      %v2118 = vmul.f32 %v1990, %v2086
      %v2119 = vmul.f32 %v1991, %v2087
      %v2120 = vmul.f32 %v1992, %v2088
      %v2121 = vmul.f32 %v1993, %v2089
      %v2122 = vmul.f32 %v1994, %v2090
      %v2123 = vmul.f32 %v1995, %v2091
      %v2124 = vmul.f32 %v1996, %v2092
      %v2125 = vmul.f32 %v1997, %v2093
      %v2126 = vmul.f32 %v1998, %v2094
      %v2127 = vmul.f32 %v1999, %v2095
      %v2128 = vmul.f32 %v2000, %v2096
      %v2129 = vmul.f32 %v2001, %v2097
      %v2130 = vmul.f32 %v2002, %v2098
      %v2131 = vmul.f32 %v2003, %v2099
      %v2132 = vmul.f32 %v2004, %v2100
      %v2133 = vmul.f32 %v2005, %v2101
      %v2134 = vmul.f32 %v2006, %v2102
      %v2135 = vmul.f32 %v2007, %v2103
      %v2136 = vmul.f32 %v2008, %v2104
      %v2137 = vmul.f32 %v2009, %v2105
      %v2138 = vmul.f32 %v2010, %v2106
      %v2139 = vpack.c.bf16 %v2108, %v2107
      %v2140 = vpack.c.bf16 %v2110, %v2109
      %v2141 = vpack.c.bf16 %v2112, %v2111
      %v2142 = vpack.c.bf16 %v2114, %v2113
      %v2143 = vpack.c.bf16 %v2116, %v2115
      %v2144 = vpack.c.bf16 %v2118, %v2117
      %v2145 = vpack.c.bf16 %v2120, %v2119
      %v2146 = vpack.c.bf16 %v2122, %v2121
      %v2147 = vpack.c.bf16 %v2124, %v2123
      %v2148 = vpack.c.bf16 %v2126, %v2125
      %v2149 = vpack.c.bf16 %v2128, %v2127
      %v2150 = vpack.c.bf16 %v2130, %v2129
      %v2151 = vpack.c.bf16 %v2132, %v2131
      %v2152 = vpack.c.bf16 %v2134, %v2133
      %v2153 = vpack.c.bf16 %v2136, %v2135
      %v2154 = vpack.c.bf16 %v2138, %v2137
      %v2171 = vunpack.c.l.b16 %v2139
      %v2172 = vunpack.c.h.b16 %v2139
      %v2173 = vunpack.c.l.b16 %v2140
      %v2174 = vunpack.c.h.b16 %v2140
      %v2175 = vunpack.c.l.b16 %v2141
      %v2176 = vunpack.c.h.b16 %v2141
      %v2177 = vunpack.c.l.b16 %v2142
      %v2178 = vunpack.c.h.b16 %v2142
      %v2179 = vunpack.c.l.b16 %v2143
      %v2180 = vunpack.c.h.b16 %v2143
      %v2181 = vunpack.c.l.b16 %v2144
      %v2182 = vunpack.c.h.b16 %v2144
      %v2183 = vunpack.c.l.b16 %v2145
      %v2184 = vunpack.c.h.b16 %v2145
      %v2185 = vunpack.c.l.b16 %v2146
      %v2186 = vunpack.c.h.b16 %v2146
      %v2187 = vunpack.c.l.b16 %v2147
      %v2188 = vunpack.c.h.b16 %v2147
      %v2189 = vunpack.c.l.b16 %v2148
      %v2190 = vunpack.c.h.b16 %v2148
      %v2191 = vunpack.c.l.b16 %v2149
      %v2192 = vunpack.c.h.b16 %v2149
      %v2193 = vunpack.c.l.b16 %v2150
      %v2194 = vunpack.c.h.b16 %v2150
      %v2195 = vunpack.c.l.b16 %v2151
      %v2196 = vunpack.c.h.b16 %v2151
      %v2197 = vunpack.c.l.b16 %v2152
      %v2198 = vunpack.c.h.b16 %v2152
      %v2199 = vunpack.c.l.b16 %v2153
      %v2200 = vunpack.c.h.b16 %v2153
      %v2201 = vunpack.c.l.b16 %v2154
      %v2202 = vunpack.c.h.b16 %v2154
      %v2203 = vpack.c.b16 %v2171, %v2171
      %v2204 = vpack.c.b16 %v2172, %v2172
      %v2205 = vpack.c.b16 %v2173, %v2173
      %v2206 = vpack.c.b16 %v2174, %v2174
      %v2207 = vpack.c.b16 %v2175, %v2175
      %v2208 = vpack.c.b16 %v2176, %v2176
      %v2209 = vpack.c.b16 %v2177, %v2177
      %v2210 = vpack.c.b16 %v2178, %v2178
      %v2211 = vpack.c.b16 %v2179, %v2179
      %v2212 = vpack.c.b16 %v2180, %v2180
      %v2213 = vpack.c.b16 %v2181, %v2181
      %v2214 = vpack.c.b16 %v2182, %v2182
      %v2215 = vpack.c.b16 %v2183, %v2183
      %v2216 = vpack.c.b16 %v2184, %v2184
      %v2217 = vpack.c.b16 %v2185, %v2185
      %v2218 = vpack.c.b16 %v2186, %v2186
      %v2219 = vpack.c.b16 %v2187, %v2187
      %v2220 = vpack.c.b16 %v2188, %v2188
      %v2221 = vpack.c.b16 %v2189, %v2189
      %v2222 = vpack.c.b16 %v2190, %v2190
      %v2223 = vpack.c.b16 %v2191, %v2191
      %v2224 = vpack.c.b16 %v2192, %v2192
      %v2225 = vpack.c.b16 %v2193, %v2193
      %v2226 = vpack.c.b16 %v2194, %v2194
      %v2227 = vpack.c.b16 %v2195, %v2195
      %v2228 = vpack.c.b16 %v2196, %v2196
      %v2229 = vpack.c.b16 %v2197, %v2197
      %v2230 = vpack.c.b16 %v2198, %v2198
      %v2231 = vpack.c.b16 %v2199, %v2199
      %v2232 = vpack.c.b16 %v2200, %v2200
      %v2233 = vpack.c.b16 %v2201, %v2201
      %v2234 = vpack.c.b16 %v2202, %v2202
      %2267 = vst [vmem:[%s258] sm:$0xf] %v2203
      %2268 = vst [vmem:[%s258 + $0x4] sm:$0xf] %v2204
      %2269 = vst [vmem:[%s258 + $0x8] sm:$0xf] %v2205
      %2270 = vst [vmem:[%s258 + $0xc] sm:$0xf] %v2206
      %2271 = vst [vmem:[%s258 + $0x10] sm:$0xf] %v2207
      %2272 = vst [vmem:[%s258 + $0x14] sm:$0xf] %v2208
      %2273 = vst [vmem:[%s258 + $0x18] sm:$0xf] %v2209
      %2274 = vst [vmem:[%s258 + $0x1c] sm:$0xf] %v2210
      %2275 = vst [vmem:[%s258 + $0x20] sm:$0xf] %v2211
      %2276 = vst [vmem:[%s258 + $0x24] sm:$0xf] %v2212
      %2277 = vst [vmem:[%s258 + $0x28] sm:$0xf] %v2213
      %2278 = vst [vmem:[%s258 + $0x2c] sm:$0xf] %v2214
      %2279 = vst [vmem:[%s258 + $0x30] sm:$0xf] %v2215
      %2280 = vst [vmem:[%s258 + $0x34] sm:$0xf] %v2216
      %2281 = vst [vmem:[%s258 + $0x38] sm:$0xf] %v2217
      %2282 = vst [vmem:[%s258 + $0x3c] sm:$0xf] %v2218
      %2283 = vst [vmem:[%s258 + $0x40] sm:$0xf] %v2219
      %2284 = vst [vmem:[%s258 + $0x44] sm:$0xf] %v2220
      %2285 = vst [vmem:[%s258 + $0x48] sm:$0xf] %v2221
      %2286 = vst [vmem:[%s258 + $0x4c] sm:$0xf] %v2222
      %2287 = vst [vmem:[%s258 + $0x50] sm:$0xf] %v2223
      %2288 = vst [vmem:[%s258 + $0x54] sm:$0xf] %v2224
      %2289 = vst [vmem:[%s258 + $0x58] sm:$0xf] %v2225
      %2290 = vst [vmem:[%s258 + $0x5c] sm:$0xf] %v2226
      %2291 = vst [vmem:[%s258 + $0x60] sm:$0xf] %v2227
      %2292 = vst [vmem:[%s258 + $0x64] sm:$0xf] %v2228
      %2293 = vst [vmem:[%s258 + $0x68] sm:$0xf] %v2229
      %2294 = vst [vmem:[%s258 + $0x6c] sm:$0xf] %v2230
      %2295 = vst [vmem:[%s258 + $0x70] sm:$0xf] %v2231
      %2296 = vst [vmem:[%s258 + $0x74] sm:$0xf] %v2232
      %2297 = vst [vmem:[%s258 + $0x78] sm:$0xf] %v2233
      %2298 = vst [vmem:[%s258 + $0x7c] sm:$0xf] %v2234
      %v2299 = vunpack.c.l.bf16 %v2139
      %v2300 = vunpack.c.h.bf16 %v2139
      %v2301 = vunpack.c.l.bf16 %v2140
      %v2302 = vunpack.c.h.bf16 %v2140
      %v2303 = vunpack.c.l.bf16 %v2141
      %v2304 = vunpack.c.h.bf16 %v2141
      %v2305 = vunpack.c.l.bf16 %v2142
      %v2306 = vunpack.c.h.bf16 %v2142
      %v2307 = vunpack.c.l.bf16 %v2143
      %v2308 = vunpack.c.h.bf16 %v2143
      %v2309 = vunpack.c.l.bf16 %v2144
      %v2310 = vunpack.c.h.bf16 %v2144
      %v2311 = vunpack.c.l.bf16 %v2145
      %v2312 = vunpack.c.h.bf16 %v2145
      %v2313 = vunpack.c.l.bf16 %v2146
      %v2314 = vunpack.c.h.bf16 %v2146
      %v2315 = vunpack.c.l.bf16 %v2147
      %v2316 = vunpack.c.h.bf16 %v2147
      %v2317 = vunpack.c.l.bf16 %v2148
      %v2318 = vunpack.c.h.bf16 %v2148
      %v2319 = vunpack.c.l.bf16 %v2149
      %v2320 = vunpack.c.h.bf16 %v2149
      %v2321 = vunpack.c.l.bf16 %v2150
      %v2322 = vunpack.c.h.bf16 %v2150
      %v2323 = vunpack.c.l.bf16 %v2151
      %v2324 = vunpack.c.h.bf16 %v2151
      %v2325 = vunpack.c.l.bf16 %v2152
      %v2326 = vunpack.c.h.bf16 %v2152
      %v2327 = vunpack.c.l.bf16 %v2153
      %v2328 = vunpack.c.h.bf16 %v2153
      %v2329 = vunpack.c.l.bf16 %v2154
      %v2330 = vunpack.c.h.bf16 %v2154
      %v2331 = vadd.f32 %v2299, %v2300
      %v2332 = vadd.f32 %v2331, %v2301
      %v2333 = vadd.f32 %v2332, %v2302
      %v2334 = vadd.f32 %v2333, %v2303
      %v2335 = vadd.f32 %v2334, %v2304
      %v2336 = vadd.f32 %v2335, %v2305
      %v2337 = vadd.f32 %v2336, %v2306
      %v2338 = vadd.f32 %v2337, %v2307
      %v2339 = vadd.f32 %v2338, %v2308
      %v2340 = vadd.f32 %v2339, %v2309
      %v2341 = vadd.f32 %v2340, %v2310
      %v2342 = vadd.f32 %v2341, %v2311
      %v2343 = vadd.f32 %v2342, %v2312
      %v2344 = vadd.f32 %v2343, %v2313
      %v2345 = vadd.f32 %v2344, %v2314
      %v2346 = vadd.f32 %v2345, %v2315
      %v2347 = vadd.f32 %v2346, %v2316
      %v2348 = vadd.f32 %v2347, %v2317
      %v2349 = vadd.f32 %v2348, %v2318
      %v2350 = vadd.f32 %v2349, %v2319
      %v2351 = vadd.f32 %v2350, %v2320
      %v2352 = vadd.f32 %v2351, %v2321
      %v2353 = vadd.f32 %v2352, %v2322
      %v2354 = vadd.f32 %v2353, %v2323
      %v2355 = vadd.f32 %v2354, %v2324
      %v2356 = vadd.f32 %v2355, %v2325
      %v2357 = vadd.f32 %v2356, %v2326
      %v2358 = vadd.f32 %v2357, %v2327
      %v2359 = vadd.f32 %v2358, %v2328
      %v2360 = vadd.f32 %v2359, %v2329
      %v2361 = vadd.f32 %v2360, %v2330
      %v2362 = vrot.slane %v2361, 4
      %v2363 = vadd.f32 %v2361, %v2362
      %v2364 = vrot.slane %v2363, 2
      %v2365 = vadd.f32 %v2363, %v2364
      %v2366 = vrot.slane %v2365, 1
      %v2367 = vadd.f32 %v2365, %v2366
      %v2368 = vmul.f32 %v2299, %v2299
      %v2369 = vmul.f32 %v2300, %v2300
      %v2370 = vmul.f32 %v2301, %v2301
      %v2371 = vmul.f32 %v2302, %v2302
      %v2372 = vmul.f32 %v2303, %v2303
      %v2373 = vmul.f32 %v2304, %v2304
      %v2374 = vmul.f32 %v2305, %v2305
      %v2375 = vmul.f32 %v2306, %v2306
      %v2376 = vmul.f32 %v2307, %v2307
      %v2377 = vmul.f32 %v2308, %v2308
      %v2378 = vmul.f32 %v2309, %v2309
      %v2379 = vmul.f32 %v2310, %v2310
      %v2380 = vmul.f32 %v2311, %v2311
      %v2381 = vmul.f32 %v2312, %v2312
      %v2382 = vmul.f32 %v2313, %v2313
      %v2383 = vmul.f32 %v2314, %v2314
      %v2384 = vmul.f32 %v2315, %v2315
      %v2385 = vmul.f32 %v2316, %v2316
      %v2386 = vmul.f32 %v2317, %v2317
      %v2387 = vmul.f32 %v2318, %v2318
      %v2388 = vmul.f32 %v2319, %v2319
      %v2389 = vmul.f32 %v2320, %v2320
      %v2390 = vmul.f32 %v2321, %v2321
      %v2391 = vmul.f32 %v2322, %v2322
      %v2392 = vmul.f32 %v2323, %v2323
      %v2393 = vmul.f32 %v2324, %v2324
      %v2394 = vmul.f32 %v2325, %v2325
      %v2395 = vmul.f32 %v2326, %v2326
      %v2396 = vmul.f32 %v2327, %v2327
      %v2397 = vmul.f32 %v2328, %v2328
      %v2398 = vmul.f32 %v2329, %v2329
      %v2399 = vmul.f32 %v2330, %v2330
      %v2400 = vadd.f32 %v2368, %v2369
      %v2401 = vadd.f32 %v2400, %v2370
      %v2402 = vadd.f32 %v2401, %v2371
      %v2403 = vadd.f32 %v2402, %v2372
      %v2404 = vadd.f32 %v2403, %v2373
      %v2405 = vadd.f32 %v2404, %v2374
      %v2406 = vadd.f32 %v2405, %v2375
      %v2407 = vadd.f32 %v2406, %v2376
      %v2408 = vadd.f32 %v2407, %v2377
      %v2409 = vadd.f32 %v2408, %v2378
      %v2410 = vadd.f32 %v2409, %v2379
      %v2411 = vadd.f32 %v2410, %v2380
      %v2412 = vadd.f32 %v2411, %v2381
      %v2413 = vadd.f32 %v2412, %v2382
      %v2414 = vadd.f32 %v2413, %v2383
      %v2415 = vadd.f32 %v2414, %v2384
      %v2416 = vadd.f32 %v2415, %v2385
      %v2417 = vadd.f32 %v2416, %v2386
      %v2418 = vadd.f32 %v2417, %v2387
      %v2419 = vadd.f32 %v2418, %v2388
      %v2420 = vadd.f32 %v2419, %v2389
      %v2421 = vadd.f32 %v2420, %v2390
      %v2422 = vadd.f32 %v2421, %v2391
      %v2423 = vadd.f32 %v2422, %v2392
      %v2424 = vadd.f32 %v2423, %v2393
      %v2425 = vadd.f32 %v2424, %v2394
      %v2426 = vadd.f32 %v2425, %v2395
      %v2427 = vadd.f32 %v2426, %v2396
      %v2428 = vadd.f32 %v2427, %v2397
      %v2429 = vadd.f32 %v2428, %v2398
      %v2430 = vadd.f32 %v2429, %v2399
      %v2431 = vrot.slane %v2430, 4
      %v2432 = vadd.f32 %v2430, %v2431
      %v2433 = vrot.slane %v2432, 2
      %v2434 = vadd.f32 %v2432, %v2433
      %v2435 = vrot.slane %v2434, 1
      %v2436 = vadd.f32 %v2434, %v2435
      %vm2437 = vcmask 1040384
      %v2438 = vsel %vm2437, %v2367, %v2436
      %2439 = vst [vmem:[%s262] sm:$0x3] %v2438
      %p2440 = scmp.lt.s32.totalorder %s18, 1
      %s2441 = scalar_select %p2440, %s18, 1
      %s2442 = smul.addr %s2441, 32
      %s2443 = smul.addr %s2442, 4
      %s2444 = scalar_lea.vmem %s5, %s2443
      %p2445 = scmp.lt.s32.totalorder %s18, 1
      %s2446 = scalar_select %p2445, %s18, 1
      %s2447 = smul.addr %s2446, 2
      %s2448 = scalar_lea.vmem %s6, %s2447
      // Predicated region
      $region41: #{conv_mixer_forward.7} parent=39 // pred_check
        %p2449 = pneg %p146
      $region42: #{conv_mixer_forward.7} parent=39 // pred_check_branch
        %2451 = sbr.rel (%p2449) target = $region44
      $region43: #{conv_mixer_forward.7} parent=39 // pred_region
        _
      $region44: #{conv_mixer_forward.7} parent=39 // pred_fallthru
        _
      // Predicated region
      $region45: #{conv_mixer_forward.7} parent=39 // pred_check
        %p2452 = pneg %p172
      $region46: #{conv_mixer_forward.7} parent=39 // pred_check_branch
        %2454 = sbr.rel (%p2452) target = $region48
      $region47: #{conv_mixer_forward.7} parent=39 // pred_region
        _
      $region48: #{conv_mixer_forward.7} parent=39 // pred_fallthru
        _
    $region40: #{conv_mixer_forward.7} parent=5 // pred_fallthru
      _
    %p2455 = scmp.le.s32.totalorder 2, %s13
    // Predicated region
    $region49: #{conv_mixer_forward.7} parent=5 // pred_check
      %p2456 = pneg %p2455
    $region50: #{conv_mixer_forward.7} parent=5 // pred_check_branch
      %2458 = sbr.rel (%p2456) target = $region52
    $region51: #{conv_mixer_forward.7} parent=5 // pred_region
      %s2459 = ssub.s32 %s13, 2
      // Predicated region
      $region53: #{conv_mixer_forward.7} parent=51 // pred_check
        %p2460 = pneg %p152
      $region54: #{conv_mixer_forward.7} parent=51 // pred_check_branch
        %2462 = sbr.rel (%p2460) target = $region56
      $region55: #{conv_mixer_forward.7} parent=51 // pred_region
        %p2463 = scmp.lt.s32.totalorder %s19, 1
        %s2464 = scalar_select %p2463, %s19, 1
        %s2465 = smul.addr %s2464, 32
        %s2466 = smul.addr %s2465, 4
        %s2467 = scalar_lea.vmem %s5, %s2466
      $region56: #{conv_mixer_forward.7} parent=51 // pred_fallthru
        _
      // Predicated region
      $region57: #{conv_mixer_forward.7} parent=51 // pred_check
        %p2468 = pneg %p178
      $region58: #{conv_mixer_forward.7} parent=51 // pred_check_branch
        %2470 = sbr.rel (%p2468) target = $region60
      $region59: #{conv_mixer_forward.7} parent=51 // pred_region
        %p2471 = scmp.lt.s32.totalorder %s19, 1
        %s2472 = scalar_select %p2471, %s19, 1
        %s2473 = smul.addr %s2472, 2
        %s2474 = scalar_lea.vmem %s6, %s2473
      $region60: #{conv_mixer_forward.7} parent=51 // pred_fallthru
        _
    $region52: #{conv_mixer_forward.7} parent=5 // pred_fallthru
      _
  $region6: #{conv_mixer_forward.7} parent=0 // loop_footer
    %s17 = sadd.s32 1, %s13
  $region7: #{conv_mixer_forward.7} parent=0 // loop_footer_branch
    %12 = sbr.rel target = $region3
  $region8: #{conv_mixer_forward.7} parent=0 // loop_exit
    _

// kernel: conv_mixer_forward.11
$region0: #{conv_mixer_forward.11}
  #allocation0 [shape = 'u32[]', space=smem, size = 0x4, offset = 0x4, fixed_abs, tag = 'smem constant byte address 0x4 - core index']
  #allocation1 [shape = 'u32[144,128]{1,0:T(1,128)}', space=vmem, size = 0x12000, scoped, tag = 'internal scratch']
  %s0 = inlined_call_operand.vmem [shape: bf16[512,128], index: 0, kind: input, shape index: {}]
  %s1 = inlined_call_operand.vmem [shape: f32[1,128], index: 1, kind: input, shape index: {}]
  %s2 = inlined_call_operand.vmem [shape: f32[1,128], index: 2, kind: input, shape index: {}]
  %s3 = inlined_call_operand.hbm [shape: f32[512,128], index: 3, kind: output, shape index: {}]
  %s4 = sld [smem:[#allocation0]]
  $region45: #{conv_mixer_forward.11} parent=0
    _
  %s6 = ssub.s32 1, %s4
  %s7 = scalar_select 0, %s6, %s4
  $region1: #{conv_mixer_forward.11} parent=0
    #allocation2 [shape = 'u8[262144]{0}', space=vmem, size = 0x40000, scoped, tag = 'output window, operand 0']
    #allocation3 [shape = 's32[2]{0}', space=sflag, size = 0x8, scoped, tag = 'scoped memory for conv_mixer_forward.11']
    %8 = vsyncpa [#allocation3], 0
    %s9 = scalar_lea.sflag [#allocation3], 1
    %10 = vsyncpa %s9, 0
    loop: start=0, step=1, limit=4
    $region2: #{conv_mixer_forward.11} parent=1 // loop_pre_header
      _
    $region3: #{conv_mixer_forward.11} parent=1 // loop_header
      %s12 = sphi 0, %s16
      %p13 = scmp.ge.s32.totalorder %s12, 4
      %s22 = sphi 0, %s24
      %s25 = sphi 0, %s22
      %s26 = sphi 0, %s25
      %s42 = sphi 0, %s26
      %s46 = sphi 0, %s46
      %s48 = sphi 0, %s46
      %s49 = sphi 0, %s48
      %s63 = sphi 0, %s49
      %s67 = sphi 0, %s67
      %s69 = sphi 0, %s67
      %s70 = sphi 0, %s69
      %s84 = sphi 0, %s70
      %s90 = sphi 0, %s92
      %s93 = sphi 0, %s90
      %s94 = sphi 0, %s93
      %s110 = sphi 0, %s94
    $region4: #{conv_mixer_forward.11} parent=1 // loop_header_branch
      %15 = sbr.rel (%p13) target = $region8
    $region5: #{conv_mixer_forward.11} parent=1 // loop_body
      %s17 = ssub.s32 %s12, 1
      %s18 = ssub.s32 %s12, 2
      %s19 = sadd.s32 %s12, 1
      %s20 = ssub.s32 %s12, %s19
      %p21 = scmp.eq.s32.totalorder %s20, 0
      %s23 = sadd.s32 %s22, 1
      %s24 = scalar_select %p21, %s22, %s23
      %p27 = pneg %p21
      %p28 = scmp.eq.s32.totalorder %s12, 1
      %p29 = por %p27, %p28
      %p30 = scmp.ne.s32.totalorder %s22, %s25
      %p31 = scmp.eq.s32.totalorder %s12, 0
      %p32 = por %p30, %p31
      %p33 = scmp.ne.s32.totalorder %s22, %s25
      %p34 = scmp.eq.s32.totalorder %s17, 1
      %p35 = por %p33, %p34
      %p36 = scmp.ne.s32.totalorder %s25, %s26
      %p37 = scmp.eq.s32.totalorder %s17, 0
      %p38 = por %p36, %p37
      %p39 = scmp.ne.s32.totalorder %s25, %s26
      %p40 = scmp.eq.s32.totalorder %s18, 1
      %p41 = por %p39, %p40
      %p43 = scmp.ne.s32.totalorder %s26, %s42
      %p44 = scmp.eq.s32.totalorder %s18, 0
      %p45 = por %p43, %p44
      %s47 = sadd.s32 %s46, 1
      %p50 = scmp.eq.s32.totalorder %s12, 1
      %p51 = scmp.ne.s32.totalorder %s46, %s48
      %p52 = scmp.eq.s32.totalorder %s12, 0
      %p53 = por %p51, %p52
      %p54 = scmp.ne.s32.totalorder %s46, %s48
      %p55 = scmp.eq.s32.totalorder %s17, 1
      %p56 = por %p54, %p55
      %p57 = scmp.ne.s32.totalorder %s48, %s49
      %p58 = scmp.eq.s32.totalorder %s17, 0
      %p59 = por %p57, %p58
      %p60 = scmp.ne.s32.totalorder %s48, %s49
      %p61 = scmp.eq.s32.totalorder %s18, 1
      %p62 = por %p60, %p61
      %p64 = scmp.ne.s32.totalorder %s49, %s63
      %p65 = scmp.eq.s32.totalorder %s18, 0
      %p66 = por %p64, %p65
      %s68 = sadd.s32 %s67, 1
      %p71 = scmp.eq.s32.totalorder %s12, 1
      %p72 = scmp.ne.s32.totalorder %s67, %s69
      %p73 = scmp.eq.s32.totalorder %s12, 0
      %p74 = por %p72, %p73
      %p75 = scmp.ne.s32.totalorder %s67, %s69
      %p76 = scmp.eq.s32.totalorder %s17, 1
      %p77 = por %p75, %p76
      %p78 = scmp.ne.s32.totalorder %s69, %s70
      %p79 = scmp.eq.s32.totalorder %s17, 0
      %p80 = por %p78, %p79
      %p81 = scmp.ne.s32.totalorder %s69, %s70
      %p82 = scmp.eq.s32.totalorder %s18, 1
      %p83 = por %p81, %p82
      %p85 = scmp.ne.s32.totalorder %s70, %s84
      %p86 = scmp.eq.s32.totalorder %s18, 0
      %p87 = por %p85, %p86
      %s88 = ssub.s32 %s12, %s19
      %p89 = scmp.eq.s32.totalorder %s88, 0
      %s91 = sadd.s32 %s90, 1
      %s92 = scalar_select %p89, %s90, %s91
      %p95 = pneg %p89
      %p96 = scmp.eq.s32.totalorder %s12, 1
      %p97 = por %p95, %p96
      %p98 = scmp.ne.s32.totalorder %s90, %s93
      %p99 = scmp.eq.s32.totalorder %s12, 0
      %p100 = por %p98, %p99
      %p101 = scmp.ne.s32.totalorder %s90, %s93
      %p102 = scmp.eq.s32.totalorder %s17, 1
      %p103 = por %p101, %p102
      %p104 = scmp.ne.s32.totalorder %s93, %s94
      %p105 = scmp.eq.s32.totalorder %s17, 0
      %p106 = por %p104, %p105
      %p107 = scmp.ne.s32.totalorder %s93, %s94
      %p108 = scmp.eq.s32.totalorder %s18, 1
      %p109 = por %p107, %p108
      %p111 = scmp.ne.s32.totalorder %s94, %s110
      %p112 = scmp.eq.s32.totalorder %s18, 0
      %p113 = por %p111, %p112
      %p114 = scmp.le.s32.totalorder 1, %s12
      %p115 = scmp.lt.s32.totalorder %s12, 3
      %p116 = pnand %p114, %p115
      %p117 = pneg %p116
      // Predicated region
      $region9: #{conv_mixer_forward.11} parent=5 // pred_check
        _
      $region10: #{conv_mixer_forward.11} parent=5 // pred_check_branch
        %119 = sbr.rel (%p116) target = $region12
      $region11: #{conv_mixer_forward.11} parent=5 // pred_region
        %s120 = ssub.s32 %s12, 1
        // Predicated region
        $region13: #{conv_mixer_forward.11} parent=11 // pred_check
          %p121 = pneg %p59
        $region14: #{conv_mixer_forward.11} parent=11 // pred_check_branch
          %123 = sbr.rel (%p121) target = $region16
        $region15: #{conv_mixer_forward.11} parent=11 // pred_region
          _
        $region16: #{conv_mixer_forward.11} parent=11 // pred_fallthru
          _
        // Predicated region
        $region17: #{conv_mixer_forward.11} parent=11 // pred_check
          %p124 = pneg %p80
        $region18: #{conv_mixer_forward.11} parent=11 // pred_check_branch
          %126 = sbr.rel (%p124) target = $region20
        $region19: #{conv_mixer_forward.11} parent=11 // pred_region
          _
        $region20: #{conv_mixer_forward.11} parent=11 // pred_fallthru
          _
      $region12: #{conv_mixer_forward.11} parent=5 // pred_fallthru
        _
      %p127 = scmp.lt.s32.totalorder %s12, 2
      // Predicated region
      $region21: #{conv_mixer_forward.11} parent=5 // pred_check
        %p128 = pneg %p127
      $region22: #{conv_mixer_forward.11} parent=5 // pred_check_branch
        %130 = sbr.rel (%p128) target = $region24
      $region23: #{conv_mixer_forward.11} parent=5 // pred_region
        // Predicated region
        $region25: #{conv_mixer_forward.11} parent=23 // pred_check
          %p131 = pneg %p32
        $region26: #{conv_mixer_forward.11} parent=23 // pred_check_branch
          %133 = sbr.rel (%p131) target = $region28
        $region27: #{conv_mixer_forward.11} parent=23 // pred_region
          %s134 = smul.u32 32, %s12
          %p135 = scmp.lt.s32.totalorder %s134, 63
          %s136 = scalar_select %p135, %s134, 63
          %s137 = smul.addr %s136, 4
          %s138 = scalar_lea.vmem %s0, %s137
          %s139 = smul.u32 32, %s12
        $region28: #{conv_mixer_forward.11} parent=23 // pred_fallthru
          _
      $region24: #{conv_mixer_forward.11} parent=5 // pred_fallthru
        _
      %p140 = scmp.le.s32.totalorder 1, %s12
      %p141 = scmp.lt.s32.totalorder %s12, 3
      %p142 = pnand %p140, %p141
      %p143 = pneg %p142
      // Predicated region
      $region29: #{conv_mixer_forward.11} parent=5 // pred_check
        _
      $region30: #{conv_mixer_forward.11} parent=5 // pred_check_branch
        %145 = sbr.rel (%p142) target = $region32
      $region31: #{conv_mixer_forward.11} parent=5 // pred_region
        %s146 = ssub.s32 %s12, 1
        %s147 = smul.u32 32, %s17
        %p148 = scmp.lt.s32.totalorder %s147, 63
        %s149 = scalar_select %p148, %s147, 63
        %s150 = smul.addr %s149, 4
        %s151 = scalar_lea.vmem %s0, %s150
        %p152 = pneg %p38
        %p153 = pneg %p35
        %p154 = pneg %p59
        %p155 = pneg %p56
        %p156 = pneg %p80
        %p157 = pneg %p77
        %p158 = pneg %p106
        %p159 = pneg %p103
        %s160 = sand.u32 %s93, 1
        %s161 = scalar_lea.sflag [#allocation3], %s160
        %s162 = sand.u32 %s93, 1
        %s163 = smul.addr %s162, 256
        %s164 = scalar_lea.vmem [#allocation2], %s163
        %s165 = smul.u32 32, %s17
        %p166 = scmp.lt.s32.totalorder %s165, 63
        %s167 = scalar_select %p166, %s165, 63
        %s168 = smul.addr %s167, 4
        %s169 = scalar_lea.vmem %s0, %s168
        %s170 = smul.u32 32, %s17
        %s171 = smul.u32 32, %s17
        %v172 = vld [vmem:[%s169] sm:$0xf]
        %v173 = vld [vmem:[%s169 + $0x4] sm:$0xf]
        %v174 = vld [vmem:[%s169 + $0x8] sm:$0xf]
        %v175 = vld [vmem:[%s169 + $0xc] sm:$0xf]
        %v176 = vld [vmem:[%s169 + $0x10] sm:$0xf]
        %v177 = vld [vmem:[%s169 + $0x14] sm:$0xf]
        %v178 = vld [vmem:[%s169 + $0x18] sm:$0xf]
        %v179 = vld [vmem:[%s169 + $0x1c] sm:$0xf]
        %v180 = vld [vmem:[%s169 + $0x20] sm:$0xf]
        %v181 = vld [vmem:[%s169 + $0x24] sm:$0xf]
        %v182 = vld [vmem:[%s169 + $0x28] sm:$0xf]
        %v183 = vld [vmem:[%s169 + $0x2c] sm:$0xf]
        %v184 = vld [vmem:[%s169 + $0x30] sm:$0xf]
        %v185 = vld [vmem:[%s169 + $0x34] sm:$0xf]
        %v186 = vld [vmem:[%s169 + $0x38] sm:$0xf]
        %v187 = vld [vmem:[%s169 + $0x3c] sm:$0xf]
        %v188 = vld [vmem:[%s169 + $0x40] sm:$0xf]
        %v189 = vld [vmem:[%s169 + $0x44] sm:$0xf]
        %v190 = vld [vmem:[%s169 + $0x48] sm:$0xf]
        %v191 = vld [vmem:[%s169 + $0x4c] sm:$0xf]
        %v192 = vld [vmem:[%s169 + $0x50] sm:$0xf]
        %v193 = vld [vmem:[%s169 + $0x54] sm:$0xf]
        %v194 = vld [vmem:[%s169 + $0x58] sm:$0xf]
        %v195 = vld [vmem:[%s169 + $0x5c] sm:$0xf]
        %v196 = vld [vmem:[%s169 + $0x60] sm:$0xf]
        %v197 = vld [vmem:[%s169 + $0x64] sm:$0xf]
        %v198 = vld [vmem:[%s169 + $0x68] sm:$0xf]
        %v199 = vld [vmem:[%s169 + $0x6c] sm:$0xf]
        %v200 = vld [vmem:[%s169 + $0x70] sm:$0xf]
        %v201 = vld [vmem:[%s169 + $0x74] sm:$0xf]
        %v202 = vld [vmem:[%s169 + $0x78] sm:$0xf]
        %v203 = vld [vmem:[%s169 + $0x7c] sm:$0xf]
        %v204 = vunpack.c.l.bf16 %v172
        %v205 = vunpack.c.l.bf16 %v173
        %v206 = vunpack.c.l.bf16 %v174
        %v207 = vunpack.c.l.bf16 %v175
        %v208 = vunpack.c.l.bf16 %v176
        %v209 = vunpack.c.l.bf16 %v177
        %v210 = vunpack.c.l.bf16 %v178
        %v211 = vunpack.c.l.bf16 %v179
        %v212 = vunpack.c.l.bf16 %v180
        %v213 = vunpack.c.l.bf16 %v181
        %v214 = vunpack.c.l.bf16 %v182
        %v215 = vunpack.c.l.bf16 %v183
        %v216 = vunpack.c.l.bf16 %v184
        %v217 = vunpack.c.l.bf16 %v185
        %v218 = vunpack.c.l.bf16 %v186
        %v219 = vunpack.c.l.bf16 %v187
        %v220 = vunpack.c.l.bf16 %v188
        %v221 = vunpack.c.l.bf16 %v189
        %v222 = vunpack.c.l.bf16 %v190
        %v223 = vunpack.c.l.bf16 %v191
        %v224 = vunpack.c.l.bf16 %v192
        %v225 = vunpack.c.l.bf16 %v193
        %v226 = vunpack.c.l.bf16 %v194
        %v227 = vunpack.c.l.bf16 %v195
        %v228 = vunpack.c.l.bf16 %v196
        %v229 = vunpack.c.l.bf16 %v197
        %v230 = vunpack.c.l.bf16 %v198
        %v231 = vunpack.c.l.bf16 %v199
        %v232 = vunpack.c.l.bf16 %v200
        %v233 = vunpack.c.l.bf16 %v201
        %v234 = vunpack.c.l.bf16 %v202
        %v235 = vunpack.c.l.bf16 %v203
        %v236 = vld [vmem:[%s1] sm:$0x1]
        %v238 = vlaneseq
        %v239 = vshrl.u32 %v238, 7
        %v240 = vsub.s32 0, %v239
        %v241 = vrot.slane %v236, %v240
        %v243 = vmul.f32 %v204, %v241
        %v244 = vmul.f32 %v205, %v241
        %v245 = vmul.f32 %v206, %v241
        %v246 = vmul.f32 %v207, %v241
        %v247 = vmul.f32 %v208, %v241
        %v248 = vmul.f32 %v209, %v241
        %v249 = vmul.f32 %v210, %v241
        %v250 = vmul.f32 %v211, %v241
        %v251 = vmul.f32 %v212, %v241
        %v252 = vmul.f32 %v213, %v241
        %v253 = vmul.f32 %v214, %v241
        %v254 = vmul.f32 %v215, %v241
        %v255 = vmul.f32 %v216, %v241
        %v256 = vmul.f32 %v217, %v241
        %v257 = vmul.f32 %v218, %v241
        %v258 = vmul.f32 %v219, %v241
        %v259 = vmul.f32 %v220, %v241
        %v260 = vmul.f32 %v221, %v241
        %v261 = vmul.f32 %v222, %v241
        %v262 = vmul.f32 %v223, %v241
        %v263 = vmul.f32 %v224, %v241
        %v264 = vmul.f32 %v225, %v241
        %v265 = vmul.f32 %v226, %v241
        %v266 = vmul.f32 %v227, %v241
        %v267 = vmul.f32 %v228, %v241
        %v268 = vmul.f32 %v229, %v241
        %v269 = vmul.f32 %v230, %v241
        %v270 = vmul.f32 %v231, %v241
        %v271 = vmul.f32 %v232, %v241
        %v272 = vmul.f32 %v233, %v241
        %v273 = vmul.f32 %v234, %v241
        %v274 = vmul.f32 %v235, %v241
        %v275 = vld [vmem:[%s2] sm:$0x1]
        %v277 = vlaneseq
        %v278 = vshrl.u32 %v277, 7
        %v279 = vsub.s32 0, %v278
        %v280 = vrot.slane %v275, %v279
        %v282 = vadd.f32 %v243, %v280
        %v283 = vadd.f32 %v244, %v280
        %v284 = vadd.f32 %v245, %v280
        %v285 = vadd.f32 %v246, %v280
        %v286 = vadd.f32 %v247, %v280
        %v287 = vadd.f32 %v248, %v280
        %v288 = vadd.f32 %v249, %v280
        %v289 = vadd.f32 %v250, %v280
        %v290 = vadd.f32 %v251, %v280
        %v291 = vadd.f32 %v252, %v280
        %v292 = vadd.f32 %v253, %v280
        %v293 = vadd.f32 %v254, %v280
        %v294 = vadd.f32 %v255, %v280
        %v295 = vadd.f32 %v256, %v280
        %v296 = vadd.f32 %v257, %v280
        %v297 = vadd.f32 %v258, %v280
        %v298 = vadd.f32 %v259, %v280
        %v299 = vadd.f32 %v260, %v280
        %v300 = vadd.f32 %v261, %v280
        %v301 = vadd.f32 %v262, %v280
        %v302 = vadd.f32 %v263, %v280
        %v303 = vadd.f32 %v264, %v280
        %v304 = vadd.f32 %v265, %v280
        %v305 = vadd.f32 %v266, %v280
        %v306 = vadd.f32 %v267, %v280
        %v307 = vadd.f32 %v268, %v280
        %v308 = vadd.f32 %v269, %v280
        %v309 = vadd.f32 %v270, %v280
        %v310 = vadd.f32 %v271, %v280
        %v311 = vadd.f32 %v272, %v280
        %v312 = vadd.f32 %v273, %v280
        %v313 = vadd.f32 %v274, %v280
        %314 = vst [vmem:[%s164] sm:$0xff] %v282
        %315 = vst [vmem:[%s164 + $0x8] sm:$0xff] %v283
        %316 = vst [vmem:[%s164 + $0x10] sm:$0xff] %v284
        %317 = vst [vmem:[%s164 + $0x18] sm:$0xff] %v285
        %318 = vst [vmem:[%s164 + $0x20] sm:$0xff] %v286
        %319 = vst [vmem:[%s164 + $0x28] sm:$0xff] %v287
        %320 = vst [vmem:[%s164 + $0x30] sm:$0xff] %v288
        %321 = vst [vmem:[%s164 + $0x38] sm:$0xff] %v289
        %322 = vst [vmem:[%s164 + $0x40] sm:$0xff] %v290
        %323 = vst [vmem:[%s164 + $0x48] sm:$0xff] %v291
        %324 = vst [vmem:[%s164 + $0x50] sm:$0xff] %v292
        %325 = vst [vmem:[%s164 + $0x58] sm:$0xff] %v293
        %326 = vst [vmem:[%s164 + $0x60] sm:$0xff] %v294
        %327 = vst [vmem:[%s164 + $0x68] sm:$0xff] %v295
        %328 = vst [vmem:[%s164 + $0x70] sm:$0xff] %v296
        %329 = vst [vmem:[%s164 + $0x78] sm:$0xff] %v297
        %330 = vst [vmem:[%s164 + $0x80] sm:$0xff] %v298
        %331 = vst [vmem:[%s164 + $0x88] sm:$0xff] %v299
        %332 = vst [vmem:[%s164 + $0x90] sm:$0xff] %v300
        %333 = vst [vmem:[%s164 + $0x98] sm:$0xff] %v301
        %334 = vst [vmem:[%s164 + $0xa0] sm:$0xff] %v302
        %335 = vst [vmem:[%s164 + $0xa8] sm:$0xff] %v303
        %336 = vst [vmem:[%s164 + $0xb0] sm:$0xff] %v304
        %337 = vst [vmem:[%s164 + $0xb8] sm:$0xff] %v305
        %338 = vst [vmem:[%s164 + $0xc0] sm:$0xff] %v306
        %339 = vst [vmem:[%s164 + $0xc8] sm:$0xff] %v307
        %340 = vst [vmem:[%s164 + $0xd0] sm:$0xff] %v308
        %341 = vst [vmem:[%s164 + $0xd8] sm:$0xff] %v309
        %342 = vst [vmem:[%s164 + $0xe0] sm:$0xff] %v310
        %343 = vst [vmem:[%s164 + $0xe8] sm:$0xff] %v311
        %344 = vst [vmem:[%s164 + $0xf0] sm:$0xff] %v312
        %345 = vst [vmem:[%s164 + $0xf8] sm:$0xff] %v313
        %s346 = sand.u32 %s93, 1
        %s347 = scalar_lea.sflag [#allocation3], %s346
        %s348 = sand.u32 %s93, 1
        %s349 = smul.addr %s348, 256
        %s350 = scalar_lea.vmem [#allocation2], %s349
        // Predicated region
        $region33: #{conv_mixer_forward.11} parent=31 // pred_check
          %p351 = pneg %p103
        $region34: #{conv_mixer_forward.11} parent=31 // pred_check_branch
          %353 = sbr.rel (%p351) target = $region36
        $region35: #{conv_mixer_forward.11} parent=31 // pred_region
          %s354 = smul.u32 32, %s17
          %s356 = ssub.s32 4096, 4096
          %357 = vsyncadd %s347, %s356
          %s358 = smul.addr %s354, 128
          %s359 = scalar_lea.hbm %s3, %s358
          %s360 = sshll.u32 %s350, 4
          %s361 = int_to_ptr.vmem [resolvable:$true] %s360
          %366 = dma.vmem_to_hbm [thread:$0]  %s361, 4096, %s359, %s347, 128, 128, 8
        $region36: #{conv_mixer_forward.11} parent=31 // pred_fallthru
          _
      $region32: #{conv_mixer_forward.11} parent=5 // pred_fallthru
        _
      %p367 = scmp.le.s32.totalorder 2, %s12
      // Predicated region
      $region37: #{conv_mixer_forward.11} parent=5 // pred_check
        %p368 = pneg %p367
      $region38: #{conv_mixer_forward.11} parent=5 // pred_check_branch
        %370 = sbr.rel (%p368) target = $region40
      $region39: #{conv_mixer_forward.11} parent=5 // pred_region
        %s371 = ssub.s32 %s12, 2
        // Predicated region
        $region41: #{conv_mixer_forward.11} parent=39 // pred_check
          %p372 = pneg %p109
        $region42: #{conv_mixer_forward.11} parent=39 // pred_check_branch
          %374 = sbr.rel (%p372) target = $region44
        $region43: #{conv_mixer_forward.11} parent=39 // pred_region
          %s375 = sand.u32 %s94, 1
          %s376 = scalar_lea.sflag [#allocation3], %s375
          %s377 = sand.u32 %s94, 1
          %s378 = smul.addr %s377, 256
          %s379 = scalar_lea.vmem [#allocation2], %s378
          %380 = dma.done %s376, 4096
        $region44: #{conv_mixer_forward.11} parent=39 // pred_fallthru
          _
      $region40: #{conv_mixer_forward.11} parent=5 // pred_fallthru
        _
    $region6: #{conv_mixer_forward.11} parent=1 // loop_footer
      %s16 = sadd.s32 1, %s12
    $region7: #{conv_mixer_forward.11} parent=1 // loop_footer_branch
      %11 = sbr.rel target = $region3
    $region8: #{conv_mixer_forward.11} parent=1 // loop_exit
      _
    %381 = vsyncpa [#allocation3], 1
    %s382 = scalar_lea.sflag [#allocation3], 1
    %383 = vsyncpa %s382, 1

</llo_original>
